<compile_context>
chip_gen: v7x
topology: tpu7x:2x2x1
jax: 0.10.0
libtpu: 0.0.40
codegen_flags: <defaults>
</compile_context>

<pallas_src>
import math

import jax
import jax.numpy as jnp
from jax.experimental import pallas as pl
from jax.experimental.pallas import tpu as pltpu


def _mish_kernel(v):
    # mish(v) = v * tanh(softplus(v)) = v - 2v / ((1 + e^v)^2 + 1).
    # One EUP exp + one EUP reciprocal.  approx=False keeps ~exact numerics;
    # flip to approx=True (saves only a couple of VPU Newton steps, which have
    # slack here) if ~1e-3 relative error is acceptable.
    e = jnp.exp(jnp.minimum(v, 30.0))
    p = 1.0 + e
    return v - (v + v) * pl.reciprocal(p * p + 1.0, approx=False)


def resnet_block1d(x, mask, time_emb, params, *, groups=8, eps=1e-5, batch_block=2):
    """x: (B, C_in, T); mask: (B, 1, T); time_emb: (B, E).

    params (PyTorch layouts):
      w1: (3, C_out, C_in)   conv1 taps (tap k multiplies x[t + k - 1])
      b1, g1, be1: (C_out,)  conv1 bias, GroupNorm1 gamma/beta
      w2: (3, C_out, C_out)  conv2 taps;  b2, g2, be2: (C_out,)
      wm: (C_out, E), bm: (C_out,)        time-MLP Linear
      wres: (C_out, C_in), bres: (C_out,) 1x1 residual conv
    """
    B, C_in, T = x.shape
    w1 = params["w1"]
    C_out = w1.shape[1]
    E = params["wm"].shape[1]
    cpg = C_out // groups
    inv_n = 1.0 / float(cpg * T)

    Bb = max(1, math.gcd(B, int(batch_block)))   # batch elements per grid step
    steps = B // Bb
    L = Bb * T                                   # lanes per grid step

    # ------------------------------ kernel ----------------------------------
    def kernel(x_ref, mask_ref, temb_ref, seg_ref, segt_ref,
               w1s_ref, w2s_ref, wm_ref, vecs_ref, gmat_ref, gmatt_ref,
               out_ref):
        xs = x_ref[...]                       # (C_in, L)
        mp = mask_ref[...]                    # (3, L): [frame mask, not-left-edge, not-right-edge]
        m, nl, nr = mp[0:1], mp[1:2], mp[2:3]
        seg = seg_ref[...]                    # (B, L)  0/1 batch-segment matrix
        segt = segt_ref[...]                  # (L, B)
        gmat = gmat_ref[...]                  # (G, C_out) group membership
        gmt = gmatt_ref[...]                  # (C_out, G)
        vecs = vecs_ref[...]                  # (C_out, 8) packed per-channel vectors
        b1, g1, be1 = vecs[:, 0:1], vecs[:, 1:2], vecs[:, 2:3]
        b2, g2, be2 = vecs[:, 3:4], vecs[:, 4:5], vecs[:, 5:6]
        bm, bres = vecs[:, 6:7], vecs[:, 7:8]

        def shift_cat(a):
            # [a(t-1); a(t); a(t+1)] stacked on the sublane axis; sequence
            # edges (per T-segment) zeroed via precomputed edge masks so rolls
            # never leak across batch boundaries inside the block.
            prev = pltpu.roll(a, shift=1, axis=1) * nl
            nxt = pltpu.roll(a, shift=L - 1, axis=1) * nr
            return jnp.concatenate([prev, a, nxt], axis=0)

        def group_norm(h, gamma, beta):
            # Per-batch-segment GroupNorm finished as one fused scale/shift.
            hh = jnp.concatenate([h, h * h], axis=0)                        # (2C, L)
            s = jnp.dot(hh, segt, preferred_element_type=jnp.float32)       # (2C, B)
            mean_gb = jnp.dot(gmat, s[:C_out],
                              preferred_element_type=jnp.float32) * inv_n   # (G, B)
            msq_gb = jnp.dot(gmat, s[C_out:],
                             preferred_element_type=jnp.float32) * inv_n    # (G, B)
            inv_gb = jax.lax.rsqrt(msq_gb - mean_gb * mean_gb + eps)        # (G, B)
            scale_c = jnp.dot(gmt, inv_gb,
                              preferred_element_type=jnp.float32) * gamma   # (C, B)
            shift_c = beta - jnp.dot(gmt, mean_gb * inv_gb,
                                     preferred_element_type=jnp.float32) * gamma
            ss = jnp.concatenate([scale_c, shift_c], axis=0)                # (2C, B)
            ssl = jnp.dot(ss, seg, preferred_element_type=jnp.float32)      # (2C, L)
            return h * ssl[:C_out] + ssl[C_out:]

        xm = xs * m

        # block1 conv (k=3) + folded 1x1 residual conv: one stacked matmul.
        z = jnp.dot(w1s_ref[...], shift_cat(xm),
                    preferred_element_type=jnp.float32)                     # (2C, L)
        res = z[C_out:] + bres
        h = group_norm(z[:C_out] + b1, g1, be1)
        h = _mish_kernel(h) * m

        # time MLP: Mish -> Linear, broadcast over each batch's T lanes.
        t_all = jnp.dot(wm_ref[...], _mish_kernel(temb_ref[...]),
                        preferred_element_type=jnp.float32) + bm            # (C, B)
        h = h + jnp.dot(t_all, seg, preferred_element_type=jnp.float32)     # (C, L)

        # block2
        h = jnp.dot(w2s_ref[...], shift_cat(h * m),
                    preferred_element_type=jnp.float32) + b2
        h = group_norm(h, g2, be2)
        h = _mish_kernel(h) * m

        out_ref[...] = (h + res).astype(out_ref.dtype)

    # ------------------------ wrapper-side packing ---------------------------
    f32 = jnp.float32
    w1f = params["w1"].astype(f32)
    w2f = params["w2"].astype(f32)
    zpad = jnp.zeros((C_out, C_in), f32)
    w1s = jnp.concatenate(
        [jnp.concatenate([w1f[0], w1f[1], w1f[2]], axis=1),
         jnp.concatenate([zpad, params["wres"].astype(f32), zpad], axis=1)],
        axis=0)                                                  # (2*C_out, 3*C_in)
    w2s = jnp.concatenate([w2f[0], w2f[1], w2f[2]], axis=1)      # (C_out, 3*C_out)
    wm = params["wm"].astype(f32)                                # (C_out, E)
    vecs = jnp.stack([params["b1"], params["g1"], params["be1"],
                      params["b2"], params["g2"], params["be2"],
                      params["bm"], params["bres"]], axis=1).astype(f32)   # (C_out, 8)
    gmat = (jnp.arange(C_out)[None, :] // cpg
            == jnp.arange(groups)[:, None]).astype(f32)          # (G, C_out)
    gmat_t = gmat.T                                              # (C_out, G)

    x_flat = jnp.transpose(x.astype(f32), (1, 0, 2)).reshape(C_in, B * T)
    pos = jnp.arange(B * T) % T
    maskpack = jnp.concatenate(
        [jnp.transpose(mask.astype(f32), (1, 0, 2)).reshape(1, B * T),
         (pos != 0).astype(f32)[None, :],
         (pos != T - 1).astype(f32)[None, :]], axis=0)           # (3, B*T)
    lane_batch = jnp.arange(B * T) // T
    seg = (lane_batch[None, :] == jnp.arange(B)[:, None]).astype(f32)   # (B, B*T)
    segt = seg.T                                                 # (B*T, B)
    temb_t = time_emb.astype(f32).T                              # (E, B)

    lane_map = lambda i: (0, i)
    const_map = lambda i: (0, 0)
    in_specs = [
        pl.BlockSpec((C_in, L), lane_map),               # x (flattened, lane-dense)
        pl.BlockSpec((3, L), lane_map),                  # frame mask + conv edge masks
        pl.BlockSpec((E, B), const_map),                 # time_emb (all batches, tiny)
        pl.BlockSpec((B, L), lane_map),                  # batch-segment matrix
        pl.BlockSpec((L, B), lambda i: (i, 0)),          # its transpose
        pl.BlockSpec((2 * C_out, 3 * C_in), const_map),  # stacked conv1 + residual weights
        pl.BlockSpec((C_out, 3 * C_out), const_map),     # stacked conv2 weights
        pl.BlockSpec((C_out, E), const_map),             # time-MLP weight
        pl.BlockSpec((C_out, 8), const_map),             # packed per-channel vectors
        pl.BlockSpec((groups, C_out), const_map),        # group membership
        pl.BlockSpec((C_out, groups), const_map),        # its transpose
    ]
    out_spec = pl.BlockSpec((C_out, L), lane_map)

    flops = int(
        2 * (2 * C_out) * (3 * C_in) * B * T            # conv1 + residual (stacked)
        + 2 * C_out * (3 * C_out) * B * T               # conv2
        + 8 * (2 * C_out) * B * (B * T)                 # GroupNorm stats + scale/shift expansion
        + steps * 2 * C_out * E * B                     # time MLP
        + 2 * C_out * B * (B * T)                       # time-term broadcast
        + 20 * C_out * B * T)                           # elementwise
    transcendentals = int(2 * (2 * C_out * B * T) + 2 * steps * E * B
                          + 2 * steps * groups * B)
    bytes_accessed = int(4 * (x_flat.size + maskpack.size + temb_t.size
                              + seg.size + segt.size + C_out * B * T
                              + w1s.size + w2s.size + wm.size + vecs.size
                              + gmat.size + gmat_t.size))
    cost = pl.CostEstimate(flops=flops, transcendentals=transcendentals,
                           bytes_accessed=bytes_accessed)

    out_flat = pl.pallas_call(
        kernel,
        out_shape=jax.ShapeDtypeStruct((C_out, B * T), x.dtype),
        grid=(steps,),
        in_specs=in_specs,
        out_specs=out_spec,
        compiler_params=pltpu.CompilerParams(
            dimension_semantics=("parallel",)),
        cost_estimate=cost,
    )(x_flat, maskpack, temb_t, seg, segt,
      w1s, w2s, wm, vecs, gmat, gmat_t)

    return jnp.transpose(out_flat.reshape(C_out, B, T), (1, 0, 2))


# ------------------------------ pure-JAX reference ---------------------------
def _softplus_ref(v):
    return jnp.maximum(v, 0.0) + jnp.log1p(jnp.exp(-jnp.abs(v)))


def _mish_ref(v):
    return v * jnp.tanh(_softplus_ref(v))


def resnet_block1d_ref(x, mask, time_emb, params, *, groups=8, eps=1e-5):
    def conv1d(inp, w, b, pad):
        y = jax.lax.conv_general_dilated(
            inp, w, window_strides=(1,), padding=[(pad, pad)],
            dimension_numbers=("NCH", "OIH", "NCH"))
        return y + b[None, :, None]

    def group_norm(h, gamma, beta):
        B_, C, T_ = h.shape
        hg = h.reshape(B_, groups, C // groups, T_)
        mu = hg.mean(axis=(2, 3), keepdims=True)
        var = hg.var(axis=(2, 3), keepdims=True)
        hn = ((hg - mu) * jax.lax.rsqrt(var + eps)).reshape(B_, C, T_)
        return hn * gamma[None, :, None] + beta[None, :, None]

    w1 = jnp.transpose(params["w1"], (1, 2, 0))   # (C_out, C_in, 3)
    w2 = jnp.transpose(params["w2"], (1, 2, 0))

    xm = x * mask
    h = conv1d(xm, w1, params["b1"], 1)
    h = _mish_ref(group_norm(h, params["g1"], params["be1"])) * mask
    t = _mish_ref(time_emb) @ params["wm"].T + params["bm"]
    h = h + t[:, :, None]
    h = conv1d(h * mask, w2, params["b2"], 1)
    h = _mish_ref(group_norm(h, params["g2"], params["be2"])) * mask
    res = conv1d(xm, params["wres"][:, :, None], params["bres"], 0)
    return h + res


if __name__ == "__main__":
    # Small shapes consistent with the module: dim=32, dim_out=32,
    # time_emb_dim=64, groups=8, T=128 (lane-dense).  B=4 so each grid step
    # processes 2 batch elements and the grid still has 2 parallel steps
    # (keeps both v7x TensorCores busy).
    B, C_IN, C_OUT, T, E, GROUPS = 4, 32, 32, 128, 64, 8

    key = jax.random.PRNGKey(0)
    keys = jax.random.split(key, 16)

    def u(k, shape, fan_in):
        lim = 1.0 / (fan_in ** 0.5)
        return jax.random.uniform(k, shape, jnp.float32, -lim, lim)

    x = jax.random.normal(keys[0], (B, C_IN, T), jnp.float32)
    time_emb = jax.random.normal(keys[1], (B, E), jnp.float32)
    lengths = jnp.array([T, 96, T, 64])
    mask = (jnp.arange(T)[None, None, :] < lengths[:, None, None]).astype(jnp.float32)

    params = {
        "w1": u(keys[2], (3, C_OUT, C_IN), C_IN * 3),
        "b1": u(keys[3], (C_OUT,), C_IN * 3),
        "g1": 1.0 + 0.1 * jax.random.normal(keys[4], (C_OUT,), jnp.float32),
        "be1": 0.1 * jax.random.normal(keys[5], (C_OUT,), jnp.float32),
        "w2": u(keys[6], (3, C_OUT, C_OUT), C_OUT * 3),
        "b2": u(keys[7], (C_OUT,), C_OUT * 3),
        "g2": 1.0 + 0.1 * jax.random.normal(keys[8], (C_OUT,), jnp.float32),
        "be2": 0.1 * jax.random.normal(keys[9], (C_OUT,), jnp.float32),
        "wm": u(keys[10], (C_OUT, E), E),
        "bm": u(keys[11], (C_OUT,), E),
        "wres": u(keys[12], (C_OUT, C_IN), C_IN),
        "bres": u(keys[13], (C_OUT,), C_IN),
    }

    out = resnet_block1d(x, mask, time_emb, params, groups=GROUPS, batch_block=2)
    out = jax.block_until_ready(out)

    ref = resnet_block1d_ref(x, mask, time_emb, params, groups=GROUPS)
    assert out.shape == (B, C_OUT, T)
    max_err = float(jnp.max(jnp.abs(out - ref)))
    assert jnp.allclose(out, ref, atol=5e-4, rtol=5e-4), f"mismatch vs reference: {max_err}"

    print("KERNEL_OK")
</pallas_src>

<mosaic_0001>
module attributes {stable_mosaic.version = 11 : i64} {
  func.func @kernel(%arg0: i32, %arg1: memref<32x256xf32, #tpu.memory_space<vmem>>, %arg2: memref<3x256xf32, #tpu.memory_space<vmem>>, %arg3: memref<64x4xf32, #tpu.memory_space<vmem>>, %arg4: memref<4x256xf32, #tpu.memory_space<vmem>>, %arg5: memref<256x4xf32, #tpu.memory_space<vmem>>, %arg6: memref<64x96xf32, #tpu.memory_space<vmem>>, %arg7: memref<32x96xf32, #tpu.memory_space<vmem>>, %arg8: memref<32x64xf32, #tpu.memory_space<vmem>>, %arg9: memref<32x8xf32, #tpu.memory_space<vmem>>, %arg10: memref<8x32xf32, #tpu.memory_space<vmem>>, %arg11: memref<32x8xf32, #tpu.memory_space<vmem>>, %arg12: memref<32x256xf32, #tpu.memory_space<vmem>>) attributes {dimension_semantics = [#tpu.dimension_semantics<parallel>], iteration_bounds = array<i64: 2>, scalar_prefetch = 0 : i64, scratch_operands = 0 : i64, tpu.core_type = #tpu.core_type<tc>, window_params = [{transform_indices = @transform_0, window_bounds = array<i64: 32, 256>}, {transform_indices = @transform_1, window_bounds = array<i64: 3, 256>}, {pipeline_mode = #tpu.pipeline_mode<synchronous>, transform_indices = @transform_2, window_bounds = array<i64: 64, 4>}, {transform_indices = @transform_3, window_bounds = array<i64: 4, 256>}, {transform_indices = @transform_4, window_bounds = array<i64: 256, 4>}, {pipeline_mode = #tpu.pipeline_mode<synchronous>, transform_indices = @transform_5, window_bounds = array<i64: 64, 96>}, {pipeline_mode = #tpu.pipeline_mode<synchronous>, transform_indices = @transform_6, window_bounds = array<i64: 32, 96>}, {pipeline_mode = #tpu.pipeline_mode<synchronous>, transform_indices = @transform_7, window_bounds = array<i64: 32, 64>}, {pipeline_mode = #tpu.pipeline_mode<synchronous>, transform_indices = @transform_8, window_bounds = array<i64: 32, 8>}, {pipeline_mode = #tpu.pipeline_mode<synchronous>, transform_indices = @transform_9, window_bounds = array<i64: 8, 32>}, {pipeline_mode = #tpu.pipeline_mode<synchronous>, transform_indices = @transform_10, window_bounds = array<i64: 32, 8>}, {transform_indices = @transform_11, window_bounds = array<i64: 32, 256>}]} {
    %c0 = arith.constant 0 : index
    %c0_0 = arith.constant 0 : index
    %0 = vector.load %arg1[%c0, %c0_0] : memref<32x256xf32, #tpu.memory_space<vmem>>, vector<32x256xf32>
    %c0_1 = arith.constant 0 : index
    %c0_2 = arith.constant 0 : index
    %1 = vector.load %arg2[%c0_1, %c0_2] : memref<3x256xf32, #tpu.memory_space<vmem>>, vector<3x256xf32>
    %2 = vector.extract_strided_slice %1 {offsets = [0, 0], sizes = [1, 256], strides = [1, 1]} : vector<3x256xf32> to vector<1x256xf32>
    %3 = vector.extract_strided_slice %1 {offsets = [1, 0], sizes = [1, 256], strides = [1, 1]} : vector<3x256xf32> to vector<1x256xf32>
    %4 = vector.extract_strided_slice %1 {offsets = [2, 0], sizes = [1, 256], strides = [1, 1]} : vector<3x256xf32> to vector<1x256xf32>
    %c0_3 = arith.constant 0 : index
    %c0_4 = arith.constant 0 : index
    %5 = vector.load %arg4[%c0_3, %c0_4] : memref<4x256xf32, #tpu.memory_space<vmem>>, vector<4x256xf32>
    %c0_5 = arith.constant 0 : index
    %c0_6 = arith.constant 0 : index
    %6 = vector.load %arg5[%c0_5, %c0_6] : memref<256x4xf32, #tpu.memory_space<vmem>>, vector<256x4xf32>
    %c0_7 = arith.constant 0 : index
    %c0_8 = arith.constant 0 : index
    %7 = vector.load %arg10[%c0_7, %c0_8] : memref<8x32xf32, #tpu.memory_space<vmem>>, vector<8x32xf32>
    %c0_9 = arith.constant 0 : index
    %c0_10 = arith.constant 0 : index
    %8 = vector.load %arg11[%c0_9, %c0_10] : memref<32x8xf32, #tpu.memory_space<vmem>>, vector<32x8xf32>
    %c0_11 = arith.constant 0 : index
    %c0_12 = arith.constant 0 : index
    %9 = vector.load %arg9[%c0_11, %c0_12] : memref<32x8xf32, #tpu.memory_space<vmem>>, vector<32x8xf32>
    %10 = vector.extract_strided_slice %9 {offsets = [0, 0], sizes = [32, 1], strides = [1, 1]} : vector<32x8xf32> to vector<32x1xf32>
    %11 = vector.extract_strided_slice %9 {offsets = [0, 1], sizes = [32, 1], strides = [1, 1]} : vector<32x8xf32> to vector<32x1xf32>
    %12 = vector.extract_strided_slice %9 {offsets = [0, 2], sizes = [32, 1], strides = [1, 1]} : vector<32x8xf32> to vector<32x1xf32>
    %13 = vector.extract_strided_slice %9 {offsets = [0, 3], sizes = [32, 1], strides = [1, 1]} : vector<32x8xf32> to vector<32x1xf32>
    %14 = vector.extract_strided_slice %9 {offsets = [0, 4], sizes = [32, 1], strides = [1, 1]} : vector<32x8xf32> to vector<32x1xf32>
    %15 = vector.extract_strided_slice %9 {offsets = [0, 5], sizes = [32, 1], strides = [1, 1]} : vector<32x8xf32> to vector<32x1xf32>
    %16 = vector.extract_strided_slice %9 {offsets = [0, 6], sizes = [32, 1], strides = [1, 1]} : vector<32x8xf32> to vector<32x1xf32>
    %17 = vector.extract_strided_slice %9 {offsets = [0, 7], sizes = [32, 1], strides = [1, 1]} : vector<32x8xf32> to vector<32x1xf32>
    %18 = vector.broadcast %2 : vector<1x256xf32> to vector<32x256xf32>
    %19 = arith.mulf %0, %18 : vector<32x256xf32>
    %c0_13 = arith.constant 0 : index
    %c0_14 = arith.constant 0 : index
    %20 = vector.load %arg6[%c0_13, %c0_14] : memref<64x96xf32, #tpu.memory_space<vmem>>, vector<64x96xf32>
    %c1_i32 = arith.constant 1 : i32
    %21 = tpu.dynamic_rotate %19 by %c1_i32 dim 1 : vector<32x256xf32>, i32 -> vector<32x256xf32>
    %22 = vector.broadcast %3 : vector<1x256xf32> to vector<32x256xf32>
    %23 = arith.mulf %21, %22 : vector<32x256xf32>
    %c255_i32 = arith.constant 255 : i32
    %24 = tpu.dynamic_rotate %19 by %c255_i32 dim 1 : vector<32x256xf32>, i32 -> vector<32x256xf32>
    %25 = vector.broadcast %4 : vector<1x256xf32> to vector<32x256xf32>
    %26 = arith.mulf %24, %25 : vector<32x256xf32>
    %27 = tpu.concatenate %23, %19, %26 in 0 : vector<32x256xf32>, vector<32x256xf32>, vector<32x256xf32> -> vector<96x256xf32>
    %cst = arith.constant dense<0.000000e+00> : vector<64x256xf32>
    %28 = tpu.matmul %20, %27, %cst {dimension_numbers = #tpu.dot_dimension_numbers<[1], [0], [0], [1], [0, 0, 1, 1], [], []>} : vector<64x96xf32>, vector<96x256xf32>, vector<64x256xf32> -> vector<64x256xf32>
    %29 = vector.extract_strided_slice %28 {offsets = [32, 0], sizes = [32, 256], strides = [1, 1]} : vector<64x256xf32> to vector<32x256xf32>
    %30 = vector.broadcast %17 : vector<32x1xf32> to vector<32x256xf32>
    %31 = arith.addf %29, %30 : vector<32x256xf32>
    %32 = vector.extract_strided_slice %28 {offsets = [0, 0], sizes = [32, 256], strides = [1, 1]} : vector<64x256xf32> to vector<32x256xf32>
    %33 = vector.broadcast %10 : vector<32x1xf32> to vector<32x256xf32>
    %34 = arith.addf %32, %33 : vector<32x256xf32>
    %35 = arith.mulf %34, %34 : vector<32x256xf32>
    %36 = tpu.concatenate %34, %35 in 0 : vector<32x256xf32>, vector<32x256xf32> -> vector<64x256xf32>
    %cst_15 = arith.constant dense<0.000000e+00> : vector<64x4xf32>
    %37 = tpu.matmul %36, %6, %cst_15 {dimension_numbers = #tpu.dot_dimension_numbers<[1], [0], [0], [1], [0, 0, 1, 1], [], []>} : vector<64x256xf32>, vector<256x4xf32>, vector<64x4xf32> -> vector<64x4xf32>
    %38 = vector.extract_strided_slice %37 {offsets = [0, 0], sizes = [32, 4], strides = [1, 1]} : vector<64x4xf32> to vector<32x4xf32>
    %cst_16 = arith.constant dense<0.000000e+00> : vector<8x4xf32>
    %39 = tpu.matmul %7, %38, %cst_16 {dimension_numbers = #tpu.dot_dimension_numbers<[1], [0], [0], [1], [0, 0, 1, 1], [], []>} : vector<8x32xf32>, vector<32x4xf32>, vector<8x4xf32> -> vector<8x4xf32>
    %cst_17 = arith.constant 0.001953125 : f32
    %40 = vector.broadcast %cst_17 : f32 to vector<8x4xf32>
    %41 = arith.mulf %39, %40 : vector<8x4xf32>
    %42 = vector.extract_strided_slice %37 {offsets = [32, 0], sizes = [32, 4], strides = [1, 1]} : vector<64x4xf32> to vector<32x4xf32>
    %cst_18 = arith.constant dense<0.000000e+00> : vector<8x4xf32>
    %43 = tpu.matmul %7, %42, %cst_18 {dimension_numbers = #tpu.dot_dimension_numbers<[1], [0], [0], [1], [0, 0, 1, 1], [], []>} : vector<8x32xf32>, vector<32x4xf32>, vector<8x4xf32> -> vector<8x4xf32>
    %cst_19 = arith.constant 0.001953125 : f32
    %44 = vector.broadcast %cst_19 : f32 to vector<8x4xf32>
    %45 = arith.mulf %43, %44 : vector<8x4xf32>
    %46 = arith.mulf %41, %41 : vector<8x4xf32>
    %47 = arith.subf %45, %46 : vector<8x4xf32>
    %cst_20 = arith.constant 9.99999974E-6 : f32
    %48 = vector.broadcast %cst_20 : f32 to vector<8x4xf32>
    %49 = arith.addf %47, %48 : vector<8x4xf32>
    %50 = math.rsqrt %49 : vector<8x4xf32>
    %cst_21 = arith.constant dense<0.000000e+00> : vector<32x4xf32>
    %51 = tpu.matmul %8, %50, %cst_21 {dimension_numbers = #tpu.dot_dimension_numbers<[1], [0], [0], [1], [0, 0, 1, 1], [], []>} : vector<32x8xf32>, vector<8x4xf32>, vector<32x4xf32> -> vector<32x4xf32>
    %52 = vector.broadcast %11 : vector<32x1xf32> to vector<32x4xf32>
    %53 = arith.mulf %51, %52 : vector<32x4xf32>
    %54 = arith.mulf %41, %50 : vector<8x4xf32>
    %cst_22 = arith.constant dense<0.000000e+00> : vector<32x4xf32>
    %55 = tpu.matmul %8, %54, %cst_22 {dimension_numbers = #tpu.dot_dimension_numbers<[1], [0], [0], [1], [0, 0, 1, 1], [], []>} : vector<32x8xf32>, vector<8x4xf32>, vector<32x4xf32> -> vector<32x4xf32>
    %56 = vector.broadcast %11 : vector<32x1xf32> to vector<32x4xf32>
    %57 = arith.mulf %55, %56 : vector<32x4xf32>
    %58 = vector.broadcast %12 : vector<32x1xf32> to vector<32x4xf32>
    %59 = arith.subf %58, %57 : vector<32x4xf32>
    %60 = tpu.concatenate %53, %59 in 0 : vector<32x4xf32>, vector<32x4xf32> -> vector<64x4xf32>
    %cst_23 = arith.constant dense<0.000000e+00> : vector<64x256xf32>
    %61 = tpu.matmul %60, %5, %cst_23 {dimension_numbers = #tpu.dot_dimension_numbers<[1], [0], [0], [1], [0, 0, 1, 1], [], []>} : vector<64x4xf32>, vector<4x256xf32>, vector<64x256xf32> -> vector<64x256xf32>
    %62 = vector.extract_strided_slice %61 {offsets = [0, 0], sizes = [32, 256], strides = [1, 1]} : vector<64x256xf32> to vector<32x256xf32>
    %63 = arith.mulf %34, %62 : vector<32x256xf32>
    %64 = vector.extract_strided_slice %61 {offsets = [32, 0], sizes = [32, 256], strides = [1, 1]} : vector<64x256xf32> to vector<32x256xf32>
    %65 = arith.addf %63, %64 : vector<32x256xf32>
    %cst_24 = arith.constant 3.000000e+01 : f32
    %66 = vector.broadcast %cst_24 : f32 to vector<32x256xf32>
    %67 = arith.minimumf %65, %66 : vector<32x256xf32>
    %68 = math.exp %67 : vector<32x256xf32>
    %cst_25 = arith.constant 1.000000e+00 : f32
    %69 = vector.broadcast %cst_25 : f32 to vector<32x256xf32>
    %70 = arith.addf %69, %68 : vector<32x256xf32>
    %71 = arith.addf %65, %65 : vector<32x256xf32>
    %72 = arith.mulf %70, %70 : vector<32x256xf32>
    %cst_26 = arith.constant 1.000000e+00 : f32
    %73 = vector.broadcast %cst_26 : f32 to vector<32x256xf32>
    %74 = arith.addf %72, %73 : vector<32x256xf32>
    %75 = tpu.reciprocal %74 : vector<32x256xf32> -> vector<32x256xf32>
    %76 = arith.mulf %71, %75 : vector<32x256xf32>
    %77 = arith.subf %65, %76 : vector<32x256xf32>
    %78 = vector.broadcast %2 : vector<1x256xf32> to vector<32x256xf32>
    %79 = arith.mulf %77, %78 : vector<32x256xf32>
    %c0_27 = arith.constant 0 : index
    %c0_28 = arith.constant 0 : index
    %80 = vector.load %arg8[%c0_27, %c0_28] : memref<32x64xf32, #tpu.memory_space<vmem>>, vector<32x64xf32>
    %c0_29 = arith.constant 0 : index
    %c0_30 = arith.constant 0 : index
    %81 = vector.load %arg3[%c0_29, %c0_30] : memref<64x4xf32, #tpu.memory_space<vmem>>, vector<64x4xf32>
    %cst_31 = arith.constant 3.000000e+01 : f32
    %82 = vector.broadcast %cst_31 : f32 to vector<64x4xf32>
    %83 = arith.minimumf %81, %82 : vector<64x4xf32>
    %84 = math.exp %83 : vector<64x4xf32>
    %cst_32 = arith.constant 1.000000e+00 : f32
    %85 = vector.broadcast %cst_32 : f32 to vector<64x4xf32>
    %86 = arith.addf %85, %84 : vector<64x4xf32>
    %87 = arith.addf %81, %81 : vector<64x4xf32>
    %88 = arith.mulf %86, %86 : vector<64x4xf32>
    %cst_33 = arith.constant 1.000000e+00 : f32
    %89 = vector.broadcast %cst_33 : f32 to vector<64x4xf32>
    %90 = arith.addf %88, %89 : vector<64x4xf32>
    %91 = tpu.reciprocal %90 : vector<64x4xf32> -> vector<64x4xf32>
    %92 = arith.mulf %87, %91 : vector<64x4xf32>
    %93 = arith.subf %81, %92 : vector<64x4xf32>
    %cst_34 = arith.constant dense<0.000000e+00> : vector<32x4xf32>
    %94 = tpu.matmul %80, %93, %cst_34 {dimension_numbers = #tpu.dot_dimension_numbers<[1], [0], [0], [1], [0, 0, 1, 1], [], []>} : vector<32x64xf32>, vector<64x4xf32>, vector<32x4xf32> -> vector<32x4xf32>
    %95 = vector.broadcast %16 : vector<32x1xf32> to vector<32x4xf32>
    %96 = arith.addf %94, %95 : vector<32x4xf32>
    %cst_35 = arith.constant dense<0.000000e+00> : vector<32x256xf32>
    %97 = tpu.matmul %96, %5, %cst_35 {dimension_numbers = #tpu.dot_dimension_numbers<[1], [0], [0], [1], [0, 0, 1, 1], [], []>} : vector<32x4xf32>, vector<4x256xf32>, vector<32x256xf32> -> vector<32x256xf32>
    %98 = arith.addf %79, %97 : vector<32x256xf32>
    %c0_36 = arith.constant 0 : index
    %c0_37 = arith.constant 0 : index
    %99 = vector.load %arg7[%c0_36, %c0_37] : memref<32x96xf32, #tpu.memory_space<vmem>>, vector<32x96xf32>
    %100 = vector.broadcast %2 : vector<1x256xf32> to vector<32x256xf32>
    %101 = arith.mulf %98, %100 : vector<32x256xf32>
    %c1_i32_38 = arith.constant 1 : i32
    %102 = tpu.dynamic_rotate %101 by %c1_i32_38 dim 1 : vector<32x256xf32>, i32 -> vector<32x256xf32>
    %103 = vector.broadcast %3 : vector<1x256xf32> to vector<32x256xf32>
    %104 = arith.mulf %102, %103 : vector<32x256xf32>
    %c255_i32_39 = arith.constant 255 : i32
    %105 = tpu.dynamic_rotate %101 by %c255_i32_39 dim 1 : vector<32x256xf32>, i32 -> vector<32x256xf32>
    %106 = vector.broadcast %4 : vector<1x256xf32> to vector<32x256xf32>
    %107 = arith.mulf %105, %106 : vector<32x256xf32>
    %108 = tpu.concatenate %104, %101, %107 in 0 : vector<32x256xf32>, vector<32x256xf32>, vector<32x256xf32> -> vector<96x256xf32>
    %cst_40 = arith.constant dense<0.000000e+00> : vector<32x256xf32>
    %109 = tpu.matmul %99, %108, %cst_40 {dimension_numbers = #tpu.dot_dimension_numbers<[1], [0], [0], [1], [0, 0, 1, 1], [], []>} : vector<32x96xf32>, vector<96x256xf32>, vector<32x256xf32> -> vector<32x256xf32>
    %110 = vector.broadcast %13 : vector<32x1xf32> to vector<32x256xf32>
    %111 = arith.addf %109, %110 : vector<32x256xf32>
    %112 = arith.mulf %111, %111 : vector<32x256xf32>
    %113 = tpu.concatenate %111, %112 in 0 : vector<32x256xf32>, vector<32x256xf32> -> vector<64x256xf32>
    %cst_41 = arith.constant dense<0.000000e+00> : vector<64x4xf32>
    %114 = tpu.matmul %113, %6, %cst_41 {dimension_numbers = #tpu.dot_dimension_numbers<[1], [0], [0], [1], [0, 0, 1, 1], [], []>} : vector<64x256xf32>, vector<256x4xf32>, vector<64x4xf32> -> vector<64x4xf32>
    %115 = vector.extract_strided_slice %114 {offsets = [0, 0], sizes = [32, 4], strides = [1, 1]} : vector<64x4xf32> to vector<32x4xf32>
    %cst_42 = arith.constant dense<0.000000e+00> : vector<8x4xf32>
    %116 = tpu.matmul %7, %115, %cst_42 {dimension_numbers = #tpu.dot_dimension_numbers<[1], [0], [0], [1], [0, 0, 1, 1], [], []>} : vector<8x32xf32>, vector<32x4xf32>, vector<8x4xf32> -> vector<8x4xf32>
    %cst_43 = arith.constant 0.001953125 : f32
    %117 = vector.broadcast %cst_43 : f32 to vector<8x4xf32>
    %118 = arith.mulf %116, %117 : vector<8x4xf32>
    %119 = vector.extract_strided_slice %114 {offsets = [32, 0], sizes = [32, 4], strides = [1, 1]} : vector<64x4xf32> to vector<32x4xf32>
    %cst_44 = arith.constant dense<0.000000e+00> : vector<8x4xf32>
    %120 = tpu.matmul %7, %119, %cst_44 {dimension_numbers = #tpu.dot_dimension_numbers<[1], [0], [0], [1], [0, 0, 1, 1], [], []>} : vector<8x32xf32>, vector<32x4xf32>, vector<8x4xf32> -> vector<8x4xf32>
    %cst_45 = arith.constant 0.001953125 : f32
    %121 = vector.broadcast %cst_45 : f32 to vector<8x4xf32>
    %122 = arith.mulf %120, %121 : vector<8x4xf32>
    %123 = arith.mulf %118, %118 : vector<8x4xf32>
    %124 = arith.subf %122, %123 : vector<8x4xf32>
    %cst_46 = arith.constant 9.99999974E-6 : f32
    %125 = vector.broadcast %cst_46 : f32 to vector<8x4xf32>
    %126 = arith.addf %124, %125 : vector<8x4xf32>
    %127 = math.rsqrt %126 : vector<8x4xf32>
    %cst_47 = arith.constant dense<0.000000e+00> : vector<32x4xf32>
    %128 = tpu.matmul %8, %127, %cst_47 {dimension_numbers = #tpu.dot_dimension_numbers<[1], [0], [0], [1], [0, 0, 1, 1], [], []>} : vector<32x8xf32>, vector<8x4xf32>, vector<32x4xf32> -> vector<32x4xf32>
    %129 = vector.broadcast %14 : vector<32x1xf32> to vector<32x4xf32>
    %130 = arith.mulf %128, %129 : vector<32x4xf32>
    %131 = arith.mulf %118, %127 : vector<8x4xf32>
    %cst_48 = arith.constant dense<0.000000e+00> : vector<32x4xf32>
    %132 = tpu.matmul %8, %131, %cst_48 {dimension_numbers = #tpu.dot_dimension_numbers<[1], [0], [0], [1], [0, 0, 1, 1], [], []>} : vector<32x8xf32>, vector<8x4xf32>, vector<32x4xf32> -> vector<32x4xf32>
    %133 = vector.broadcast %14 : vector<32x1xf32> to vector<32x4xf32>
    %134 = arith.mulf %132, %133 : vector<32x4xf32>
    %135 = vector.broadcast %15 : vector<32x1xf32> to vector<32x4xf32>
    %136 = arith.subf %135, %134 : vector<32x4xf32>
    %137 = tpu.concatenate %130, %136 in 0 : vector<32x4xf32>, vector<32x4xf32> -> vector<64x4xf32>
    %cst_49 = arith.constant dense<0.000000e+00> : vector<64x256xf32>
    %138 = tpu.matmul %137, %5, %cst_49 {dimension_numbers = #tpu.dot_dimension_numbers<[1], [0], [0], [1], [0, 0, 1, 1], [], []>} : vector<64x4xf32>, vector<4x256xf32>, vector<64x256xf32> -> vector<64x256xf32>
    %139 = vector.extract_strided_slice %138 {offsets = [0, 0], sizes = [32, 256], strides = [1, 1]} : vector<64x256xf32> to vector<32x256xf32>
    %140 = arith.mulf %111, %139 : vector<32x256xf32>
    %141 = vector.extract_strided_slice %138 {offsets = [32, 0], sizes = [32, 256], strides = [1, 1]} : vector<64x256xf32> to vector<32x256xf32>
    %142 = arith.addf %140, %141 : vector<32x256xf32>
    %cst_50 = arith.constant 3.000000e+01 : f32
    %143 = vector.broadcast %cst_50 : f32 to vector<32x256xf32>
    %144 = arith.minimumf %142, %143 : vector<32x256xf32>
    %145 = math.exp %144 : vector<32x256xf32>
    %cst_51 = arith.constant 1.000000e+00 : f32
    %146 = vector.broadcast %cst_51 : f32 to vector<32x256xf32>
    %147 = arith.addf %146, %145 : vector<32x256xf32>
    %148 = arith.addf %142, %142 : vector<32x256xf32>
    %149 = arith.mulf %147, %147 : vector<32x256xf32>
    %cst_52 = arith.constant 1.000000e+00 : f32
    %150 = vector.broadcast %cst_52 : f32 to vector<32x256xf32>
    %151 = arith.addf %149, %150 : vector<32x256xf32>
    %152 = tpu.reciprocal %151 : vector<32x256xf32> -> vector<32x256xf32>
    %153 = arith.mulf %148, %152 : vector<32x256xf32>
    %154 = arith.subf %142, %153 : vector<32x256xf32>
    %155 = vector.broadcast %2 : vector<1x256xf32> to vector<32x256xf32>
    %156 = arith.mulf %154, %155 : vector<32x256xf32>
    %157 = arith.addf %156, %31 : vector<32x256xf32>
    %c0_53 = arith.constant 0 : index
    %c0_54 = arith.constant 0 : index
    %158 = vector.load %arg12[%c0_53, %c0_54] : memref<32x256xf32, #tpu.memory_space<vmem>>, vector<32x256xf32>
    tpu.vector_store %arg12[%c0_53, %c0_54], %157 {strides = array<i32>} : memref<32x256xf32, #tpu.memory_space<vmem>>, vector<32x256xf32>,
    return
  }
  func.func @transform_0(%arg0: i32) -> (i32, i32) {
    %c0_i32 = arith.constant 0 : i32
    %c0_i32_0 = arith.constant 0 : i32
    return %c0_i32, %arg0 : i32, i32
  }
  func.func @transform_1(%arg0: i32) -> (i32, i32) {
    %c0_i32 = arith.constant 0 : i32
    %c0_i32_0 = arith.constant 0 : i32
    return %c0_i32, %arg0 : i32, i32
  }
  func.func @transform_2(%arg0: i32) -> (i32, i32) {
    %c0_i32 = arith.constant 0 : i32
    %c0_i32_0 = arith.constant 0 : i32
    %c0_i32_1 = arith.constant 0 : i32
    return %c0_i32, %c0_i32_0 : i32, i32
  }
  func.func @transform_3(%arg0: i32) -> (i32, i32) {
    %c0_i32 = arith.constant 0 : i32
    %c0_i32_0 = arith.constant 0 : i32
    return %c0_i32, %arg0 : i32, i32
  }
  func.func @transform_4(%arg0: i32) -> (i32, i32) {
    %c0_i32 = arith.constant 0 : i32
    %c0_i32_0 = arith.constant 0 : i32
    return %arg0, %c0_i32 : i32, i32
  }
  func.func @transform_5(%arg0: i32) -> (i32, i32) {
    %c0_i32 = arith.constant 0 : i32
    %c0_i32_0 = arith.constant 0 : i32
    %c0_i32_1 = arith.constant 0 : i32
    return %c0_i32, %c0_i32_0 : i32, i32
  }
  func.func @transform_6(%arg0: i32) -> (i32, i32) {
    %c0_i32 = arith.constant 0 : i32
    %c0_i32_0 = arith.constant 0 : i32
    %c0_i32_1 = arith.constant 0 : i32
    return %c0_i32, %c0_i32_0 : i32, i32
  }
  func.func @transform_7(%arg0: i32) -> (i32, i32) {
    %c0_i32 = arith.constant 0 : i32
    %c0_i32_0 = arith.constant 0 : i32
    %c0_i32_1 = arith.constant 0 : i32
    return %c0_i32, %c0_i32_0 : i32, i32
  }
  func.func @transform_8(%arg0: i32) -> (i32, i32) {
    %c0_i32 = arith.constant 0 : i32
    %c0_i32_0 = arith.constant 0 : i32
    %c0_i32_1 = arith.constant 0 : i32
    return %c0_i32, %c0_i32_0 : i32, i32
  }
  func.func @transform_9(%arg0: i32) -> (i32, i32) {
    %c0_i32 = arith.constant 0 : i32
    %c0_i32_0 = arith.constant 0 : i32
    %c0_i32_1 = arith.constant 0 : i32
    return %c0_i32, %c0_i32_0 : i32, i32
  }
  func.func @transform_10(%arg0: i32) -> (i32, i32) {
    %c0_i32 = arith.constant 0 : i32
    %c0_i32_0 = arith.constant 0 : i32
    %c0_i32_1 = arith.constant 0 : i32
    return %c0_i32, %c0_i32_0 : i32, i32
  }
  func.func @transform_11(%arg0: i32) -> (i32, i32) {
    %c0_i32 = arith.constant 0 : i32
    %c0_i32_0 = arith.constant 0 : i32
    return %c0_i32, %arg0 : i32, i32
  }
}

</mosaic_0001>

<llo_original>
// kernel: tpu_custom_call.1
$region0: #{tpu_custom_call.1}
  #allocation0 [shape = 'u32[]', space=smem, size = 0x4, offset = 0x4, fixed_abs, tag = 'smem constant byte address 0x4 - core index']
  #allocation1 [shape = 'u32[144,128]{1,0:T(1,128)}', space=vmem, size = 0x12000, scoped, tag = 'internal scratch']
  %s0 = inlined_call_operand.vmem [shape: f32[32,512], index: 0, kind: input, shape index: {}]
  %s1 = inlined_call_operand.vmem [shape: f32[3,512], index: 1, kind: input, shape index: {}]
  %s2 = inlined_call_operand.vmem [shape: f32[64,4], index: 2, kind: input, shape index: {}]
  %s3 = inlined_call_operand.vmem [shape: f32[4,512], index: 3, kind: input, shape index: {}]
  %s4 = inlined_call_operand.vmem [shape: f32[512,4], index: 4, kind: input, shape index: {}]
  %s5 = inlined_call_operand.vmem [shape: f32[64,96], index: 5, kind: input, shape index: {}]
  %s6 = inlined_call_operand.vmem [shape: f32[32,96], index: 6, kind: input, shape index: {}]
  %s7 = inlined_call_operand.vmem [shape: f32[32,64], index: 7, kind: input, shape index: {}]
  %s8 = inlined_call_operand.vmem [shape: f32[32,8], index: 8, kind: input, shape index: {}]
  %s9 = inlined_call_operand.vmem [shape: f32[8,32], index: 9, kind: input, shape index: {}]
  %s10 = inlined_call_operand.vmem [shape: f32[32,8], index: 10, kind: input, shape index: {}]
  %s11 = inlined_call_operand.hbm [shape: f32[32,512], index: 11, kind: output, shape index: {}]
  %s12 = sld [smem:[#allocation0]]
  $region100: #{tpu_custom_call.1} parent=0
    _
  %s14 = ssub.s32 1, %s12
  %s15 = scalar_select 0, %s14, %s12
  $region1: #{tpu_custom_call.1} parent=0
    #allocation2 [shape = 'u8[65536]{0}', space=vmem, size = 0x10000, scoped, tag = 'input window, operand 0']
    #allocation3 [shape = 'u8[65536]{0}', space=vmem, size = 0x10000, scoped, tag = 'output window, operand 0']
    #allocation4 [shape = 's32[2]{0}', space=sflag, size = 0x8, scoped, tag = 'scoped memory for tpu_custom_call.1']
    %16 = vsyncpa [#allocation4], 0
    %s17 = scalar_lea.sflag [#allocation4], 1
    %18 = vsyncpa %s17, 0
    loop: start=0, step=1, limit=4
    $region2: #{tpu_custom_call.1} parent=1 // loop_pre_header
      _
    $region3: #{tpu_custom_call.1} parent=1 // loop_header
      %s20 = sphi 0, %s24
      %p21 = scmp.ge.s32.totalorder %s20, 4
      %s30 = sphi 0, %s32
      %s33 = sphi 0, %s30
      %s34 = sphi 0, %s33
      %s50 = sphi 0, %s34
      %s56 = sphi 0, %s58
      %s59 = sphi 0, %s56
      %s60 = sphi 0, %s59
      %s76 = sphi 0, %s60
      %s80 = sphi 0, %s80
      %s82 = sphi 0, %s80
      %s83 = sphi 0, %s82
      %s97 = sphi 0, %s83
      %s103 = sphi 0, %s105
      %s106 = sphi 0, %s103
      %s107 = sphi 0, %s106
      %s123 = sphi 0, %s107
      %s129 = sphi 0, %s131
      %s132 = sphi 0, %s129
      %s133 = sphi 0, %s132
      %s149 = sphi 0, %s133
      %s153 = sphi 0, %s153
      %s155 = sphi 0, %s153
      %s156 = sphi 0, %s155
      %s170 = sphi 0, %s156
      %s174 = sphi 0, %s174
      %s176 = sphi 0, %s174
      %s177 = sphi 0, %s176
      %s191 = sphi 0, %s177
      %s195 = sphi 0, %s195
      %s197 = sphi 0, %s195
      %s198 = sphi 0, %s197
      %s212 = sphi 0, %s198
      %s216 = sphi 0, %s216
      %s218 = sphi 0, %s216
      %s219 = sphi 0, %s218
      %s233 = sphi 0, %s219
      %s237 = sphi 0, %s237
      %s239 = sphi 0, %s237
      %s240 = sphi 0, %s239
      %s254 = sphi 0, %s240
      %s258 = sphi 0, %s258
      %s260 = sphi 0, %s258
      %s261 = sphi 0, %s260
      %s275 = sphi 0, %s261
      %s281 = sphi 0, %s283
      %s284 = sphi 0, %s281
      %s285 = sphi 0, %s284
      %s301 = sphi 0, %s285
    $region4: #{tpu_custom_call.1} parent=1 // loop_header_branch
      %23 = sbr.rel (%p21) target = $region8
    $region5: #{tpu_custom_call.1} parent=1 // loop_body
      %s25 = ssub.s32 %s20, 1
      %s26 = ssub.s32 %s20, 2
      %s27 = sadd.s32 %s20, 1
      %s28 = ssub.s32 %s20, %s27
      %p29 = scmp.eq.s32.totalorder %s28, 0
      %s31 = sadd.s32 %s30, 1
      %s32 = scalar_select %p29, %s30, %s31
      %p35 = pneg %p29
      %p36 = scmp.eq.s32.totalorder %s20, 1
      %p37 = por %p35, %p36
      %p38 = scmp.ne.s32.totalorder %s30, %s33
      %p39 = scmp.eq.s32.totalorder %s20, 0
      %p40 = por %p38, %p39
      %p41 = scmp.ne.s32.totalorder %s30, %s33
      %p42 = scmp.eq.s32.totalorder %s25, 1
      %p43 = por %p41, %p42
      %p44 = scmp.ne.s32.totalorder %s33, %s34
      %p45 = scmp.eq.s32.totalorder %s25, 0
      %p46 = por %p44, %p45
      %p47 = scmp.ne.s32.totalorder %s33, %s34
      %p48 = scmp.eq.s32.totalorder %s26, 1
      %p49 = por %p47, %p48
      %p51 = scmp.ne.s32.totalorder %s34, %s50
      %p52 = scmp.eq.s32.totalorder %s26, 0
      %p53 = por %p51, %p52
      %s54 = ssub.s32 %s20, %s27
      %p55 = scmp.eq.s32.totalorder %s54, 0
      %s57 = sadd.s32 %s56, 1
      %s58 = scalar_select %p55, %s56, %s57
      %p61 = pneg %p55
      %p62 = scmp.eq.s32.totalorder %s20, 1
      %p63 = por %p61, %p62
      %p64 = scmp.ne.s32.totalorder %s56, %s59
      %p65 = scmp.eq.s32.totalorder %s20, 0
      %p66 = por %p64, %p65
      %p67 = scmp.ne.s32.totalorder %s56, %s59
      %p68 = scmp.eq.s32.totalorder %s25, 1
      %p69 = por %p67, %p68
      %p70 = scmp.ne.s32.totalorder %s59, %s60
      %p71 = scmp.eq.s32.totalorder %s25, 0
      %p72 = por %p70, %p71
      %p73 = scmp.ne.s32.totalorder %s59, %s60
      %p74 = scmp.eq.s32.totalorder %s26, 1
      %p75 = por %p73, %p74
      %p77 = scmp.ne.s32.totalorder %s60, %s76
      %p78 = scmp.eq.s32.totalorder %s26, 0
      %p79 = por %p77, %p78
      %s81 = sadd.s32 %s80, 1
      %p84 = scmp.eq.s32.totalorder %s20, 1
      %p85 = scmp.ne.s32.totalorder %s80, %s82
      %p86 = scmp.eq.s32.totalorder %s20, 0
      %p87 = por %p85, %p86
      %p88 = scmp.ne.s32.totalorder %s80, %s82
      %p89 = scmp.eq.s32.totalorder %s25, 1
      %p90 = por %p88, %p89
      %p91 = scmp.ne.s32.totalorder %s82, %s83
      %p92 = scmp.eq.s32.totalorder %s25, 0
      %p93 = por %p91, %p92
      %p94 = scmp.ne.s32.totalorder %s82, %s83
      %p95 = scmp.eq.s32.totalorder %s26, 1
      %p96 = por %p94, %p95
      %p98 = scmp.ne.s32.totalorder %s83, %s97
      %p99 = scmp.eq.s32.totalorder %s26, 0
      %p100 = por %p98, %p99
      %s101 = ssub.s32 %s20, %s27
      %p102 = scmp.eq.s32.totalorder %s101, 0
      %s104 = sadd.s32 %s103, 1
      %s105 = scalar_select %p102, %s103, %s104
      %p108 = pneg %p102
      %p109 = scmp.eq.s32.totalorder %s20, 1
      %p110 = por %p108, %p109
      %p111 = scmp.ne.s32.totalorder %s103, %s106
      %p112 = scmp.eq.s32.totalorder %s20, 0
      %p113 = por %p111, %p112
      %p114 = scmp.ne.s32.totalorder %s103, %s106
      %p115 = scmp.eq.s32.totalorder %s25, 1
      %p116 = por %p114, %p115
      %p117 = scmp.ne.s32.totalorder %s106, %s107
      %p118 = scmp.eq.s32.totalorder %s25, 0
      %p119 = por %p117, %p118
      %p120 = scmp.ne.s32.totalorder %s106, %s107
      %p121 = scmp.eq.s32.totalorder %s26, 1
      %p122 = por %p120, %p121
      %p124 = scmp.ne.s32.totalorder %s107, %s123
      %p125 = scmp.eq.s32.totalorder %s26, 0
      %p126 = por %p124, %p125
      %s127 = ssub.s32 %s20, %s27
      %p128 = scmp.eq.s32.totalorder %s127, 0
      %s130 = sadd.s32 %s129, 1
      %s131 = scalar_select %p128, %s129, %s130
      %p134 = pneg %p128
      %p135 = scmp.eq.s32.totalorder %s20, 1
      %p136 = por %p134, %p135
      %p137 = scmp.ne.s32.totalorder %s129, %s132
      %p138 = scmp.eq.s32.totalorder %s20, 0
      %p139 = por %p137, %p138
      %p140 = scmp.ne.s32.totalorder %s129, %s132
      %p141 = scmp.eq.s32.totalorder %s25, 1
      %p142 = por %p140, %p141
      %p143 = scmp.ne.s32.totalorder %s132, %s133
      %p144 = scmp.eq.s32.totalorder %s25, 0
      %p145 = por %p143, %p144
      %p146 = scmp.ne.s32.totalorder %s132, %s133
      %p147 = scmp.eq.s32.totalorder %s26, 1
      %p148 = por %p146, %p147
      %p150 = scmp.ne.s32.totalorder %s133, %s149
      %p151 = scmp.eq.s32.totalorder %s26, 0
      %p152 = por %p150, %p151
      %s154 = sadd.s32 %s153, 1
      %p157 = scmp.eq.s32.totalorder %s20, 1
      %p158 = scmp.ne.s32.totalorder %s153, %s155
      %p159 = scmp.eq.s32.totalorder %s20, 0
      %p160 = por %p158, %p159
      %p161 = scmp.ne.s32.totalorder %s153, %s155
      %p162 = scmp.eq.s32.totalorder %s25, 1
      %p163 = por %p161, %p162
      %p164 = scmp.ne.s32.totalorder %s155, %s156
      %p165 = scmp.eq.s32.totalorder %s25, 0
      %p166 = por %p164, %p165
      %p167 = scmp.ne.s32.totalorder %s155, %s156
      %p168 = scmp.eq.s32.totalorder %s26, 1
      %p169 = por %p167, %p168
      %p171 = scmp.ne.s32.totalorder %s156, %s170
      %p172 = scmp.eq.s32.totalorder %s26, 0
      %p173 = por %p171, %p172
      %s175 = sadd.s32 %s174, 1
      %p178 = scmp.eq.s32.totalorder %s20, 1
      %p179 = scmp.ne.s32.totalorder %s174, %s176
      %p180 = scmp.eq.s32.totalorder %s20, 0
      %p181 = por %p179, %p180
      %p182 = scmp.ne.s32.totalorder %s174, %s176
      %p183 = scmp.eq.s32.totalorder %s25, 1
      %p184 = por %p182, %p183
      %p185 = scmp.ne.s32.totalorder %s176, %s177
      %p186 = scmp.eq.s32.totalorder %s25, 0
      %p187 = por %p185, %p186
      %p188 = scmp.ne.s32.totalorder %s176, %s177
      %p189 = scmp.eq.s32.totalorder %s26, 1
      %p190 = por %p188, %p189
      %p192 = scmp.ne.s32.totalorder %s177, %s191
      %p193 = scmp.eq.s32.totalorder %s26, 0
      %p194 = por %p192, %p193
      %s196 = sadd.s32 %s195, 1
      %p199 = scmp.eq.s32.totalorder %s20, 1
      %p200 = scmp.ne.s32.totalorder %s195, %s197
      %p201 = scmp.eq.s32.totalorder %s20, 0
      %p202 = por %p200, %p201
      %p203 = scmp.ne.s32.totalorder %s195, %s197
      %p204 = scmp.eq.s32.totalorder %s25, 1
      %p205 = por %p203, %p204
      %p206 = scmp.ne.s32.totalorder %s197, %s198
      %p207 = scmp.eq.s32.totalorder %s25, 0
      %p208 = por %p206, %p207
      %p209 = scmp.ne.s32.totalorder %s197, %s198
      %p210 = scmp.eq.s32.totalorder %s26, 1
      %p211 = por %p209, %p210
      %p213 = scmp.ne.s32.totalorder %s198, %s212
      %p214 = scmp.eq.s32.totalorder %s26, 0
      %p215 = por %p213, %p214
      %s217 = sadd.s32 %s216, 1
      %p220 = scmp.eq.s32.totalorder %s20, 1
      %p221 = scmp.ne.s32.totalorder %s216, %s218
      %p222 = scmp.eq.s32.totalorder %s20, 0
      %p223 = por %p221, %p222
      %p224 = scmp.ne.s32.totalorder %s216, %s218
      %p225 = scmp.eq.s32.totalorder %s25, 1
      %p226 = por %p224, %p225
      %p227 = scmp.ne.s32.totalorder %s218, %s219
      %p228 = scmp.eq.s32.totalorder %s25, 0
      %p229 = por %p227, %p228
      %p230 = scmp.ne.s32.totalorder %s218, %s219
      %p231 = scmp.eq.s32.totalorder %s26, 1
      %p232 = por %p230, %p231
      %p234 = scmp.ne.s32.totalorder %s219, %s233
      %p235 = scmp.eq.s32.totalorder %s26, 0
      %p236 = por %p234, %p235
      %s238 = sadd.s32 %s237, 1
      %p241 = scmp.eq.s32.totalorder %s20, 1
      %p242 = scmp.ne.s32.totalorder %s237, %s239
      %p243 = scmp.eq.s32.totalorder %s20, 0
      %p244 = por %p242, %p243
      %p245 = scmp.ne.s32.totalorder %s237, %s239
      %p246 = scmp.eq.s32.totalorder %s25, 1
      %p247 = por %p245, %p246
      %p248 = scmp.ne.s32.totalorder %s239, %s240
      %p249 = scmp.eq.s32.totalorder %s25, 0
      %p250 = por %p248, %p249
      %p251 = scmp.ne.s32.totalorder %s239, %s240
      %p252 = scmp.eq.s32.totalorder %s26, 1
      %p253 = por %p251, %p252
      %p255 = scmp.ne.s32.totalorder %s240, %s254
      %p256 = scmp.eq.s32.totalorder %s26, 0
      %p257 = por %p255, %p256
      %s259 = sadd.s32 %s258, 1
      %p262 = scmp.eq.s32.totalorder %s20, 1
      %p263 = scmp.ne.s32.totalorder %s258, %s260
      %p264 = scmp.eq.s32.totalorder %s20, 0
      %p265 = por %p263, %p264
      %p266 = scmp.ne.s32.totalorder %s258, %s260
      %p267 = scmp.eq.s32.totalorder %s25, 1
      %p268 = por %p266, %p267
      %p269 = scmp.ne.s32.totalorder %s260, %s261
      %p270 = scmp.eq.s32.totalorder %s25, 0
      %p271 = por %p269, %p270
      %p272 = scmp.ne.s32.totalorder %s260, %s261
      %p273 = scmp.eq.s32.totalorder %s26, 1
      %p274 = por %p272, %p273
      %p276 = scmp.ne.s32.totalorder %s261, %s275
      %p277 = scmp.eq.s32.totalorder %s26, 0
      %p278 = por %p276, %p277
      %s279 = ssub.s32 %s20, %s27
      %p280 = scmp.eq.s32.totalorder %s279, 0
      %s282 = sadd.s32 %s281, 1
      %s283 = scalar_select %p280, %s281, %s282
      %p286 = pneg %p280
      %p287 = scmp.eq.s32.totalorder %s20, 1
      %p288 = por %p286, %p287
      %p289 = scmp.ne.s32.totalorder %s281, %s284
      %p290 = scmp.eq.s32.totalorder %s20, 0
      %p291 = por %p289, %p290
      %p292 = scmp.ne.s32.totalorder %s281, %s284
      %p293 = scmp.eq.s32.totalorder %s25, 1
      %p294 = por %p292, %p293
      %p295 = scmp.ne.s32.totalorder %s284, %s285
      %p296 = scmp.eq.s32.totalorder %s25, 0
      %p297 = por %p295, %p296
      %p298 = scmp.ne.s32.totalorder %s284, %s285
      %p299 = scmp.eq.s32.totalorder %s26, 1
      %p300 = por %p298, %p299
      %p302 = scmp.ne.s32.totalorder %s285, %s301
      %p303 = scmp.eq.s32.totalorder %s26, 0
      %p304 = por %p302, %p303
      %p305 = scmp.le.s32.totalorder 1, %s20
      %p306 = scmp.lt.s32.totalorder %s20, 3
      %p307 = pnand %p305, %p306
      %p308 = pneg %p307
      // Predicated region
      $region9: #{tpu_custom_call.1} parent=5 // pred_check
        _
      $region10: #{tpu_custom_call.1} parent=5 // pred_check_branch
        %310 = sbr.rel (%p307) target = $region12
      $region11: #{tpu_custom_call.1} parent=5 // pred_region
        %s311 = ssub.s32 %s20, 1
        // Predicated region
        $region13: #{tpu_custom_call.1} parent=11 // pred_check
          %p312 = pneg %p93
        $region14: #{tpu_custom_call.1} parent=11 // pred_check_branch
          %314 = sbr.rel (%p312) target = $region16
        $region15: #{tpu_custom_call.1} parent=11 // pred_region
          _
        $region16: #{tpu_custom_call.1} parent=11 // pred_fallthru
          _
        // Predicated region
        $region17: #{tpu_custom_call.1} parent=11 // pred_check
          %p315 = pneg %p166
        $region18: #{tpu_custom_call.1} parent=11 // pred_check_branch
          %317 = sbr.rel (%p315) target = $region20
        $region19: #{tpu_custom_call.1} parent=11 // pred_region
          _
        $region20: #{tpu_custom_call.1} parent=11 // pred_fallthru
          _
        // Predicated region
        $region21: #{tpu_custom_call.1} parent=11 // pred_check
          %p318 = pneg %p187
        $region22: #{tpu_custom_call.1} parent=11 // pred_check_branch
          %320 = sbr.rel (%p318) target = $region24
        $region23: #{tpu_custom_call.1} parent=11 // pred_region
          _
        $region24: #{tpu_custom_call.1} parent=11 // pred_fallthru
          _
        // Predicated region
        $region25: #{tpu_custom_call.1} parent=11 // pred_check
          %p321 = pneg %p208
        $region26: #{tpu_custom_call.1} parent=11 // pred_check_branch
          %323 = sbr.rel (%p321) target = $region28
        $region27: #{tpu_custom_call.1} parent=11 // pred_region
          _
        $region28: #{tpu_custom_call.1} parent=11 // pred_fallthru
          _
        // Predicated region
        $region29: #{tpu_custom_call.1} parent=11 // pred_check
          %p324 = pneg %p229
        $region30: #{tpu_custom_call.1} parent=11 // pred_check_branch
          %326 = sbr.rel (%p324) target = $region32
        $region31: #{tpu_custom_call.1} parent=11 // pred_region
          _
        $region32: #{tpu_custom_call.1} parent=11 // pred_fallthru
          _
        // Predicated region
        $region33: #{tpu_custom_call.1} parent=11 // pred_check
          %p327 = pneg %p250
        $region34: #{tpu_custom_call.1} parent=11 // pred_check_branch
          %329 = sbr.rel (%p327) target = $region36
        $region35: #{tpu_custom_call.1} parent=11 // pred_region
          _
        $region36: #{tpu_custom_call.1} parent=11 // pred_fallthru
          _
        // Predicated region
        $region37: #{tpu_custom_call.1} parent=11 // pred_check
          %p330 = pneg %p271
        $region38: #{tpu_custom_call.1} parent=11 // pred_check_branch
          %332 = sbr.rel (%p330) target = $region40
        $region39: #{tpu_custom_call.1} parent=11 // pred_region
          _
        $region40: #{tpu_custom_call.1} parent=11 // pred_fallthru
          _
      $region12: #{tpu_custom_call.1} parent=5 // pred_fallthru
        _
      %p333 = scmp.lt.s32.totalorder %s20, 2
      // Predicated region
      $region41: #{tpu_custom_call.1} parent=5 // pred_check
        %p334 = pneg %p333
      $region42: #{tpu_custom_call.1} parent=5 // pred_check_branch
        %336 = sbr.rel (%p334) target = $region44
      $region43: #{tpu_custom_call.1} parent=5 // pred_region
        // Predicated region
        $region45: #{tpu_custom_call.1} parent=43 // pred_check
          %p337 = pneg %p40
        $region46: #{tpu_custom_call.1} parent=43 // pred_check_branch
          %339 = sbr.rel (%p337) target = $region48
        $region47: #{tpu_custom_call.1} parent=43 // pred_region
          %s340 = sand.u32 %s30, 1
          %s341 = sand.u32 %s30, 1
          %s342 = smul.addr %s341, 64
          %s343 = scalar_lea.vmem [#allocation2], %s342
          %s344 = smul.u32 2, %s20
          %s345 = smul.addr %s344, 8
          %s346 = scalar_lea.vmem %s0, %s345
          // Predicated region
          $region49: #{tpu_custom_call.1} parent=47 // pred_check
            _
          $region50: #{tpu_custom_call.1} parent=47 // pred_check_branch
            %348 = sbr.rel (0) target = $region52
          $region51: #{tpu_custom_call.1} parent=47 // pred_region
            // Predicated region
            $region53: #{tpu_custom_call.1} parent=51 // pred_check
              _
            $region54: #{tpu_custom_call.1} parent=51 // pred_check_branch
              %350 = sbr.rel (0) target = $region56
            $region55: #{tpu_custom_call.1} parent=51 // pred_region
              loop: start=0, step=1, limit=1
              $region57: #{tpu_custom_call.1} parent=55 // loop_pre_header
                _
              $region58: #{tpu_custom_call.1} parent=55 // loop_header
                %s352 = sphi 0, %s356
                %p353 = scmp.ge.s32.totalorder %s352, 1
                %s357 = sphi %s346, %s346
                %s358 = sphi %s343, %s343
              $region59: #{tpu_custom_call.1} parent=55 // loop_header_branch
                %355 = sbr.rel (%p353) target = $region63
              $region60: #{tpu_custom_call.1} parent=55 // loop_body
                %v359 = vld [vmem:[%s357] sm:$0xff]
                %360 = vst [vmem:[%s358] sm:$0xff] %v359
                %v361 = vld [vmem:[%s357 + $0x8] sm:$0xff]
                %362 = vst [vmem:[%s358 + $0x8] sm:$0xff] %v361
                %v363 = vld [vmem:[%s357 + $0x20] sm:$0xff]
                %364 = vst [vmem:[%s358 + $0x10] sm:$0xff] %v363
                %v365 = vld [vmem:[%s357 + $0x28] sm:$0xff]
                %366 = vst [vmem:[%s358 + $0x18] sm:$0xff] %v365
                %v367 = vld [vmem:[%s357 + $0x40] sm:$0xff]
                %368 = vst [vmem:[%s358 + $0x20] sm:$0xff] %v367
                %v369 = vld [vmem:[%s357 + $0x48] sm:$0xff]
                %370 = vst [vmem:[%s358 + $0x28] sm:$0xff] %v369
                %v371 = vld [vmem:[%s357 + $0x60] sm:$0xff]
                %372 = vst [vmem:[%s358 + $0x30] sm:$0xff] %v371
                %v373 = vld [vmem:[%s357 + $0x68] sm:$0xff]
                %374 = vst [vmem:[%s358 + $0x38] sm:$0xff] %v373
              $region61: #{tpu_custom_call.1} parent=55 // loop_footer
                %s356 = sadd.s32 1, %s352
              $region62: #{tpu_custom_call.1} parent=55 // loop_footer_branch
                %351 = sbr.rel target = $region58
              $region63: #{tpu_custom_call.1} parent=55 // loop_exit
                _
            $region56: #{tpu_custom_call.1} parent=51 // pred_fallthru
              _
            // Predicated region
            $region64: #{tpu_custom_call.1} parent=51 // pred_check
              _
            $region65: #{tpu_custom_call.1} parent=51 // pred_check_branch
              %376 = sbr.rel target = $region67
            $region66: #{tpu_custom_call.1} parent=51 // pred_region
              _
            $region67: #{tpu_custom_call.1} parent=51 // pred_fallthru
              _
          $region52: #{tpu_custom_call.1} parent=47 // pred_fallthru
            _
          %377 = vnop
        $region48: #{tpu_custom_call.1} parent=43 // pred_fallthru
          _
        // Predicated region
        $region68: #{tpu_custom_call.1} parent=43 // pred_check
          %p378 = pneg %p66
        $region69: #{tpu_custom_call.1} parent=43 // pred_check_branch
          %380 = sbr.rel (%p378) target = $region71
        $region70: #{tpu_custom_call.1} parent=43 // pred_region
          %s381 = smul.u32 2, %s20
          %p382 = scmp.lt.s32.totalorder %s381, 3
          %s383 = scalar_select %p382, %s381, 3
          %s384 = smul.addr %s383, 4
          %s385 = scalar_lea.vmem %s1, %s384
          %s386 = smul.u32 2, %s20
        $region71: #{tpu_custom_call.1} parent=43 // pred_fallthru
          _
        // Predicated region
        $region72: #{tpu_custom_call.1} parent=43 // pred_check
          %p387 = pneg %p113
        $region73: #{tpu_custom_call.1} parent=43 // pred_check_branch
          %389 = sbr.rel (%p387) target = $region75
        $region74: #{tpu_custom_call.1} parent=43 // pred_region
          %s390 = smul.u32 2, %s20
          %p391 = scmp.lt.s32.totalorder %s390, 3
          %s392 = scalar_select %p391, %s390, 3
          %s393 = smul.addr %s392, 4
          %s394 = scalar_lea.vmem %s3, %s393
          %s395 = smul.u32 2, %s20
        $region75: #{tpu_custom_call.1} parent=43 // pred_fallthru
          _
        // Predicated region
        $region76: #{tpu_custom_call.1} parent=43 // pred_check
          %p396 = pneg %p139
        $region77: #{tpu_custom_call.1} parent=43 // pred_check_branch
          %398 = sbr.rel (%p396) target = $region79
        $region78: #{tpu_custom_call.1} parent=43 // pred_region
          %s399 = smul.u32 32, %s20
          %p400 = scmp.lt.s32.totalorder %s399, 63
          %s401 = scalar_select %p400, %s399, 63
          %s402 = smul.addr %s401, 8
          %s403 = scalar_lea.vmem %s4, %s402
          %s404 = smul.u32 32, %s20
        $region79: #{tpu_custom_call.1} parent=43 // pred_fallthru
          _
      $region44: #{tpu_custom_call.1} parent=5 // pred_fallthru
        _
      %p405 = scmp.le.s32.totalorder 1, %s20
      %p406 = scmp.lt.s32.totalorder %s20, 3
      %p407 = pnand %p405, %p406
      %p408 = pneg %p407
      // Predicated region
      $region80: #{tpu_custom_call.1} parent=5 // pred_check
        _
      $region81: #{tpu_custom_call.1} parent=5 // pred_check_branch
        %410 = sbr.rel (%p407) target = $region83
      $region82: #{tpu_custom_call.1} parent=5 // pred_region
        %s411 = ssub.s32 %s20, 1
        %s412 = sand.u32 %s33, 1
        %s413 = sand.u32 %s33, 1
        %s414 = smul.addr %s413, 64
        %s415 = scalar_lea.vmem [#allocation2], %s414
        // Predicated region
        $region84: #{tpu_custom_call.1} parent=82 // pred_check
          %p416 = pneg %p46
        $region85: #{tpu_custom_call.1} parent=82 // pred_check_branch
          %418 = sbr.rel (%p416) target = $region87
        $region86: #{tpu_custom_call.1} parent=82 // pred_region
          _
        $region87: #{tpu_custom_call.1} parent=82 // pred_fallthru
          _
        %s419 = sand.u32 %s33, 1
        %s420 = sand.u32 %s33, 1
        %s421 = smul.addr %s420, 64
        %s422 = scalar_lea.vmem [#allocation2], %s421
        %p423 = pneg %p46
        %p424 = pneg %p43
        %s425 = smul.u32 2, %s25
        %p426 = scmp.lt.s32.totalorder %s425, 3
        %s427 = scalar_select %p426, %s425, 3
        %s428 = smul.addr %s427, 4
        %s429 = scalar_lea.vmem %s1, %s428
        %p430 = pneg %p72
        %p431 = pneg %p69
        %p432 = pneg %p93
        %p433 = pneg %p90
        %s434 = smul.u32 2, %s25
        %p435 = scmp.lt.s32.totalorder %s434, 3
        %s436 = scalar_select %p435, %s434, 3
        %s437 = smul.addr %s436, 4
        %s438 = scalar_lea.vmem %s3, %s437
        %p439 = pneg %p119
        %p440 = pneg %p116
        %s441 = smul.u32 32, %s25
        %p442 = scmp.lt.s32.totalorder %s441, 63
        %s443 = scalar_select %p442, %s441, 63
        %s444 = smul.addr %s443, 8
        %s445 = scalar_lea.vmem %s4, %s444
        %p446 = pneg %p145
        %p447 = pneg %p142
        %p448 = pneg %p166
        %p449 = pneg %p163
        %p450 = pneg %p187
        %p451 = pneg %p184
        %p452 = pneg %p208
        %p453 = pneg %p205
        %p454 = pneg %p229
        %p455 = pneg %p226
        %p456 = pneg %p250
        %p457 = pneg %p247
        %p458 = pneg %p271
        %p459 = pneg %p268
        %p460 = pneg %p297
        %p461 = pneg %p294
        %s462 = sand.u32 %s284, 1
        %s463 = scalar_lea.sflag [#allocation4], %s462
        %s464 = sand.u32 %s284, 1
        %s465 = smul.addr %s464, 64
        %s466 = scalar_lea.vmem [#allocation3], %s465
        %s467 = smul.u32 2, %s25
        %s468 = smul.u32 2, %s25
        %p469 = scmp.lt.s32.totalorder %s468, 3
        %s470 = scalar_select %p469, %s468, 3
        %s471 = smul.addr %s470, 4
        %s472 = scalar_lea.vmem %s1, %s471
        %s473 = smul.u32 2, %s25
        %s474 = smul.u32 2, %s25
        %p475 = scmp.lt.s32.totalorder %s474, 3
        %s476 = scalar_select %p475, %s474, 3
        %s477 = smul.addr %s476, 4
        %s478 = scalar_lea.vmem %s3, %s477
        %s479 = smul.u32 2, %s25
        %s480 = smul.u32 32, %s25
        %p481 = scmp.lt.s32.totalorder %s480, 63
        %s482 = scalar_select %p481, %s480, 63
        %s483 = smul.addr %s482, 8
        %s484 = scalar_lea.vmem %s4, %s483
        %s485 = smul.u32 32, %s25
        %s486 = smul.u32 2, %s25
        %v487 = vld [vmem:[%s415] sm:$0xff]
        %v488 = vld [vmem:[%s415 + $0x8] sm:$0xff]
        %v489 = vld [vmem:[%s415 + $0x10] sm:$0xff]
        %v490 = vld [vmem:[%s415 + $0x18] sm:$0xff]
        %v491 = vld [vmem:[%s415 + $0x20] sm:$0xff]
        %v492 = vld [vmem:[%s415 + $0x28] sm:$0xff]
        %v493 = vld [vmem:[%s415 + $0x30] sm:$0xff]
        %v494 = vld [vmem:[%s415 + $0x38] sm:$0xff]
        %v495 = vld [vmem:[%s472] sm:$0x77]
        %v496 = vld [vmem:[%s478] sm:$0xff]
        %v497 = vld [vmem:[%s484] sm:$0xff]
        %v498 = vld [vmem:[%s484 + $0x8] sm:$0xff]
        %v499 = vld [vmem:[%s484 + $0x10] sm:$0xff]
        %v500 = vld [vmem:[%s484 + $0x18] sm:$0xff]
        %v501 = vld [vmem:[%s484 + $0x20] sm:$0xff]
        %v502 = vld [vmem:[%s484 + $0x28] sm:$0xff]
        %v503 = vld [vmem:[%s484 + $0x30] sm:$0xff]
        %v504 = vld [vmem:[%s484 + $0x38] sm:$0xff]
        %v505 = vld [vmem:[%s484 + $0x40] sm:$0xff]
        %v506 = vld [vmem:[%s484 + $0x48] sm:$0xff]
        %v507 = vld [vmem:[%s484 + $0x50] sm:$0xff]
        %v508 = vld [vmem:[%s484 + $0x58] sm:$0xff]
        %v509 = vld [vmem:[%s484 + $0x60] sm:$0xff]
        %v510 = vld [vmem:[%s484 + $0x68] sm:$0xff]
        %v511 = vld [vmem:[%s484 + $0x70] sm:$0xff]
        %v512 = vld [vmem:[%s484 + $0x78] sm:$0xff]
        %v513 = vld [vmem:[%s484 + $0x80] sm:$0xff]
        %v514 = vld [vmem:[%s484 + $0x88] sm:$0xff]
        %v515 = vld [vmem:[%s484 + $0x90] sm:$0xff]
        %v516 = vld [vmem:[%s484 + $0x98] sm:$0xff]
        %v517 = vld [vmem:[%s484 + $0xa0] sm:$0xff]
        %v518 = vld [vmem:[%s484 + $0xa8] sm:$0xff]
        %v519 = vld [vmem:[%s484 + $0xb0] sm:$0xff]
        %v520 = vld [vmem:[%s484 + $0xb8] sm:$0xff]
        %v521 = vld [vmem:[%s484 + $0xc0] sm:$0xff]
        %v522 = vld [vmem:[%s484 + $0xc8] sm:$0xff]
        %v523 = vld [vmem:[%s484 + $0xd0] sm:$0xff]
        %v524 = vld [vmem:[%s484 + $0xd8] sm:$0xff]
        %v525 = vld [vmem:[%s484 + $0xe0] sm:$0xff]
        %v526 = vld [vmem:[%s484 + $0xe8] sm:$0xff]
        %v527 = vld [vmem:[%s484 + $0xf0] sm:$0xff]
        %v528 = vld [vmem:[%s484 + $0xf8] sm:$0xff]
        %v529 = vld [vmem:[%s9] sm:$0xff]
        %v530 = vld [vmem:[%s10] sm:$0xff]
        %v531 = vld [vmem:[%s10 + $0x8] sm:$0xff]
        %v532 = vld [vmem:[%s10 + $0x10] sm:$0xff]
        %v533 = vld [vmem:[%s10 + $0x18] sm:$0xff]
        %v534 = vld [vmem:[%s8] sm:$0xff]
        %v535 = vld [vmem:[%s8 + $0x8] sm:$0xff]
        %v536 = vld [vmem:[%s8 + $0x10] sm:$0xff]
        %v537 = vld [vmem:[%s8 + $0x18] sm:$0xff]
        %v539 = vlaneseq
        %v540 = vshrl.u32 %v539, 7
        %v541 = vsub.s32 0, %v540
        %v542 = vrot.slane %v495, %v541
        %v543 = vlaneseq
        %v544 = vshrl.u32 %v543, 7
        %v545 = vsub.s32 4, %v544
        %v546 = vrot.slane %v495, %v545
        %v549 = vlaneseq
        %v550 = vshrl.u32 %v549, 7
        %v551 = vsub.s32 0, %v550
        %v552 = vrot.slane %v542, %v551
        %v553 = vlaneseq
        %v554 = vshrl.u32 %v553, 7
        %v555 = vsub.s32 0, %v554
        %v556 = vrot.slane %v546, %v555
        %v557 = vmul.f32 %v487, %v552
        %v558 = vmul.f32 %v488, %v556
        %v559 = vmul.f32 %v489, %v552
        %v560 = vmul.f32 %v490, %v556
        %v561 = vmul.f32 %v491, %v552
        %v562 = vmul.f32 %v492, %v556
        %v563 = vmul.f32 %v493, %v552
        %v564 = vmul.f32 %v494, %v556
        %v565 = vld [vmem:[%s5] sm:$0xff]
        %v566 = vld [vmem:[%s5 + $0x8] sm:$0xff]
        %v567 = vld [vmem:[%s5 + $0x10] sm:$0xff]
        %v568 = vld [vmem:[%s5 + $0x18] sm:$0xff]
        %v569 = vld [vmem:[%s5 + $0x20] sm:$0xff]
        %v570 = vld [vmem:[%s5 + $0x28] sm:$0xff]
        %v571 = vld [vmem:[%s5 + $0x30] sm:$0xff]
        %v572 = vld [vmem:[%s5 + $0x38] sm:$0xff]
        %573 = vrot.lane.b32.xlu0 %v557, 1
        %v574 = vpop.permute.xlu0 %573
        %575 = vrot.lane.b32.xlu0 %v559, 1
        %v576 = vpop.permute.xlu0 %575
        %577 = vrot.lane.b32.xlu0 %v561, 1
        %v578 = vpop.permute.xlu0 %577
        %579 = vrot.lane.b32.xlu0 %v563, 1
        %v580 = vpop.permute.xlu0 %579
        %581 = vrot.lane.b32.xlu0 %v558, 1
        %v582 = vpop.permute.xlu0 %581
        %583 = vrot.lane.b32.xlu0 %v560, 1
        %v584 = vpop.permute.xlu0 %583
        %585 = vrot.lane.b32.xlu0 %v562, 1
        %v586 = vpop.permute.xlu0 %585
        %587 = vrot.lane.b32.xlu0 %v564, 1
        %v588 = vpop.permute.xlu0 %587
        %v589 = vlaneseq
        %v590 = vand.u32 %v589, 127
        %vm591 = vcmp.lt.s32.totalorder %v590, 1
        %v592 = vsel %vm591, %v574, %v582
        %v593 = vsel %vm591, %v576, %v584
        %v594 = vsel %vm591, %v578, %v586
        %v595 = vsel %vm591, %v580, %v588
        %v596 = vsel %vm591, %v582, %v574
        %v597 = vsel %vm591, %v584, %v576
        %v598 = vsel %vm591, %v586, %v578
        %v599 = vsel %vm591, %v588, %v580
        %v600 = vlaneseq
        %v601 = vshrl.u32 %v600, 7
        %v602 = vsub.s32 1, %v601
        %v603 = vrot.slane %v495, %v602
        %v604 = vlaneseq
        %v605 = vshrl.u32 %v604, 7
        %v606 = vsub.s32 5, %v605
        %v607 = vrot.slane %v495, %v606
        %v610 = vlaneseq
        %v611 = vshrl.u32 %v610, 7
        %v612 = vsub.s32 1, %v611
        %v613 = vrot.slane %v603, %v612
        %v614 = vlaneseq
        %v615 = vshrl.u32 %v614, 7
        %v616 = vsub.s32 1, %v615
        %v617 = vrot.slane %v607, %v616
        %v618 = vmul.f32 %v596, %v613
        %v619 = vmul.f32 %v592, %v617
        %v620 = vmul.f32 %v597, %v613
        %v621 = vmul.f32 %v593, %v617
        %v622 = vmul.f32 %v598, %v613
        %v623 = vmul.f32 %v594, %v617
        %v624 = vmul.f32 %v599, %v613
        %v625 = vmul.f32 %v595, %v617
        %626 = vrot.lane.b32.xlu0 %v557, 127
        %v627 = vpop.permute.xlu0 %626
        %628 = vrot.lane.b32.xlu0 %v559, 127
        %v629 = vpop.permute.xlu0 %628
        %630 = vrot.lane.b32.xlu0 %v561, 127
        %v631 = vpop.permute.xlu0 %630
        %632 = vrot.lane.b32.xlu0 %v563, 127
        %v633 = vpop.permute.xlu0 %632
        %634 = vrot.lane.b32.xlu0 %v558, 127
        %v635 = vpop.permute.xlu0 %634
        %636 = vrot.lane.b32.xlu0 %v560, 127
        %v637 = vpop.permute.xlu0 %636
        %638 = vrot.lane.b32.xlu0 %v562, 127
        %v639 = vpop.permute.xlu0 %638
        %640 = vrot.lane.b32.xlu0 %v564, 127
        %v641 = vpop.permute.xlu0 %640
        %vm642 = vcmp.lt.s32.totalorder %v590, 127
        %v643 = vsel %vm642, %v627, %v635
        %v644 = vsel %vm642, %v629, %v637
        %v645 = vsel %vm642, %v631, %v639
        %v646 = vsel %vm642, %v633, %v641
        %v647 = vsel %vm642, %v635, %v627
        %v648 = vsel %vm642, %v637, %v629
        %v649 = vsel %vm642, %v639, %v631
        %v650 = vsel %vm642, %v641, %v633
        %v651 = vlaneseq
        %v652 = vshrl.u32 %v651, 7
        %v653 = vsub.s32 2, %v652
        %v654 = vrot.slane %v495, %v653
        %v655 = vlaneseq
        %v656 = vshrl.u32 %v655, 7
        %v657 = vsub.s32 6, %v656
        %v658 = vrot.slane %v495, %v657
        %v661 = vlaneseq
        %v662 = vshrl.u32 %v661, 7
        %v663 = vsub.s32 2, %v662
        %v664 = vrot.slane %v654, %v663
        %v665 = vlaneseq
        %v666 = vshrl.u32 %v665, 7
        %v667 = vsub.s32 2, %v666
        %v668 = vrot.slane %v658, %v667
        %v669 = vmul.f32 %v643, %v664
        %v670 = vmul.f32 %v647, %v668
        %v671 = vmul.f32 %v644, %v664
        %v672 = vmul.f32 %v648, %v668
        %v673 = vmul.f32 %v645, %v664
        %v674 = vmul.f32 %v649, %v668
        %v675 = vmul.f32 %v646, %v664
        %v676 = vmul.f32 %v650, %v668
        %vm677 = vcmask 785408
        %v679 = vsel %vm677, %v565, 0
        %v682 = vsel %vm677, %v566, 0
        %v685 = vsel %vm677, %v567, 0
        %v688 = vsel %vm677, %v568, 0
        %v691 = vsel %vm677, %v569, 0
        %v694 = vsel %vm677, %v570, 0
        %v697 = vsel %vm677, %v571, 0
        %v700 = vsel %vm677, %v572, 0
        %702 = vmatprep.subr.mxu0 %v619
        %703 = vmatpush1.msra.mxu0 %v618
        %704 = vmatprep.subr.mxu0 %v621
        %705 = vmatpush1.msra.mxu0 %v620
        %706 = vmatprep.subr.mxu0 %v623
        %707 = vmatpush1.msra.mxu0 %v622
        %708 = vmatprep.subr.mxu0 %v625
        %709 = vmatpush1.msra.mxu0 %v624
        %710 = vmatprep.subr.mxu0 %v558
        %711 = vmatpush1.msra.mxu0 %v557
        %712 = vmatprep.subr.mxu0 %v560
        %713 = vmatpush1.msra.mxu0 %v559
        %714 = vmatprep.subr.mxu0 %v562
        %715 = vmatpush1.msra.mxu0 %v561
        %716 = vmatprep.subr.mxu0 %v564
        %717 = vmatpush1.msra.mxu0 %v563
        %718 = vmatprep.subr.mxu0 %v670
        %719 = vmatpush1.msra.mxu0 %v669
        %720 = vmatprep.subr.mxu0 %v672
        %721 = vmatpush1.msra.mxu0 %v671
        %722 = vmatprep.subr.mxu0 %v674
        %723 = vmatpush1.msra.mxu0 %v673
        %724 = vmatprep.subr.mxu0 %v676
        %725 = vmatpush1.msra.mxu0 %v675
        %726 = vmatprep.subr.mxu0 0.0
        %727 = vmatpush1.msra.mxu0 0.0
        %728 = vmatprep.subr.mxu0 0.0
        %729 = vmatpush1.msra.mxu0 0.0
        %730 = vmatprep.subr.mxu0 0.0
        %731 = vmatpush1.msra.mxu0 0.0
        %732 = vmatprep.subr.mxu0 0.0
        %733 = vmatpush1.msra.mxu0 0.0
        %734 = vmatprep.subr.mxu0 0.0
        %735 = vmatpush1.msra.mxu0 0.0
        %736 = vmatprep.subr.mxu0 0.0
        %737 = vmatpush1.msra.mxu0 0.0
        %738 = vmatprep.subr.mxu0 0.0
        %739 = vmatpush1.msra.mxu0 0.0
        %740 = vmatprep.subr.mxu0 0.0
        %741 = vmatpush1.msra.mxu0 0.0
        %742 = vmatprep.subr.mxu0 0.0
        %743 = vmatpush1.msra.mxu0 0.0
        %744 = vmatprep.subr.mxu0 0.0
        %745 = vmatpush1.msra.mxu0 0.0
        %746 = vmatprep.subr.mxu0 0.0
        %747 = vmatpush1.msra.mxu0 0.0
        %748 = vmatprep.subr.mxu0 0.0
        %749 = vmatpush1.msra.mxu0 0.0
        %750 = vmatprep.subr.mxu0 0.0
        %751 = vmatpush1.msra.mxu0 0.0
        %752 = vmatprep.subr.mxu0 0.0
        %753 = vmatpush1.msra.mxu0 0.0
        %754 = vmatprep.subr.mxu0 0.0
        %755 = vmatpush1.msra.mxu0 0.0
        %756 = vmatprep.subr.mxu0 0.0
        %757 = vmatpush1.msra.mxu0 0.0
        %758 = vmatprep.subr.mxu0 0.0
        %759 = vmatpush1.msra.mxu0 0.0
        %760 = vmatprep.subr.mxu0 0.0
        %761 = vmatpush1.msra.mxu0 0.0
        %762 = vmatprep.subr.mxu0 0.0
        %763 = vmatpush1.msra.mxu0 0.0
        %764 = vmatprep.subr.mxu0 0.0
        %765 = vmatpush1.msra.mxu0 0.0
        %766 = vmatprep.mubr.f32.mxu0 0.0
        %767 = vmatmul.mubr.f32.gmra.mrb[0].mxu0 %v679
        %v768 = vpop.f32.mrb[0].mxu0
        %v769 = vadd.f32 0.0, %v768
        %v770 = vpop.f32.mrb[0].mxu0
        %v771 = vadd.f32 0.0, %v770
        %772 = vmatprep.mubr.f32.mxu0 0.0
        %773 = vmatmul.mubr.f32.gmra.mrb[0].mxu0 %v682
        %v774 = vpop.f32.mrb[0].mxu0
        %v775 = vadd.f32 0.0, %v774
        %v776 = vpop.f32.mrb[0].mxu0
        %v777 = vadd.f32 0.0, %v776
        %778 = vmatprep.mubr.f32.mxu0 0.0
        %779 = vmatmul.mubr.f32.gmra.mrb[0].mxu0 %v685
        %v780 = vpop.f32.mrb[0].mxu0
        %v781 = vadd.f32 0.0, %v780
        %v782 = vpop.f32.mrb[0].mxu0
        %v783 = vadd.f32 0.0, %v782
        %784 = vmatprep.mubr.f32.mxu0 0.0
        %785 = vmatmul.mubr.f32.gmra.mrb[0].mxu0 %v688
        %v786 = vpop.f32.mrb[0].mxu0
        %v787 = vadd.f32 0.0, %v786
        %v788 = vpop.f32.mrb[0].mxu0
        %v789 = vadd.f32 0.0, %v788
        %790 = vmatprep.mubr.f32.mxu0 0.0
        %791 = vmatmul.mubr.f32.gmra.mrb[0].mxu0 %v691
        %v792 = vpop.f32.mrb[0].mxu0
        %v793 = vadd.f32 0.0, %v792
        %v794 = vpop.f32.mrb[0].mxu0
        %v795 = vadd.f32 0.0, %v794
        %796 = vmatprep.mubr.f32.mxu0 0.0
        %797 = vmatmul.mubr.f32.gmra.mrb[0].mxu0 %v694
        %v798 = vpop.f32.mrb[0].mxu0
        %v799 = vadd.f32 0.0, %v798
        %v800 = vpop.f32.mrb[0].mxu0
        %v801 = vadd.f32 0.0, %v800
        %802 = vmatprep.mubr.f32.mxu0 0.0
        %803 = vmatmul.mubr.f32.gmra.mrb[0].mxu0 %v697
        %v804 = vpop.f32.mrb[0].mxu0
        %v805 = vadd.f32 0.0, %v804
        %v806 = vpop.f32.mrb[0].mxu0
        %v807 = vadd.f32 0.0, %v806
        %808 = vmatprep.mubr.f32.mxu0 0.0
        %809 = vmatmul.mubr.f32.gmra.mrb[0].mxu0 %v700
        %v810 = vpop.f32.mrb[0].mxu0
        %v811 = vadd.f32 0.0, %v810
        %v812 = vpop.f32.mrb[0].mxu0
        %v813 = vadd.f32 0.0, %v812
        %814 = vdwg.mxu0
        %816 = vset.pattern.permute.xlu0 7
        %817 = vperm.xlu0 %816, %v534
        %v818 = vpop.permute.xlu0 %817
        %821 = vset.pattern.permute.xlu0 7
        %822 = vperm.xlu0 %821, %v535
        %v823 = vpop.permute.xlu0 %822
        %826 = vset.pattern.permute.xlu0 7
        %827 = vperm.xlu0 %826, %v536
        %v828 = vpop.permute.xlu0 %827
        %831 = vset.pattern.permute.xlu0 7
        %832 = vperm.xlu0 %831, %v537
        %v833 = vpop.permute.xlu0 %832
        %v835 = vadd.f32 %v793, %v818
        %v836 = vadd.f32 %v795, %v818
        %v837 = vadd.f32 %v799, %v823
        %v838 = vadd.f32 %v801, %v823
        %v839 = vadd.f32 %v805, %v828
        %v840 = vadd.f32 %v807, %v828
        %v841 = vadd.f32 %v811, %v833
        %v842 = vadd.f32 %v813, %v833
        %843 = vset.pattern.permute.xlu0 0
        %844 = vperm.xlu0 %843, %v534
        %v845 = vpop.permute.xlu0 %844
        %847 = vset.pattern.permute.xlu0 0
        %848 = vperm.xlu0 %847, %v535
        %v849 = vpop.permute.xlu0 %848
        %851 = vset.pattern.permute.xlu0 0
        %852 = vperm.xlu0 %851, %v536
        %v853 = vpop.permute.xlu0 %852
        %855 = vset.pattern.permute.xlu0 0
        %856 = vperm.xlu0 %855, %v537
        %v857 = vpop.permute.xlu0 %856
        %v859 = vadd.f32 %v769, %v845
        %v860 = vadd.f32 %v771, %v845
        %v861 = vadd.f32 %v775, %v849
        %v862 = vadd.f32 %v777, %v849
        %v863 = vadd.f32 %v781, %v853
        %v864 = vadd.f32 %v783, %v853
        %v865 = vadd.f32 %v787, %v857
        %v866 = vadd.f32 %v789, %v857
        %v867 = vmul.f32 %v859, %v859
        %v868 = vmul.f32 %v860, %v860
        %v869 = vmul.f32 %v861, %v861
        %v870 = vmul.f32 %v862, %v862
        %v871 = vmul.f32 %v863, %v863
        %v872 = vmul.f32 %v864, %v864
        %v873 = vmul.f32 %v865, %v865
        %v874 = vmul.f32 %v866, %v866
        %875 = vmatprep.subr.mxu0 0.0
        %876 = vmatpush1.msra.mxu0 %v497
        %877 = vmatprep.subr.mxu0 0.0
        %878 = vmatpush1.msra.mxu0 %v498
        %879 = vmatprep.subr.mxu0 0.0
        %880 = vmatpush1.msra.mxu0 %v499
        %881 = vmatprep.subr.mxu0 0.0
        %882 = vmatpush1.msra.mxu0 %v500
        %883 = vmatprep.subr.mxu0 0.0
        %884 = vmatpush1.msra.mxu0 %v501
        %885 = vmatprep.subr.mxu0 0.0
        %886 = vmatpush1.msra.mxu0 %v502
        %887 = vmatprep.subr.mxu0 0.0
        %888 = vmatpush1.msra.mxu0 %v503
        %889 = vmatprep.subr.mxu0 0.0
        %890 = vmatpush1.msra.mxu0 %v504
        %891 = vmatprep.subr.mxu0 0.0
        %892 = vmatpush1.msra.mxu0 %v505
        %893 = vmatprep.subr.mxu0 0.0
        %894 = vmatpush1.msra.mxu0 %v506
        %895 = vmatprep.subr.mxu0 0.0
        %896 = vmatpush1.msra.mxu0 %v507
        %897 = vmatprep.subr.mxu0 0.0
        %898 = vmatpush1.msra.mxu0 %v508
        %899 = vmatprep.subr.mxu0 0.0
        %900 = vmatpush1.msra.mxu0 %v509
        %901 = vmatprep.subr.mxu0 0.0
        %902 = vmatpush1.msra.mxu0 %v510
        %903 = vmatprep.subr.mxu0 0.0
        %904 = vmatpush1.msra.mxu0 %v511
        %905 = vmatprep.subr.mxu0 0.0
        %906 = vmatpush1.msra.mxu0 %v512
        %907 = vmatprep.subr.mxu0 0.0
        %908 = vmatpush1.msra.mxu0 %v513
        %909 = vmatprep.subr.mxu0 0.0
        %910 = vmatpush1.msra.mxu0 %v514
        %911 = vmatprep.subr.mxu0 0.0
        %912 = vmatpush1.msra.mxu0 %v515
        %913 = vmatprep.subr.mxu0 0.0
        %914 = vmatpush1.msra.mxu0 %v516
        %915 = vmatprep.subr.mxu0 0.0
        %916 = vmatpush1.msra.mxu0 %v517
        %917 = vmatprep.subr.mxu0 0.0
        %918 = vmatpush1.msra.mxu0 %v518
        %919 = vmatprep.subr.mxu0 0.0
        %920 = vmatpush1.msra.mxu0 %v519
        %921 = vmatprep.subr.mxu0 0.0
        %922 = vmatpush1.msra.mxu0 %v520
        %923 = vmatprep.subr.mxu0 0.0
        %924 = vmatpush1.msra.mxu0 %v521
        %925 = vmatprep.subr.mxu0 0.0
        %926 = vmatpush1.msra.mxu0 %v522
        %927 = vmatprep.subr.mxu0 0.0
        %928 = vmatpush1.msra.mxu0 %v523
        %929 = vmatprep.subr.mxu0 0.0
        %930 = vmatpush1.msra.mxu0 %v524
        %931 = vmatprep.subr.mxu0 0.0
        %932 = vmatpush1.msra.mxu0 %v525
        %933 = vmatprep.subr.mxu0 0.0
        %934 = vmatpush1.msra.mxu0 %v526
        %935 = vmatprep.subr.mxu0 0.0
        %936 = vmatpush1.msra.mxu0 %v527
        %937 = vmatprep.subr.mxu0 0.0
        %938 = vmatpush1.msra.mxu0 %v528
        %939 = vmatprep.mubr.f32.mxu0 %v860
        %940 = vmatmul.mubr.f32.gmra.mrb[0].mxu0 %v859
        %v941 = vpop.f32.mrb[0].mxu0
        %v942 = vadd.f32 0.0, %v941
        %v943 = vpop.f32.mrb[0].mxu0
        %944 = vmatprep.mubr.f32.mxu0 %v862
        %945 = vmatmul.mubr.f32.gmra.mrb[0].mxu0 %v861
        %v946 = vpop.f32.mrb[0].mxu0
        %v947 = vadd.f32 0.0, %v946
        %v948 = vpop.f32.mrb[0].mxu0
        %949 = vmatprep.mubr.f32.mxu0 %v864
        %950 = vmatmul.mubr.f32.gmra.mrb[0].mxu0 %v863
        %v951 = vpop.f32.mrb[0].mxu0
        %v952 = vadd.f32 0.0, %v951
        %v953 = vpop.f32.mrb[0].mxu0
        %954 = vmatprep.mubr.f32.mxu0 %v866
        %955 = vmatmul.mubr.f32.gmra.mrb[0].mxu0 %v865
        %v956 = vpop.f32.mrb[0].mxu0
        %v957 = vadd.f32 0.0, %v956
        %v958 = vpop.f32.mrb[0].mxu0
        %959 = vmatprep.mubr.f32.mxu0 %v868
        %960 = vmatmul.mubr.f32.gmra.mrb[0].mxu0 %v867
        %v961 = vpop.f32.mrb[0].mxu0
        %v962 = vadd.f32 0.0, %v961
        %v963 = vpop.f32.mrb[0].mxu0
        %964 = vmatprep.mubr.f32.mxu0 %v870
        %965 = vmatmul.mubr.f32.gmra.mrb[0].mxu0 %v869
        %v966 = vpop.f32.mrb[0].mxu0
        %v967 = vadd.f32 0.0, %v966
        %v968 = vpop.f32.mrb[0].mxu0
        %969 = vmatprep.mubr.f32.mxu0 %v872
        %970 = vmatmul.mubr.f32.gmra.mrb[0].mxu0 %v871
        %v971 = vpop.f32.mrb[0].mxu0
        %v972 = vadd.f32 0.0, %v971
        %v973 = vpop.f32.mrb[0].mxu0
        %974 = vmatprep.mubr.f32.mxu0 %v874
        %975 = vmatmul.mubr.f32.gmra.mrb[0].mxu0 %v873
        %v976 = vpop.f32.mrb[0].mxu0
        %v977 = vadd.f32 0.0, %v976
        %v978 = vpop.f32.mrb[0].mxu0
        %979 = vdwg.mxu0
        %vm980 = vcmask 261120
        %v982 = vsel %vm980, %v529, 0
        %984 = vmatprep.subr.mxu0 0.0
        %985 = vmatpush1.msra.mxu0 %v942
        %986 = vmatprep.subr.mxu0 0.0
        %987 = vmatpush1.msra.mxu0 %v947
        %988 = vmatprep.subr.mxu0 0.0
        %989 = vmatpush1.msra.mxu0 %v952
        %990 = vmatprep.subr.mxu0 0.0
        %991 = vmatpush1.msra.mxu0 %v957
        %992 = vmatprep.subr.mxu0 0.0
        %993 = vmatpush1.msra.mxu0 0.0
        %994 = vmatprep.subr.mxu0 0.0
        %995 = vmatpush1.msra.mxu0 0.0
        %996 = vmatprep.subr.mxu0 0.0
        %997 = vmatpush1.msra.mxu0 0.0
        %998 = vmatprep.subr.mxu0 0.0
        %999 = vmatpush1.msra.mxu0 0.0
        %1000 = vmatprep.subr.mxu0 0.0
        %1001 = vmatpush1.msra.mxu0 0.0
        %1002 = vmatprep.subr.mxu0 0.0
        %1003 = vmatpush1.msra.mxu0 0.0
        %1004 = vmatprep.subr.mxu0 0.0
        %1005 = vmatpush1.msra.mxu0 0.0
        %1006 = vmatprep.subr.mxu0 0.0
        %1007 = vmatpush1.msra.mxu0 0.0
        %1008 = vmatprep.subr.mxu0 0.0
        %1009 = vmatpush1.msra.mxu0 0.0
        %1010 = vmatprep.subr.mxu0 0.0
        %1011 = vmatpush1.msra.mxu0 0.0
        %1012 = vmatprep.subr.mxu0 0.0
        %1013 = vmatpush1.msra.mxu0 0.0
        %1014 = vmatprep.subr.mxu0 0.0
        %1015 = vmatpush1.msra.mxu0 0.0
        %1016 = vmatprep.subr.mxu0 0.0
        %1017 = vmatpush1.msra.mxu0 0.0
        %1018 = vmatprep.subr.mxu0 0.0
        %1019 = vmatpush1.msra.mxu0 0.0
        %1020 = vmatprep.subr.mxu0 0.0
        %1021 = vmatpush1.msra.mxu0 0.0
        %1022 = vmatprep.subr.mxu0 0.0
        %1023 = vmatpush1.msra.mxu0 0.0
        %1024 = vmatprep.subr.mxu0 0.0
        %1025 = vmatpush1.msra.mxu0 0.0
        %1026 = vmatprep.subr.mxu0 0.0
        %1027 = vmatpush1.msra.mxu0 0.0
        %1028 = vmatprep.subr.mxu0 0.0
        %1029 = vmatpush1.msra.mxu0 0.0
        %1030 = vmatprep.subr.mxu0 0.0
        %1031 = vmatpush1.msra.mxu0 0.0
        %1032 = vmatprep.subr.mxu0 0.0
        %1033 = vmatpush1.msra.mxu0 0.0
        %1034 = vmatprep.subr.mxu0 0.0
        %1035 = vmatpush1.msra.mxu0 0.0
        %1036 = vmatprep.subr.mxu0 0.0
        %1037 = vmatpush1.msra.mxu0 0.0
        %1038 = vmatprep.subr.mxu0 0.0
        %1039 = vmatpush1.msra.mxu0 0.0
        %1040 = vmatprep.subr.mxu0 0.0
        %1041 = vmatpush1.msra.mxu0 0.0
        %1042 = vmatprep.subr.mxu0 0.0
        %1043 = vmatpush1.msra.mxu0 0.0
        %1044 = vmatprep.subr.mxu0 0.0
        %1045 = vmatpush1.msra.mxu0 0.0
        %1046 = vmatprep.subr.mxu0 0.0
        %1047 = vmatpush1.msra.mxu0 0.0
        %1048 = vmatprep.mubr.f32.mxu0 0.0
        %1049 = vmatmul.mubr.f32.gmra.mrb[0].mxu0 %v982
        %v1050 = vpop.f32.mrb[0].mxu0
        %v1051 = vadd.f32 0.0, %v1050
        %v1052 = vpop.f32.mrb[0].mxu0
        %1053 = vdwg.mxu0
        %v1054 = vmul.f32 %v1051, 0.001953125
        %1055 = vmatprep.subr.mxu0 0.0
        %1056 = vmatpush1.msra.mxu0 %v962
        %1057 = vmatprep.subr.mxu0 0.0
        %1058 = vmatpush1.msra.mxu0 %v967
        %1059 = vmatprep.subr.mxu0 0.0
        %1060 = vmatpush1.msra.mxu0 %v972
        %1061 = vmatprep.subr.mxu0 0.0
        %1062 = vmatpush1.msra.mxu0 %v977
        %1063 = vmatprep.subr.mxu0 0.0
        %1064 = vmatpush1.msra.mxu0 0.0
        %1065 = vmatprep.subr.mxu0 0.0
        %1066 = vmatpush1.msra.mxu0 0.0
        %1067 = vmatprep.subr.mxu0 0.0
        %1068 = vmatpush1.msra.mxu0 0.0
        %1069 = vmatprep.subr.mxu0 0.0
        %1070 = vmatpush1.msra.mxu0 0.0
        %1071 = vmatprep.subr.mxu0 0.0
        %1072 = vmatpush1.msra.mxu0 0.0
        %1073 = vmatprep.subr.mxu0 0.0
        %1074 = vmatpush1.msra.mxu0 0.0
        %1075 = vmatprep.subr.mxu0 0.0
        %1076 = vmatpush1.msra.mxu0 0.0
        %1077 = vmatprep.subr.mxu0 0.0
        %1078 = vmatpush1.msra.mxu0 0.0
        %1079 = vmatprep.subr.mxu0 0.0
        %1080 = vmatpush1.msra.mxu0 0.0
        %1081 = vmatprep.subr.mxu0 0.0
        %1082 = vmatpush1.msra.mxu0 0.0
        %1083 = vmatprep.subr.mxu0 0.0
        %1084 = vmatpush1.msra.mxu0 0.0
        %1085 = vmatprep.subr.mxu0 0.0
        %1086 = vmatpush1.msra.mxu0 0.0
        %1087 = vmatprep.subr.mxu0 0.0
        %1088 = vmatpush1.msra.mxu0 0.0
        %1089 = vmatprep.subr.mxu0 0.0
        %1090 = vmatpush1.msra.mxu0 0.0
        %1091 = vmatprep.subr.mxu0 0.0
        %1092 = vmatpush1.msra.mxu0 0.0
        %1093 = vmatprep.subr.mxu0 0.0
        %1094 = vmatpush1.msra.mxu0 0.0
        %1095 = vmatprep.subr.mxu0 0.0
        %1096 = vmatpush1.msra.mxu0 0.0
        %1097 = vmatprep.subr.mxu0 0.0
        %1098 = vmatpush1.msra.mxu0 0.0
        %1099 = vmatprep.subr.mxu0 0.0
        %1100 = vmatpush1.msra.mxu0 0.0
        %1101 = vmatprep.subr.mxu0 0.0
        %1102 = vmatpush1.msra.mxu0 0.0
        %1103 = vmatprep.subr.mxu0 0.0
        %1104 = vmatpush1.msra.mxu0 0.0
        %1105 = vmatprep.subr.mxu0 0.0
        %1106 = vmatpush1.msra.mxu0 0.0
        %1107 = vmatprep.subr.mxu0 0.0
        %1108 = vmatpush1.msra.mxu0 0.0
        %1109 = vmatprep.subr.mxu0 0.0
        %1110 = vmatpush1.msra.mxu0 0.0
        %1111 = vmatprep.subr.mxu0 0.0
        %1112 = vmatpush1.msra.mxu0 0.0
        %1113 = vmatprep.subr.mxu0 0.0
        %1114 = vmatpush1.msra.mxu0 0.0
        %1115 = vmatprep.subr.mxu0 0.0
        %1116 = vmatpush1.msra.mxu0 0.0
        %1117 = vmatprep.subr.mxu0 0.0
        %1118 = vmatpush1.msra.mxu0 0.0
        %1119 = vmatprep.mubr.f32.mxu0 0.0
        %1120 = vmatmul.mubr.f32.gmra.mrb[0].mxu0 %v982
        %v1121 = vpop.f32.mrb[0].mxu0
        %v1122 = vadd.f32 0.0, %v1121
        %v1123 = vpop.f32.mrb[0].mxu0
        %1124 = vdwg.mxu0
        %v1125 = vmul.f32 %v1122, 0.001953125
        %v1126 = vmul.f32 %v1054, %v1054
        %v1127 = vsub.f32 %v1125, %v1126
        %v1128 = vadd.f32 %v1127, 1e-05
        %v1129 = vrsqrt.pop %v1128
        %vm1130 = vcmask 64512
        %v1132 = vsel %vm1130, %v530, 0
        %v1135 = vsel %vm1130, %v531, 0
        %v1138 = vsel %vm1130, %v532, 0
        %v1141 = vsel %vm1130, %v533, 0
        %1143 = vmatprep.subr.mxu0 0.0
        %1144 = vmatpush1.msra.mxu0 %v1129
        %1145 = vmatprep.subr.mxu0 0.0
        %1146 = vmatpush1.msra.mxu0 0.0
        %1147 = vmatprep.subr.mxu0 0.0
        %1148 = vmatpush1.msra.mxu0 0.0
        %1149 = vmatprep.subr.mxu0 0.0
        %1150 = vmatpush1.msra.mxu0 0.0
        %1151 = vmatprep.subr.mxu0 0.0
        %1152 = vmatpush1.msra.mxu0 0.0
        %1153 = vmatprep.subr.mxu0 0.0
        %1154 = vmatpush1.msra.mxu0 0.0
        %1155 = vmatprep.subr.mxu0 0.0
        %1156 = vmatpush1.msra.mxu0 0.0
        %1157 = vmatprep.subr.mxu0 0.0
        %1158 = vmatpush1.msra.mxu0 0.0
        %1159 = vmatprep.subr.mxu0 0.0
        %1160 = vmatpush1.msra.mxu0 0.0
        %1161 = vmatprep.subr.mxu0 0.0
        %1162 = vmatpush1.msra.mxu0 0.0
        %1163 = vmatprep.subr.mxu0 0.0
        %1164 = vmatpush1.msra.mxu0 0.0
        %1165 = vmatprep.subr.mxu0 0.0
        %1166 = vmatpush1.msra.mxu0 0.0
        %1167 = vmatprep.subr.mxu0 0.0
        %1168 = vmatpush1.msra.mxu0 0.0
        %1169 = vmatprep.subr.mxu0 0.0
        %1170 = vmatpush1.msra.mxu0 0.0
        %1171 = vmatprep.subr.mxu0 0.0
        %1172 = vmatpush1.msra.mxu0 0.0
        %1173 = vmatprep.subr.mxu0 0.0
        %1174 = vmatpush1.msra.mxu0 0.0
        %1175 = vmatprep.subr.mxu0 0.0
        %1176 = vmatpush1.msra.mxu0 0.0
        %1177 = vmatprep.subr.mxu0 0.0
        %1178 = vmatpush1.msra.mxu0 0.0
        %1179 = vmatprep.subr.mxu0 0.0
        %1180 = vmatpush1.msra.mxu0 0.0
        %1181 = vmatprep.subr.mxu0 0.0
        %1182 = vmatpush1.msra.mxu0 0.0
        %1183 = vmatprep.subr.mxu0 0.0
        %1184 = vmatpush1.msra.mxu0 0.0
        %1185 = vmatprep.subr.mxu0 0.0
        %1186 = vmatpush1.msra.mxu0 0.0
        %1187 = vmatprep.subr.mxu0 0.0
        %1188 = vmatpush1.msra.mxu0 0.0
        %1189 = vmatprep.subr.mxu0 0.0
        %1190 = vmatpush1.msra.mxu0 0.0
        %1191 = vmatprep.subr.mxu0 0.0
        %1192 = vmatpush1.msra.mxu0 0.0
        %1193 = vmatprep.subr.mxu0 0.0
        %1194 = vmatpush1.msra.mxu0 0.0
        %1195 = vmatprep.subr.mxu0 0.0
        %1196 = vmatpush1.msra.mxu0 0.0
        %1197 = vmatprep.subr.mxu0 0.0
        %1198 = vmatpush1.msra.mxu0 0.0
        %1199 = vmatprep.subr.mxu0 0.0
        %1200 = vmatpush1.msra.mxu0 0.0
        %1201 = vmatprep.subr.mxu0 0.0
        %1202 = vmatpush1.msra.mxu0 0.0
        %1203 = vmatprep.subr.mxu0 0.0
        %1204 = vmatpush1.msra.mxu0 0.0
        %1205 = vmatprep.subr.mxu0 0.0
        %1206 = vmatpush1.msra.mxu0 0.0
        %1207 = vmatprep.mubr.f32.mxu0 0.0
        %1208 = vmatmul.mubr.f32.gmra.mrb[0].mxu0 %v1132
        %v1209 = vpop.f32.mrb[0].mxu0
        %v1210 = vadd.f32 0.0, %v1209
        %v1211 = vpop.f32.mrb[0].mxu0
        %1212 = vmatprep.mubr.f32.mxu0 0.0
        %1213 = vmatmul.mubr.f32.gmra.mrb[0].mxu0 %v1135
        %v1214 = vpop.f32.mrb[0].mxu0
        %v1215 = vadd.f32 0.0, %v1214
        %v1216 = vpop.f32.mrb[0].mxu0
        %1217 = vmatprep.mubr.f32.mxu0 0.0
        %1218 = vmatmul.mubr.f32.gmra.mrb[0].mxu0 %v1138
        %v1219 = vpop.f32.mrb[0].mxu0
        %v1220 = vadd.f32 0.0, %v1219
        %v1221 = vpop.f32.mrb[0].mxu0
        %1222 = vmatprep.mubr.f32.mxu0 0.0
        %1223 = vmatmul.mubr.f32.gmra.mrb[0].mxu0 %v1141
        %v1224 = vpop.f32.mrb[0].mxu0
        %v1225 = vadd.f32 0.0, %v1224
        %v1226 = vpop.f32.mrb[0].mxu0
        %1227 = vdwg.mxu0
        %1228 = vset.pattern.permute.xlu0 1
        %1229 = vperm.xlu0 %1228, %v534
        %v1230 = vpop.permute.xlu0 %1229
        %1232 = vset.pattern.permute.xlu0 1
        %1233 = vperm.xlu0 %1232, %v535
        %v1234 = vpop.permute.xlu0 %1233
        %1236 = vset.pattern.permute.xlu0 1
        %1237 = vperm.xlu0 %1236, %v536
        %v1238 = vpop.permute.xlu0 %1237
        %1240 = vset.pattern.permute.xlu0 1
        %1241 = vperm.xlu0 %1240, %v537
        %v1242 = vpop.permute.xlu0 %1241
        %v1244 = vmul.f32 %v1210, %v1230
        %v1245 = vmul.f32 %v1215, %v1234
        %v1246 = vmul.f32 %v1220, %v1238
        %v1247 = vmul.f32 %v1225, %v1242
        %v1248 = vmul.f32 %v1054, %v1129
        %1249 = vmatprep.subr.mxu0 0.0
        %1250 = vmatpush1.msra.mxu0 %v1248
        %1251 = vmatprep.subr.mxu0 0.0
        %1252 = vmatpush1.msra.mxu0 0.0
        %1253 = vmatprep.subr.mxu0 0.0
        %1254 = vmatpush1.msra.mxu0 0.0
        %1255 = vmatprep.subr.mxu0 0.0
        %1256 = vmatpush1.msra.mxu0 0.0
        %1257 = vmatprep.subr.mxu0 0.0
        %1258 = vmatpush1.msra.mxu0 0.0
        %1259 = vmatprep.subr.mxu0 0.0
        %1260 = vmatpush1.msra.mxu0 0.0
        %1261 = vmatprep.subr.mxu0 0.0
        %1262 = vmatpush1.msra.mxu0 0.0
        %1263 = vmatprep.subr.mxu0 0.0
        %1264 = vmatpush1.msra.mxu0 0.0
        %1265 = vmatprep.subr.mxu0 0.0
        %1266 = vmatpush1.msra.mxu0 0.0
        %1267 = vmatprep.subr.mxu0 0.0
        %1268 = vmatpush1.msra.mxu0 0.0
        %1269 = vmatprep.subr.mxu0 0.0
        %1270 = vmatpush1.msra.mxu0 0.0
        %1271 = vmatprep.subr.mxu0 0.0
        %1272 = vmatpush1.msra.mxu0 0.0
        %1273 = vmatprep.subr.mxu0 0.0
        %1274 = vmatpush1.msra.mxu0 0.0
        %1275 = vmatprep.subr.mxu0 0.0
        %1276 = vmatpush1.msra.mxu0 0.0
        %1277 = vmatprep.subr.mxu0 0.0
        %1278 = vmatpush1.msra.mxu0 0.0
        %1279 = vmatprep.subr.mxu0 0.0
        %1280 = vmatpush1.msra.mxu0 0.0
        %1281 = vmatprep.subr.mxu0 0.0
        %1282 = vmatpush1.msra.mxu0 0.0
        %1283 = vmatprep.subr.mxu0 0.0
        %1284 = vmatpush1.msra.mxu0 0.0
        %1285 = vmatprep.subr.mxu0 0.0
        %1286 = vmatpush1.msra.mxu0 0.0
        %1287 = vmatprep.subr.mxu0 0.0
        %1288 = vmatpush1.msra.mxu0 0.0
        %1289 = vmatprep.subr.mxu0 0.0
        %1290 = vmatpush1.msra.mxu0 0.0
        %1291 = vmatprep.subr.mxu0 0.0
        %1292 = vmatpush1.msra.mxu0 0.0
        %1293 = vmatprep.subr.mxu0 0.0
        %1294 = vmatpush1.msra.mxu0 0.0
        %1295 = vmatprep.subr.mxu0 0.0
        %1296 = vmatpush1.msra.mxu0 0.0
        %1297 = vmatprep.subr.mxu0 0.0
        %1298 = vmatpush1.msra.mxu0 0.0
        %1299 = vmatprep.subr.mxu0 0.0
        %1300 = vmatpush1.msra.mxu0 0.0
        %1301 = vmatprep.subr.mxu0 0.0
        %1302 = vmatpush1.msra.mxu0 0.0
        %1303 = vmatprep.subr.mxu0 0.0
        %1304 = vmatpush1.msra.mxu0 0.0
        %1305 = vmatprep.subr.mxu0 0.0
        %1306 = vmatpush1.msra.mxu0 0.0
        %1307 = vmatprep.subr.mxu0 0.0
        %1308 = vmatpush1.msra.mxu0 0.0
        %1309 = vmatprep.subr.mxu0 0.0
        %1310 = vmatpush1.msra.mxu0 0.0
        %1311 = vmatprep.subr.mxu0 0.0
        %1312 = vmatpush1.msra.mxu0 0.0
        %1313 = vmatprep.mubr.f32.mxu0 0.0
        %1314 = vmatmul.mubr.f32.gmra.mrb[0].mxu0 %v1132
        %v1315 = vpop.f32.mrb[0].mxu0
        %v1316 = vadd.f32 0.0, %v1315
        %v1317 = vpop.f32.mrb[0].mxu0
        %1318 = vmatprep.mubr.f32.mxu0 0.0
        %1319 = vmatmul.mubr.f32.gmra.mrb[0].mxu0 %v1135
        %v1320 = vpop.f32.mrb[0].mxu0
        %v1321 = vadd.f32 0.0, %v1320
        %v1322 = vpop.f32.mrb[0].mxu0
        %1323 = vmatprep.mubr.f32.mxu0 0.0
        %1324 = vmatmul.mubr.f32.gmra.mrb[0].mxu0 %v1138
        %v1325 = vpop.f32.mrb[0].mxu0
        %v1326 = vadd.f32 0.0, %v1325
        %v1327 = vpop.f32.mrb[0].mxu0
        %1328 = vmatprep.mubr.f32.mxu0 0.0
        %1329 = vmatmul.mubr.f32.gmra.mrb[0].mxu0 %v1141
        %v1330 = vpop.f32.mrb[0].mxu0
        %v1331 = vadd.f32 0.0, %v1330
        %v1332 = vpop.f32.mrb[0].mxu0
        %1333 = vdwg.mxu0
        %v1334 = vmul.f32 %v1316, %v1230
        %v1335 = vmul.f32 %v1321, %v1234
        %v1336 = vmul.f32 %v1326, %v1238
        %v1337 = vmul.f32 %v1331, %v1242
        %1338 = vset.pattern.permute.xlu0 2
        %1339 = vperm.xlu0 %1338, %v534
        %v1340 = vpop.permute.xlu0 %1339
        %1342 = vset.pattern.permute.xlu0 2
        %1343 = vperm.xlu0 %1342, %v535
        %v1344 = vpop.permute.xlu0 %1343
        %1346 = vset.pattern.permute.xlu0 2
        %1347 = vperm.xlu0 %1346, %v536
        %v1348 = vpop.permute.xlu0 %1347
        %1350 = vset.pattern.permute.xlu0 2
        %1351 = vperm.xlu0 %1350, %v537
        %v1352 = vpop.permute.xlu0 %1351
        %v1354 = vsub.f32 %v1340, %v1334
        %v1355 = vsub.f32 %v1344, %v1335
        %v1356 = vsub.f32 %v1348, %v1336
        %v1357 = vsub.f32 %v1352, %v1337
        %v1359 = vcombine.high %v496, %v496
        %vm1360 = vcmask 31744
        %v1362 = vsel %vm1360, %v1244, 0
        %v1365 = vsel %vm1360, %v1245, 0
        %v1368 = vsel %vm1360, %v1246, 0
        %v1371 = vsel %vm1360, %v1247, 0
        %v1374 = vsel %vm1360, %v1354, 0
        %v1377 = vsel %vm1360, %v1355, 0
        %v1380 = vsel %vm1360, %v1356, 0
        %v1383 = vsel %vm1360, %v1357, 0
        %vm1385 = vcmask 1043456
        %v1386 = vsel %vm1385, %v496, 0
        %v1388 = vsel %vm1385, %v1359, 0
        %1390 = vmatprep.subr.mxu0 %v1388
        %1391 = vmatpush1.msra.mxu0 %v1386
        %1392 = vmatprep.subr.mxu0 0.0
        %1393 = vmatpush1.msra.mxu0 0.0
        %1394 = vmatprep.subr.mxu0 0.0
        %1395 = vmatpush1.msra.mxu0 0.0
        %1396 = vmatprep.subr.mxu0 0.0
        %1397 = vmatpush1.msra.mxu0 0.0
        %1398 = vmatprep.subr.mxu0 0.0
        %1399 = vmatpush1.msra.mxu0 0.0
        %1400 = vmatprep.subr.mxu0 0.0
        %1401 = vmatpush1.msra.mxu0 0.0
        %1402 = vmatprep.subr.mxu0 0.0
        %1403 = vmatpush1.msra.mxu0 0.0
        %1404 = vmatprep.subr.mxu0 0.0
        %1405 = vmatpush1.msra.mxu0 0.0
        %1406 = vmatprep.subr.mxu0 0.0
        %1407 = vmatpush1.msra.mxu0 0.0
        %1408 = vmatprep.subr.mxu0 0.0
        %1409 = vmatpush1.msra.mxu0 0.0
        %1410 = vmatprep.subr.mxu0 0.0
        %1411 = vmatpush1.msra.mxu0 0.0
        %1412 = vmatprep.subr.mxu0 0.0
        %1413 = vmatpush1.msra.mxu0 0.0
        %1414 = vmatprep.subr.mxu0 0.0
        %1415 = vmatpush1.msra.mxu0 0.0
        %1416 = vmatprep.subr.mxu0 0.0
        %1417 = vmatpush1.msra.mxu0 0.0
        %1418 = vmatprep.subr.mxu0 0.0
        %1419 = vmatpush1.msra.mxu0 0.0
        %1420 = vmatprep.subr.mxu0 0.0
        %1421 = vmatpush1.msra.mxu0 0.0
        %1422 = vmatprep.subr.mxu0 0.0
        %1423 = vmatpush1.msra.mxu0 0.0
        %1424 = vmatprep.subr.mxu0 0.0
        %1425 = vmatpush1.msra.mxu0 0.0
        %1426 = vmatprep.subr.mxu0 0.0
        %1427 = vmatpush1.msra.mxu0 0.0
        %1428 = vmatprep.subr.mxu0 0.0
        %1429 = vmatpush1.msra.mxu0 0.0
        %1430 = vmatprep.subr.mxu0 0.0
        %1431 = vmatpush1.msra.mxu0 0.0
        %1432 = vmatprep.subr.mxu0 0.0
        %1433 = vmatpush1.msra.mxu0 0.0
        %1434 = vmatprep.subr.mxu0 0.0
        %1435 = vmatpush1.msra.mxu0 0.0
        %1436 = vmatprep.subr.mxu0 0.0
        %1437 = vmatpush1.msra.mxu0 0.0
        %1438 = vmatprep.subr.mxu0 0.0
        %1439 = vmatpush1.msra.mxu0 0.0
        %1440 = vmatprep.subr.mxu0 0.0
        %1441 = vmatpush1.msra.mxu0 0.0
        %1442 = vmatprep.subr.mxu0 0.0
        %1443 = vmatpush1.msra.mxu0 0.0
        %1444 = vmatprep.subr.mxu0 0.0
        %1445 = vmatpush1.msra.mxu0 0.0
        %1446 = vmatprep.subr.mxu0 0.0
        %1447 = vmatpush1.msra.mxu0 0.0
        %1448 = vmatprep.subr.mxu0 0.0
        %1449 = vmatpush1.msra.mxu0 0.0
        %1450 = vmatprep.subr.mxu0 0.0
        %1451 = vmatpush1.msra.mxu0 0.0
        %1452 = vmatprep.subr.mxu0 0.0
        %1453 = vmatpush1.msra.mxu0 0.0
        %1454 = vmatprep.mubr.f32.mxu0 0.0
        %1455 = vmatmul.mubr.f32.gmra.mrb[0].mxu0 %v1362
        %v1456 = vpop.f32.mrb[0].mxu0
        %v1457 = vadd.f32 0.0, %v1456
        %v1458 = vpop.f32.mrb[0].mxu0
        %v1459 = vadd.f32 0.0, %v1458
        %1460 = vmatprep.mubr.f32.mxu0 0.0
        %1461 = vmatmul.mubr.f32.gmra.mrb[0].mxu0 %v1365
        %v1462 = vpop.f32.mrb[0].mxu0
        %v1463 = vadd.f32 0.0, %v1462
        %v1464 = vpop.f32.mrb[0].mxu0
        %v1465 = vadd.f32 0.0, %v1464
        %1466 = vmatprep.mubr.f32.mxu0 0.0
        %1467 = vmatmul.mubr.f32.gmra.mrb[0].mxu0 %v1368
        %v1468 = vpop.f32.mrb[0].mxu0
        %v1469 = vadd.f32 0.0, %v1468
        %v1470 = vpop.f32.mrb[0].mxu0
        %v1471 = vadd.f32 0.0, %v1470
        %1472 = vmatprep.mubr.f32.mxu0 0.0
        %1473 = vmatmul.mubr.f32.gmra.mrb[0].mxu0 %v1371
        %v1474 = vpop.f32.mrb[0].mxu0
        %v1475 = vadd.f32 0.0, %v1474
        %v1476 = vpop.f32.mrb[0].mxu0
        %v1477 = vadd.f32 0.0, %v1476
        %1478 = vmatprep.mubr.f32.mxu0 0.0
        %1479 = vmatmul.mubr.f32.gmra.mrb[0].mxu0 %v1374
        %v1480 = vpop.f32.mrb[0].mxu0
        %v1481 = vadd.f32 0.0, %v1480
        %v1482 = vpop.f32.mrb[0].mxu0
        %v1483 = vadd.f32 0.0, %v1482
        %1484 = vmatprep.mubr.f32.mxu0 0.0
        %1485 = vmatmul.mubr.f32.gmra.mrb[0].mxu0 %v1377
        %v1486 = vpop.f32.mrb[0].mxu0
        %v1487 = vadd.f32 0.0, %v1486
        %v1488 = vpop.f32.mrb[0].mxu0
        %v1489 = vadd.f32 0.0, %v1488
        %1490 = vmatprep.mubr.f32.mxu0 0.0
        %1491 = vmatmul.mubr.f32.gmra.mrb[0].mxu0 %v1380
        %v1492 = vpop.f32.mrb[0].mxu0
        %v1493 = vadd.f32 0.0, %v1492
        %v1494 = vpop.f32.mrb[0].mxu0
        %v1495 = vadd.f32 0.0, %v1494
        %1496 = vmatprep.mubr.f32.mxu0 0.0
        %1497 = vmatmul.mubr.f32.gmra.mrb[0].mxu0 %v1383
        %v1498 = vpop.f32.mrb[0].mxu0
        %v1499 = vadd.f32 0.0, %v1498
        %v1500 = vpop.f32.mrb[0].mxu0
        %v1501 = vadd.f32 0.0, %v1500
        %1502 = vdwg.mxu0
        %v1503 = vmul.f32 %v859, %v1457
        %v1504 = vmul.f32 %v860, %v1459
        %v1505 = vmul.f32 %v861, %v1463
        %v1506 = vmul.f32 %v862, %v1465
        %v1507 = vmul.f32 %v863, %v1469
        %v1508 = vmul.f32 %v864, %v1471
        %v1509 = vmul.f32 %v865, %v1475
        %v1510 = vmul.f32 %v866, %v1477
        %v1511 = vadd.f32 %v1503, %v1481
        %v1512 = vadd.f32 %v1504, %v1483
        %v1513 = vadd.f32 %v1505, %v1487
        %v1514 = vadd.f32 %v1506, %v1489
        %v1515 = vadd.f32 %v1507, %v1493
        %v1516 = vadd.f32 %v1508, %v1495
        %v1517 = vadd.f32 %v1509, %v1499
        %v1518 = vadd.f32 %v1510, %v1501
        %v1519 = vmin.f32 %v1511, 30.0
        %v1520 = vmin.f32 %v1512, 30.0
        %v1521 = vmin.f32 %v1513, 30.0
        %v1522 = vmin.f32 %v1514, 30.0
        %v1523 = vmin.f32 %v1515, 30.0
        %v1524 = vmin.f32 %v1516, 30.0
        %v1525 = vmin.f32 %v1517, 30.0
        %v1526 = vmin.f32 %v1518, 30.0
        %v1527 = vmul.f32 %v1519, 1.442695
        %v1528 = vpow.pop %v1527
        %v1529 = vmul.f32 %v1520, 1.442695
        %v1530 = vpow.pop %v1529
        %v1531 = vmul.f32 %v1521, 1.442695
        %v1532 = vpow.pop %v1531
        %v1533 = vmul.f32 %v1522, 1.442695
        %v1534 = vpow.pop %v1533
        %v1535 = vmul.f32 %v1523, 1.442695
        %v1536 = vpow.pop %v1535
        %v1537 = vmul.f32 %v1524, 1.442695
        %v1538 = vpow.pop %v1537
        %v1539 = vmul.f32 %v1525, 1.442695
        %v1540 = vpow.pop %v1539
        %v1541 = vmul.f32 %v1526, 1.442695
        %v1542 = vpow.pop %v1541
        %v1543 = vadd.f32 %v1528, 1.0
        %v1544 = vadd.f32 %v1530, 1.0
        %v1545 = vadd.f32 %v1532, 1.0
        %v1546 = vadd.f32 %v1534, 1.0
        %v1547 = vadd.f32 %v1536, 1.0
        %v1548 = vadd.f32 %v1538, 1.0
        %v1549 = vadd.f32 %v1540, 1.0
        %v1550 = vadd.f32 %v1542, 1.0
        %v1551 = vadd.f32 %v1511, %v1511
        %v1552 = vadd.f32 %v1512, %v1512
        %v1553 = vadd.f32 %v1513, %v1513
        %v1554 = vadd.f32 %v1514, %v1514
        %v1555 = vadd.f32 %v1515, %v1515
        %v1556 = vadd.f32 %v1516, %v1516
        %v1557 = vadd.f32 %v1517, %v1517
        %v1558 = vadd.f32 %v1518, %v1518
        %v1559 = vmul.f32 %v1543, %v1543
        %v1560 = vmul.f32 %v1544, %v1544
        %v1561 = vmul.f32 %v1545, %v1545
        %v1562 = vmul.f32 %v1546, %v1546
        %v1563 = vmul.f32 %v1547, %v1547
        %v1564 = vmul.f32 %v1548, %v1548
        %v1565 = vmul.f32 %v1549, %v1549
        %v1566 = vmul.f32 %v1550, %v1550
        %v1567 = vadd.f32 %v1559, 1.0
        %v1568 = vadd.f32 %v1560, 1.0
        %v1569 = vadd.f32 %v1561, 1.0
        %v1570 = vadd.f32 %v1562, 1.0
        %v1571 = vadd.f32 %v1563, 1.0
        %v1572 = vadd.f32 %v1564, 1.0
        %v1573 = vadd.f32 %v1565, 1.0
        %v1574 = vadd.f32 %v1566, 1.0
        %v1575 = vrcp.pop %v1567
        %v1576 = vrcp.pop %v1568
        %v1577 = vrcp.pop %v1569
        %v1578 = vrcp.pop %v1570
        %v1579 = vrcp.pop %v1571
        %v1580 = vrcp.pop %v1572
        %v1581 = vrcp.pop %v1573
        %v1582 = vrcp.pop %v1574
        %v1583 = vmul.f32 %v1551, %v1575
        %v1584 = vmul.f32 %v1552, %v1576
        %v1585 = vmul.f32 %v1553, %v1577
        %v1586 = vmul.f32 %v1554, %v1578
        %v1587 = vmul.f32 %v1555, %v1579
        %v1588 = vmul.f32 %v1556, %v1580
        %v1589 = vmul.f32 %v1557, %v1581
        %v1590 = vmul.f32 %v1558, %v1582
        %v1591 = vsub.f32 %v1511, %v1583
        %v1592 = vsub.f32 %v1512, %v1584
        %v1593 = vsub.f32 %v1513, %v1585
        %v1594 = vsub.f32 %v1514, %v1586
        %v1595 = vsub.f32 %v1515, %v1587
        %v1596 = vsub.f32 %v1516, %v1588
        %v1597 = vsub.f32 %v1517, %v1589
        %v1598 = vsub.f32 %v1518, %v1590
        %v1599 = vmul.f32 %v1591, %v552
        %v1600 = vmul.f32 %v1592, %v556
        %v1601 = vmul.f32 %v1593, %v552
        %v1602 = vmul.f32 %v1594, %v556
        %v1603 = vmul.f32 %v1595, %v552
        %v1604 = vmul.f32 %v1596, %v556
        %v1605 = vmul.f32 %v1597, %v552
        %v1606 = vmul.f32 %v1598, %v556
        %v1607 = vld [vmem:[%s7] sm:$0xff]
        %v1608 = vld [vmem:[%s7 + $0x8] sm:$0xff]
        %v1609 = vld [vmem:[%s7 + $0x10] sm:$0xff]
        %v1610 = vld [vmem:[%s7 + $0x18] sm:$0xff]
        %v1611 = vld [vmem:[%s2] sm:$0xff]
        %v1612 = vld [vmem:[%s2 + $0x8] sm:$0xff]
        %v1613 = vld [vmem:[%s2 + $0x10] sm:$0xff]
        %v1614 = vld [vmem:[%s2 + $0x18] sm:$0xff]
        %v1615 = vld [vmem:[%s2 + $0x20] sm:$0xff]
        %v1616 = vld [vmem:[%s2 + $0x28] sm:$0xff]
        %v1617 = vld [vmem:[%s2 + $0x30] sm:$0xff]
        %v1618 = vld [vmem:[%s2 + $0x38] sm:$0xff]
        %v1619 = vmin.f32 %v1611, 30.0
        %v1620 = vmin.f32 %v1612, 30.0
        %v1621 = vmin.f32 %v1613, 30.0
        %v1622 = vmin.f32 %v1614, 30.0
        %v1623 = vmin.f32 %v1615, 30.0
        %v1624 = vmin.f32 %v1616, 30.0
        %v1625 = vmin.f32 %v1617, 30.0
        %v1626 = vmin.f32 %v1618, 30.0
        %v1627 = vmul.f32 %v1619, 1.442695
        %v1628 = vpow.pop %v1627
        %v1629 = vmul.f32 %v1620, 1.442695
        %v1630 = vpow.pop %v1629
        %v1631 = vmul.f32 %v1621, 1.442695
        %v1632 = vpow.pop %v1631
        %v1633 = vmul.f32 %v1622, 1.442695
        %v1634 = vpow.pop %v1633
        %v1635 = vmul.f32 %v1623, 1.442695
        %v1636 = vpow.pop %v1635
        %v1637 = vmul.f32 %v1624, 1.442695
        %v1638 = vpow.pop %v1637
        %v1639 = vmul.f32 %v1625, 1.442695
        %v1640 = vpow.pop %v1639
        %v1641 = vmul.f32 %v1626, 1.442695
        %v1642 = vpow.pop %v1641
        %v1643 = vadd.f32 %v1628, 1.0
        %v1644 = vadd.f32 %v1630, 1.0
        %v1645 = vadd.f32 %v1632, 1.0
        %v1646 = vadd.f32 %v1634, 1.0
        %v1647 = vadd.f32 %v1636, 1.0
        %v1648 = vadd.f32 %v1638, 1.0
        %v1649 = vadd.f32 %v1640, 1.0
        %v1650 = vadd.f32 %v1642, 1.0
        %v1651 = vadd.f32 %v1611, %v1611
        %v1652 = vadd.f32 %v1612, %v1612
        %v1653 = vadd.f32 %v1613, %v1613
        %v1654 = vadd.f32 %v1614, %v1614
        %v1655 = vadd.f32 %v1615, %v1615
        %v1656 = vadd.f32 %v1616, %v1616
        %v1657 = vadd.f32 %v1617, %v1617
        %v1658 = vadd.f32 %v1618, %v1618
        %v1659 = vmul.f32 %v1643, %v1643
        %v1660 = vmul.f32 %v1644, %v1644
        %v1661 = vmul.f32 %v1645, %v1645
        %v1662 = vmul.f32 %v1646, %v1646
        %v1663 = vmul.f32 %v1647, %v1647
        %v1664 = vmul.f32 %v1648, %v1648
        %v1665 = vmul.f32 %v1649, %v1649
        %v1666 = vmul.f32 %v1650, %v1650
        %v1667 = vadd.f32 %v1659, 1.0
        %v1668 = vadd.f32 %v1660, 1.0
        %v1669 = vadd.f32 %v1661, 1.0
        %v1670 = vadd.f32 %v1662, 1.0
        %v1671 = vadd.f32 %v1663, 1.0
        %v1672 = vadd.f32 %v1664, 1.0
        %v1673 = vadd.f32 %v1665, 1.0
        %v1674 = vadd.f32 %v1666, 1.0
        %v1675 = vrcp.pop %v1667
        %v1676 = vrcp.pop %v1668
        %v1677 = vrcp.pop %v1669
        %v1678 = vrcp.pop %v1670
        %v1679 = vrcp.pop %v1671
        %v1680 = vrcp.pop %v1672
        %v1681 = vrcp.pop %v1673
        %v1682 = vrcp.pop %v1674
        %v1683 = vmul.f32 %v1651, %v1675
        %v1684 = vmul.f32 %v1652, %v1676
        %v1685 = vmul.f32 %v1653, %v1677
        %v1686 = vmul.f32 %v1654, %v1678
        %v1687 = vmul.f32 %v1655, %v1679
        %v1688 = vmul.f32 %v1656, %v1680
        %v1689 = vmul.f32 %v1657, %v1681
        %v1690 = vmul.f32 %v1658, %v1682
        %v1691 = vsub.f32 %v1611, %v1683
        %v1692 = vsub.f32 %v1612, %v1684
        %v1693 = vsub.f32 %v1613, %v1685
        %v1694 = vsub.f32 %v1614, %v1686
        %v1695 = vsub.f32 %v1615, %v1687
        %v1696 = vsub.f32 %v1616, %v1688
        %v1697 = vsub.f32 %v1617, %v1689
        %v1698 = vsub.f32 %v1618, %v1690
        %1699 = vset.pattern.permute.xlu0 6
        %1700 = vperm.xlu0 %1699, %v534
        %v1701 = vpop.permute.xlu0 %1700
        %1703 = vset.pattern.permute.xlu0 6
        %1704 = vperm.xlu0 %1703, %v535
        %v1705 = vpop.permute.xlu0 %1704
        %1707 = vset.pattern.permute.xlu0 6
        %1708 = vperm.xlu0 %1707, %v536
        %v1709 = vpop.permute.xlu0 %1708
        %1711 = vset.pattern.permute.xlu0 6
        %1712 = vperm.xlu0 %1711, %v537
        %v1713 = vpop.permute.xlu0 %1712
        %vm1715 = vcmask 523264
        %v1717 = vsel %vm1715, %v1607, 0
        %v1720 = vsel %vm1715, %v1608, 0
        %v1723 = vsel %vm1715, %v1609, 0
        %v1726 = vsel %vm1715, %v1610, 0
        %1728 = vmatprep.subr.mxu0 0.0
        %1729 = vmatpush1.msra.mxu0 %v1691
        %1730 = vmatprep.subr.mxu0 0.0
        %1731 = vmatpush1.msra.mxu0 %v1692
        %1732 = vmatprep.subr.mxu0 0.0
        %1733 = vmatpush1.msra.mxu0 %v1693
        %1734 = vmatprep.subr.mxu0 0.0
        %1735 = vmatpush1.msra.mxu0 %v1694
        %1736 = vmatprep.subr.mxu0 0.0
        %1737 = vmatpush1.msra.mxu0 %v1695
        %1738 = vmatprep.subr.mxu0 0.0
        %1739 = vmatpush1.msra.mxu0 %v1696
        %1740 = vmatprep.subr.mxu0 0.0
        %1741 = vmatpush1.msra.mxu0 %v1697
        %1742 = vmatprep.subr.mxu0 0.0
        %1743 = vmatpush1.msra.mxu0 %v1698
        %1744 = vmatprep.subr.mxu0 0.0
        %1745 = vmatpush1.msra.mxu0 0.0
        %1746 = vmatprep.subr.mxu0 0.0
        %1747 = vmatpush1.msra.mxu0 0.0
        %1748 = vmatprep.subr.mxu0 0.0
        %1749 = vmatpush1.msra.mxu0 0.0
        %1750 = vmatprep.subr.mxu0 0.0
        %1751 = vmatpush1.msra.mxu0 0.0
        %1752 = vmatprep.subr.mxu0 0.0
        %1753 = vmatpush1.msra.mxu0 0.0
        %1754 = vmatprep.subr.mxu0 0.0
        %1755 = vmatpush1.msra.mxu0 0.0
        %1756 = vmatprep.subr.mxu0 0.0
        %1757 = vmatpush1.msra.mxu0 0.0
        %1758 = vmatprep.subr.mxu0 0.0
        %1759 = vmatpush1.msra.mxu0 0.0
        %1760 = vmatprep.subr.mxu0 0.0
        %1761 = vmatpush1.msra.mxu0 0.0
        %1762 = vmatprep.subr.mxu0 0.0
        %1763 = vmatpush1.msra.mxu0 0.0
        %1764 = vmatprep.subr.mxu0 0.0
        %1765 = vmatpush1.msra.mxu0 0.0
        %1766 = vmatprep.subr.mxu0 0.0
        %1767 = vmatpush1.msra.mxu0 0.0
        %1768 = vmatprep.subr.mxu0 0.0
        %1769 = vmatpush1.msra.mxu0 0.0
        %1770 = vmatprep.subr.mxu0 0.0
        %1771 = vmatpush1.msra.mxu0 0.0
        %1772 = vmatprep.subr.mxu0 0.0
        %1773 = vmatpush1.msra.mxu0 0.0
        %1774 = vmatprep.subr.mxu0 0.0
        %1775 = vmatpush1.msra.mxu0 0.0
        %1776 = vmatprep.subr.mxu0 0.0
        %1777 = vmatpush1.msra.mxu0 0.0
        %1778 = vmatprep.subr.mxu0 0.0
        %1779 = vmatpush1.msra.mxu0 0.0
        %1780 = vmatprep.subr.mxu0 0.0
        %1781 = vmatpush1.msra.mxu0 0.0
        %1782 = vmatprep.subr.mxu0 0.0
        %1783 = vmatpush1.msra.mxu0 0.0
        %1784 = vmatprep.subr.mxu0 0.0
        %1785 = vmatpush1.msra.mxu0 0.0
        %1786 = vmatprep.subr.mxu0 0.0
        %1787 = vmatpush1.msra.mxu0 0.0
        %1788 = vmatprep.subr.mxu0 0.0
        %1789 = vmatpush1.msra.mxu0 0.0
        %1790 = vmatprep.subr.mxu0 0.0
        %1791 = vmatpush1.msra.mxu0 0.0
        %1792 = vmatprep.mubr.f32.mxu0 0.0
        %1793 = vmatmul.mubr.f32.gmra.mrb[0].mxu0 %v1717
        %v1794 = vpop.f32.mrb[0].mxu0
        %v1795 = vadd.f32 %v1701, %v1794
        %v1796 = vpop.f32.mrb[0].mxu0
        %1797 = vmatprep.mubr.f32.mxu0 0.0
        %1798 = vmatmul.mubr.f32.gmra.mrb[0].mxu0 %v1720
        %v1799 = vpop.f32.mrb[0].mxu0
        %v1800 = vadd.f32 %v1705, %v1799
        %v1801 = vpop.f32.mrb[0].mxu0
        %1802 = vmatprep.mubr.f32.mxu0 0.0
        %1803 = vmatmul.mubr.f32.gmra.mrb[0].mxu0 %v1723
        %v1804 = vpop.f32.mrb[0].mxu0
        %v1805 = vadd.f32 %v1709, %v1804
        %v1806 = vpop.f32.mrb[0].mxu0
        %1807 = vmatprep.mubr.f32.mxu0 0.0
        %1808 = vmatmul.mubr.f32.gmra.mrb[0].mxu0 %v1726
        %v1809 = vpop.f32.mrb[0].mxu0
        %v1810 = vadd.f32 %v1713, %v1809
        %v1811 = vpop.f32.mrb[0].mxu0
        %1812 = vdwg.mxu0
        %v1814 = vsel %vm1360, %v1795, 0
        %v1817 = vsel %vm1360, %v1800, 0
        %v1820 = vsel %vm1360, %v1805, 0
        %v1823 = vsel %vm1360, %v1810, 0
        %1825 = vmatprep.subr.mxu0 %v1388
        %1826 = vmatpush1.msra.mxu0 %v1386
        %1827 = vmatprep.subr.mxu0 0.0
        %1828 = vmatpush1.msra.mxu0 0.0
        %1829 = vmatprep.subr.mxu0 0.0
        %1830 = vmatpush1.msra.mxu0 0.0
        %1831 = vmatprep.subr.mxu0 0.0
        %1832 = vmatpush1.msra.mxu0 0.0
        %1833 = vmatprep.subr.mxu0 0.0
        %1834 = vmatpush1.msra.mxu0 0.0
        %1835 = vmatprep.subr.mxu0 0.0
        %1836 = vmatpush1.msra.mxu0 0.0
        %1837 = vmatprep.subr.mxu0 0.0
        %1838 = vmatpush1.msra.mxu0 0.0
        %1839 = vmatprep.subr.mxu0 0.0
        %1840 = vmatpush1.msra.mxu0 0.0
        %1841 = vmatprep.subr.mxu0 0.0
        %1842 = vmatpush1.msra.mxu0 0.0
        %1843 = vmatprep.subr.mxu0 0.0
        %1844 = vmatpush1.msra.mxu0 0.0
        %1845 = vmatprep.subr.mxu0 0.0
        %1846 = vmatpush1.msra.mxu0 0.0
        %1847 = vmatprep.subr.mxu0 0.0
        %1848 = vmatpush1.msra.mxu0 0.0
        %1849 = vmatprep.subr.mxu0 0.0
        %1850 = vmatpush1.msra.mxu0 0.0
        %1851 = vmatprep.subr.mxu0 0.0
        %1852 = vmatpush1.msra.mxu0 0.0
        %1853 = vmatprep.subr.mxu0 0.0
        %1854 = vmatpush1.msra.mxu0 0.0
        %1855 = vmatprep.subr.mxu0 0.0
        %1856 = vmatpush1.msra.mxu0 0.0
        %1857 = vmatprep.subr.mxu0 0.0
        %1858 = vmatpush1.msra.mxu0 0.0
        %1859 = vmatprep.subr.mxu0 0.0
        %1860 = vmatpush1.msra.mxu0 0.0
        %1861 = vmatprep.subr.mxu0 0.0
        %1862 = vmatpush1.msra.mxu0 0.0
        %1863 = vmatprep.subr.mxu0 0.0
        %1864 = vmatpush1.msra.mxu0 0.0
        %1865 = vmatprep.subr.mxu0 0.0
        %1866 = vmatpush1.msra.mxu0 0.0
        %1867 = vmatprep.subr.mxu0 0.0
        %1868 = vmatpush1.msra.mxu0 0.0
        %1869 = vmatprep.subr.mxu0 0.0
        %1870 = vmatpush1.msra.mxu0 0.0
        %1871 = vmatprep.subr.mxu0 0.0
        %1872 = vmatpush1.msra.mxu0 0.0
        %1873 = vmatprep.subr.mxu0 0.0
        %1874 = vmatpush1.msra.mxu0 0.0
        %1875 = vmatprep.subr.mxu0 0.0
        %1876 = vmatpush1.msra.mxu0 0.0
        %1877 = vmatprep.subr.mxu0 0.0
        %1878 = vmatpush1.msra.mxu0 0.0
        %1879 = vmatprep.subr.mxu0 0.0
        %1880 = vmatpush1.msra.mxu0 0.0
        %1881 = vmatprep.subr.mxu0 0.0
        %1882 = vmatpush1.msra.mxu0 0.0
        %1883 = vmatprep.subr.mxu0 0.0
        %1884 = vmatpush1.msra.mxu0 0.0
        %1885 = vmatprep.subr.mxu0 0.0
        %1886 = vmatpush1.msra.mxu0 0.0
        %1887 = vmatprep.subr.mxu0 0.0
        %1888 = vmatpush1.msra.mxu0 0.0
        %1889 = vmatprep.mubr.f32.mxu0 0.0
        %1890 = vmatmul.mubr.f32.gmra.mrb[0].mxu0 %v1814
        %v1891 = vpop.f32.mrb[0].mxu0
        %v1892 = vadd.f32 0.0, %v1891
        %v1893 = vpop.f32.mrb[0].mxu0
        %v1894 = vadd.f32 0.0, %v1893
        %1895 = vmatprep.mubr.f32.mxu0 0.0
        %1896 = vmatmul.mubr.f32.gmra.mrb[0].mxu0 %v1817
        %v1897 = vpop.f32.mrb[0].mxu0
        %v1898 = vadd.f32 0.0, %v1897
        %v1899 = vpop.f32.mrb[0].mxu0
        %v1900 = vadd.f32 0.0, %v1899
        %1901 = vmatprep.mubr.f32.mxu0 0.0
        %1902 = vmatmul.mubr.f32.gmra.mrb[0].mxu0 %v1820
        %v1903 = vpop.f32.mrb[0].mxu0
        %v1904 = vadd.f32 0.0, %v1903
        %v1905 = vpop.f32.mrb[0].mxu0
        %v1906 = vadd.f32 0.0, %v1905
        %1907 = vmatprep.mubr.f32.mxu0 0.0
        %1908 = vmatmul.mubr.f32.gmra.mrb[0].mxu0 %v1823
        %v1909 = vpop.f32.mrb[0].mxu0
        %v1910 = vadd.f32 0.0, %v1909
        %v1911 = vpop.f32.mrb[0].mxu0
        %v1912 = vadd.f32 0.0, %v1911
        %1913 = vdwg.mxu0
        %v1914 = vadd.f32 %v1599, %v1892
        %v1915 = vadd.f32 %v1600, %v1894
        %v1916 = vadd.f32 %v1601, %v1898
        %v1917 = vadd.f32 %v1602, %v1900
        %v1918 = vadd.f32 %v1603, %v1904
        %v1919 = vadd.f32 %v1604, %v1906
        %v1920 = vadd.f32 %v1605, %v1910
        %v1921 = vadd.f32 %v1606, %v1912
        %v1922 = vld [vmem:[%s6] sm:$0xff]
        %v1923 = vld [vmem:[%s6 + $0x8] sm:$0xff]
        %v1924 = vld [vmem:[%s6 + $0x10] sm:$0xff]
        %v1925 = vld [vmem:[%s6 + $0x18] sm:$0xff]
        %v1926 = vmul.f32 %v1914, %v552
        %v1927 = vmul.f32 %v1915, %v556
        %v1928 = vmul.f32 %v1916, %v552
        %v1929 = vmul.f32 %v1917, %v556
        %v1930 = vmul.f32 %v1918, %v552
        %v1931 = vmul.f32 %v1919, %v556
        %v1932 = vmul.f32 %v1920, %v552
        %v1933 = vmul.f32 %v1921, %v556
        %1934 = vrot.lane.b32.xlu0 %v1926, 1
        %v1935 = vpop.permute.xlu0 %1934
        %1936 = vrot.lane.b32.xlu0 %v1928, 1
        %v1937 = vpop.permute.xlu0 %1936
        %1938 = vrot.lane.b32.xlu0 %v1930, 1
        %v1939 = vpop.permute.xlu0 %1938
        %1940 = vrot.lane.b32.xlu0 %v1932, 1
        %v1941 = vpop.permute.xlu0 %1940
        %1942 = vrot.lane.b32.xlu0 %v1927, 1
        %v1943 = vpop.permute.xlu0 %1942
        %1944 = vrot.lane.b32.xlu0 %v1929, 1
        %v1945 = vpop.permute.xlu0 %1944
        %1946 = vrot.lane.b32.xlu0 %v1931, 1
        %v1947 = vpop.permute.xlu0 %1946
        %1948 = vrot.lane.b32.xlu0 %v1933, 1
        %v1949 = vpop.permute.xlu0 %1948
        %v1950 = vsel %vm591, %v1935, %v1943
        %v1951 = vsel %vm591, %v1937, %v1945
        %v1952 = vsel %vm591, %v1939, %v1947
        %v1953 = vsel %vm591, %v1941, %v1949
        %v1954 = vsel %vm591, %v1943, %v1935
        %v1955 = vsel %vm591, %v1945, %v1937
        %v1956 = vsel %vm591, %v1947, %v1939
        %v1957 = vsel %vm591, %v1949, %v1941
        %v1958 = vmul.f32 %v1954, %v613
        %v1959 = vmul.f32 %v1950, %v617
        %v1960 = vmul.f32 %v1955, %v613
        %v1961 = vmul.f32 %v1951, %v617
        %v1962 = vmul.f32 %v1956, %v613
        %v1963 = vmul.f32 %v1952, %v617
        %v1964 = vmul.f32 %v1957, %v613
        %v1965 = vmul.f32 %v1953, %v617
        %1966 = vrot.lane.b32.xlu0 %v1926, 127
        %v1967 = vpop.permute.xlu0 %1966
        %1968 = vrot.lane.b32.xlu0 %v1928, 127
        %v1969 = vpop.permute.xlu0 %1968
        %1970 = vrot.lane.b32.xlu0 %v1930, 127
        %v1971 = vpop.permute.xlu0 %1970
        %1972 = vrot.lane.b32.xlu0 %v1932, 127
        %v1973 = vpop.permute.xlu0 %1972
        %1974 = vrot.lane.b32.xlu0 %v1927, 127
        %v1975 = vpop.permute.xlu0 %1974
        %1976 = vrot.lane.b32.xlu0 %v1929, 127
        %v1977 = vpop.permute.xlu0 %1976
        %1978 = vrot.lane.b32.xlu0 %v1931, 127
        %v1979 = vpop.permute.xlu0 %1978
        %1980 = vrot.lane.b32.xlu0 %v1933, 127
        %v1981 = vpop.permute.xlu0 %1980
        %v1982 = vsel %vm642, %v1967, %v1975
        %v1983 = vsel %vm642, %v1969, %v1977
        %v1984 = vsel %vm642, %v1971, %v1979
        %v1985 = vsel %vm642, %v1973, %v1981
        %v1986 = vsel %vm642, %v1975, %v1967
        %v1987 = vsel %vm642, %v1977, %v1969
        %v1988 = vsel %vm642, %v1979, %v1971
        %v1989 = vsel %vm642, %v1981, %v1973
        %v1990 = vmul.f32 %v1982, %v664
        %v1991 = vmul.f32 %v1986, %v668
        %v1992 = vmul.f32 %v1983, %v664
        %v1993 = vmul.f32 %v1987, %v668
        %v1994 = vmul.f32 %v1984, %v664
        %v1995 = vmul.f32 %v1988, %v668
        %v1996 = vmul.f32 %v1985, %v664
        %v1997 = vmul.f32 %v1989, %v668
        %1998 = vset.pattern.permute.xlu0 3
        %1999 = vperm.xlu0 %1998, %v534
        %v2000 = vpop.permute.xlu0 %1999
        %2002 = vset.pattern.permute.xlu0 3
        %2003 = vperm.xlu0 %2002, %v535
        %v2004 = vpop.permute.xlu0 %2003
        %2006 = vset.pattern.permute.xlu0 3
        %2007 = vperm.xlu0 %2006, %v536
        %v2008 = vpop.permute.xlu0 %2007
        %2010 = vset.pattern.permute.xlu0 3
        %2011 = vperm.xlu0 %2010, %v537
        %v2012 = vpop.permute.xlu0 %2011
        %v2015 = vsel %vm677, %v1922, 0
        %v2018 = vsel %vm677, %v1923, 0
        %v2021 = vsel %vm677, %v1924, 0
        %v2024 = vsel %vm677, %v1925, 0
        %2026 = vmatprep.subr.mxu0 %v1959
        %2027 = vmatpush1.msra.mxu0 %v1958
        %2028 = vmatprep.subr.mxu0 %v1961
        %2029 = vmatpush1.msra.mxu0 %v1960
        %2030 = vmatprep.subr.mxu0 %v1963
        %2031 = vmatpush1.msra.mxu0 %v1962
        %2032 = vmatprep.subr.mxu0 %v1965
        %2033 = vmatpush1.msra.mxu0 %v1964
        %2034 = vmatprep.subr.mxu0 %v1927
        %2035 = vmatpush1.msra.mxu0 %v1926
        %2036 = vmatprep.subr.mxu0 %v1929
        %2037 = vmatpush1.msra.mxu0 %v1928
        %2038 = vmatprep.subr.mxu0 %v1931
        %2039 = vmatpush1.msra.mxu0 %v1930
        %2040 = vmatprep.subr.mxu0 %v1933
        %2041 = vmatpush1.msra.mxu0 %v1932
        %2042 = vmatprep.subr.mxu0 %v1991
        %2043 = vmatpush1.msra.mxu0 %v1990
        %2044 = vmatprep.subr.mxu0 %v1993
        %2045 = vmatpush1.msra.mxu0 %v1992
        %2046 = vmatprep.subr.mxu0 %v1995
        %2047 = vmatpush1.msra.mxu0 %v1994
        %2048 = vmatprep.subr.mxu0 %v1997
        %2049 = vmatpush1.msra.mxu0 %v1996
        %2050 = vmatprep.subr.mxu0 0.0
        %2051 = vmatpush1.msra.mxu0 0.0
        %2052 = vmatprep.subr.mxu0 0.0
        %2053 = vmatpush1.msra.mxu0 0.0
        %2054 = vmatprep.subr.mxu0 0.0
        %2055 = vmatpush1.msra.mxu0 0.0
        %2056 = vmatprep.subr.mxu0 0.0
        %2057 = vmatpush1.msra.mxu0 0.0
        %2058 = vmatprep.subr.mxu0 0.0
        %2059 = vmatpush1.msra.mxu0 0.0
        %2060 = vmatprep.subr.mxu0 0.0
        %2061 = vmatpush1.msra.mxu0 0.0
        %2062 = vmatprep.subr.mxu0 0.0
        %2063 = vmatpush1.msra.mxu0 0.0
        %2064 = vmatprep.subr.mxu0 0.0
        %2065 = vmatpush1.msra.mxu0 0.0
        %2066 = vmatprep.subr.mxu0 0.0
        %2067 = vmatpush1.msra.mxu0 0.0
        %2068 = vmatprep.subr.mxu0 0.0
        %2069 = vmatpush1.msra.mxu0 0.0
        %2070 = vmatprep.subr.mxu0 0.0
        %2071 = vmatpush1.msra.mxu0 0.0
        %2072 = vmatprep.subr.mxu0 0.0
        %2073 = vmatpush1.msra.mxu0 0.0
        %2074 = vmatprep.subr.mxu0 0.0
        %2075 = vmatpush1.msra.mxu0 0.0
        %2076 = vmatprep.subr.mxu0 0.0
        %2077 = vmatpush1.msra.mxu0 0.0
        %2078 = vmatprep.subr.mxu0 0.0
        %2079 = vmatpush1.msra.mxu0 0.0
        %2080 = vmatprep.subr.mxu0 0.0
        %2081 = vmatpush1.msra.mxu0 0.0
        %2082 = vmatprep.subr.mxu0 0.0
        %2083 = vmatpush1.msra.mxu0 0.0
        %2084 = vmatprep.subr.mxu0 0.0
        %2085 = vmatpush1.msra.mxu0 0.0
        %2086 = vmatprep.subr.mxu0 0.0
        %2087 = vmatpush1.msra.mxu0 0.0
        %2088 = vmatprep.subr.mxu0 0.0
        %2089 = vmatpush1.msra.mxu0 0.0
        %2090 = vmatprep.mubr.f32.mxu0 0.0
        %2091 = vmatmul.mubr.f32.gmra.mrb[0].mxu0 %v2015
        %v2092 = vpop.f32.mrb[0].mxu0
        %v2093 = vadd.f32 %v2000, %v2092
        %v2094 = vpop.f32.mrb[0].mxu0
        %v2095 = vadd.f32 %v2000, %v2094
        %2096 = vmatprep.mubr.f32.mxu0 0.0
        %2097 = vmatmul.mubr.f32.gmra.mrb[0].mxu0 %v2018
        %v2098 = vpop.f32.mrb[0].mxu0
        %v2099 = vadd.f32 %v2004, %v2098
        %v2100 = vpop.f32.mrb[0].mxu0
        %v2101 = vadd.f32 %v2004, %v2100
        %2102 = vmatprep.mubr.f32.mxu0 0.0
        %2103 = vmatmul.mubr.f32.gmra.mrb[0].mxu0 %v2021
        %v2104 = vpop.f32.mrb[0].mxu0
        %v2105 = vadd.f32 %v2008, %v2104
        %v2106 = vpop.f32.mrb[0].mxu0
        %v2107 = vadd.f32 %v2008, %v2106
        %2108 = vmatprep.mubr.f32.mxu0 0.0
        %2109 = vmatmul.mubr.f32.gmra.mrb[0].mxu0 %v2024
        %v2110 = vpop.f32.mrb[0].mxu0
        %v2111 = vadd.f32 %v2012, %v2110
        %v2112 = vpop.f32.mrb[0].mxu0
        %v2113 = vadd.f32 %v2012, %v2112
        %2114 = vdwg.mxu0
        %v2115 = vmul.f32 %v2093, %v2093
        %v2116 = vmul.f32 %v2095, %v2095
        %v2117 = vmul.f32 %v2099, %v2099
        %v2118 = vmul.f32 %v2101, %v2101
        %v2119 = vmul.f32 %v2105, %v2105
        %v2120 = vmul.f32 %v2107, %v2107
        %v2121 = vmul.f32 %v2111, %v2111
        %v2122 = vmul.f32 %v2113, %v2113
        %2123 = vmatprep.subr.mxu0 0.0
        %2124 = vmatpush1.msra.mxu0 %v497
        %2125 = vmatprep.subr.mxu0 0.0
        %2126 = vmatpush1.msra.mxu0 %v498
        %2127 = vmatprep.subr.mxu0 0.0
        %2128 = vmatpush1.msra.mxu0 %v499
        %2129 = vmatprep.subr.mxu0 0.0
        %2130 = vmatpush1.msra.mxu0 %v500
        %2131 = vmatprep.subr.mxu0 0.0
        %2132 = vmatpush1.msra.mxu0 %v501
        %2133 = vmatprep.subr.mxu0 0.0
        %2134 = vmatpush1.msra.mxu0 %v502
        %2135 = vmatprep.subr.mxu0 0.0
        %2136 = vmatpush1.msra.mxu0 %v503
        %2137 = vmatprep.subr.mxu0 0.0
        %2138 = vmatpush1.msra.mxu0 %v504
        %2139 = vmatprep.subr.mxu0 0.0
        %2140 = vmatpush1.msra.mxu0 %v505
        %2141 = vmatprep.subr.mxu0 0.0
        %2142 = vmatpush1.msra.mxu0 %v506
        %2143 = vmatprep.subr.mxu0 0.0
        %2144 = vmatpush1.msra.mxu0 %v507
        %2145 = vmatprep.subr.mxu0 0.0
        %2146 = vmatpush1.msra.mxu0 %v508
        %2147 = vmatprep.subr.mxu0 0.0
        %2148 = vmatpush1.msra.mxu0 %v509
        %2149 = vmatprep.subr.mxu0 0.0
        %2150 = vmatpush1.msra.mxu0 %v510
        %2151 = vmatprep.subr.mxu0 0.0
        %2152 = vmatpush1.msra.mxu0 %v511
        %2153 = vmatprep.subr.mxu0 0.0
        %2154 = vmatpush1.msra.mxu0 %v512
        %2155 = vmatprep.subr.mxu0 0.0
        %2156 = vmatpush1.msra.mxu0 %v513
        %2157 = vmatprep.subr.mxu0 0.0
        %2158 = vmatpush1.msra.mxu0 %v514
        %2159 = vmatprep.subr.mxu0 0.0
        %2160 = vmatpush1.msra.mxu0 %v515
        %2161 = vmatprep.subr.mxu0 0.0
        %2162 = vmatpush1.msra.mxu0 %v516
        %2163 = vmatprep.subr.mxu0 0.0
        %2164 = vmatpush1.msra.mxu0 %v517
        %2165 = vmatprep.subr.mxu0 0.0
        %2166 = vmatpush1.msra.mxu0 %v518
        %2167 = vmatprep.subr.mxu0 0.0
        %2168 = vmatpush1.msra.mxu0 %v519
        %2169 = vmatprep.subr.mxu0 0.0
        %2170 = vmatpush1.msra.mxu0 %v520
        %2171 = vmatprep.subr.mxu0 0.0
        %2172 = vmatpush1.msra.mxu0 %v521
        %2173 = vmatprep.subr.mxu0 0.0
        %2174 = vmatpush1.msra.mxu0 %v522
        %2175 = vmatprep.subr.mxu0 0.0
        %2176 = vmatpush1.msra.mxu0 %v523
        %2177 = vmatprep.subr.mxu0 0.0
        %2178 = vmatpush1.msra.mxu0 %v524
        %2179 = vmatprep.subr.mxu0 0.0
        %2180 = vmatpush1.msra.mxu0 %v525
        %2181 = vmatprep.subr.mxu0 0.0
        %2182 = vmatpush1.msra.mxu0 %v526
        %2183 = vmatprep.subr.mxu0 0.0
        %2184 = vmatpush1.msra.mxu0 %v527
        %2185 = vmatprep.subr.mxu0 0.0
        %2186 = vmatpush1.msra.mxu0 %v528
        %2187 = vmatprep.mubr.f32.mxu0 %v2095
        %2188 = vmatmul.mubr.f32.gmra.mrb[0].mxu0 %v2093
        %v2189 = vpop.f32.mrb[0].mxu0
        %v2190 = vadd.f32 0.0, %v2189
        %v2191 = vpop.f32.mrb[0].mxu0
        %2192 = vmatprep.mubr.f32.mxu0 %v2101
        %2193 = vmatmul.mubr.f32.gmra.mrb[0].mxu0 %v2099
        %v2194 = vpop.f32.mrb[0].mxu0
        %v2195 = vadd.f32 0.0, %v2194
        %v2196 = vpop.f32.mrb[0].mxu0
        %2197 = vmatprep.mubr.f32.mxu0 %v2107
        %2198 = vmatmul.mubr.f32.gmra.mrb[0].mxu0 %v2105
        %v2199 = vpop.f32.mrb[0].mxu0
        %v2200 = vadd.f32 0.0, %v2199
        %v2201 = vpop.f32.mrb[0].mxu0
        %2202 = vmatprep.mubr.f32.mxu0 %v2113
        %2203 = vmatmul.mubr.f32.gmra.mrb[0].mxu0 %v2111
        %v2204 = vpop.f32.mrb[0].mxu0
        %v2205 = vadd.f32 0.0, %v2204
        %v2206 = vpop.f32.mrb[0].mxu0
        %2207 = vmatprep.mubr.f32.mxu0 %v2116
        %2208 = vmatmul.mubr.f32.gmra.mrb[0].mxu0 %v2115
        %v2209 = vpop.f32.mrb[0].mxu0
        %v2210 = vadd.f32 0.0, %v2209
        %v2211 = vpop.f32.mrb[0].mxu0
        %2212 = vmatprep.mubr.f32.mxu0 %v2118
        %2213 = vmatmul.mubr.f32.gmra.mrb[0].mxu0 %v2117
        %v2214 = vpop.f32.mrb[0].mxu0
        %v2215 = vadd.f32 0.0, %v2214
        %v2216 = vpop.f32.mrb[0].mxu0
        %2217 = vmatprep.mubr.f32.mxu0 %v2120
        %2218 = vmatmul.mubr.f32.gmra.mrb[0].mxu0 %v2119
        %v2219 = vpop.f32.mrb[0].mxu0
        %v2220 = vadd.f32 0.0, %v2219
        %v2221 = vpop.f32.mrb[0].mxu0
        %2222 = vmatprep.mubr.f32.mxu0 %v2122
        %2223 = vmatmul.mubr.f32.gmra.mrb[0].mxu0 %v2121
        %v2224 = vpop.f32.mrb[0].mxu0
        %v2225 = vadd.f32 0.0, %v2224
        %v2226 = vpop.f32.mrb[0].mxu0
        %2227 = vdwg.mxu0
        %2228 = vmatprep.subr.mxu0 0.0
        %2229 = vmatpush1.msra.mxu0 %v2190
        %2230 = vmatprep.subr.mxu0 0.0
        %2231 = vmatpush1.msra.mxu0 %v2195
        %2232 = vmatprep.subr.mxu0 0.0
        %2233 = vmatpush1.msra.mxu0 %v2200
        %2234 = vmatprep.subr.mxu0 0.0
        %2235 = vmatpush1.msra.mxu0 %v2205
        %2236 = vmatprep.subr.mxu0 0.0
        %2237 = vmatpush1.msra.mxu0 0.0
        %2238 = vmatprep.subr.mxu0 0.0
        %2239 = vmatpush1.msra.mxu0 0.0
        %2240 = vmatprep.subr.mxu0 0.0
        %2241 = vmatpush1.msra.mxu0 0.0
        %2242 = vmatprep.subr.mxu0 0.0
        %2243 = vmatpush1.msra.mxu0 0.0
        %2244 = vmatprep.subr.mxu0 0.0
        %2245 = vmatpush1.msra.mxu0 0.0
        %2246 = vmatprep.subr.mxu0 0.0
        %2247 = vmatpush1.msra.mxu0 0.0
        %2248 = vmatprep.subr.mxu0 0.0
        %2249 = vmatpush1.msra.mxu0 0.0
        %2250 = vmatprep.subr.mxu0 0.0
        %2251 = vmatpush1.msra.mxu0 0.0
        %2252 = vmatprep.subr.mxu0 0.0
        %2253 = vmatpush1.msra.mxu0 0.0
        %2254 = vmatprep.subr.mxu0 0.0
        %2255 = vmatpush1.msra.mxu0 0.0
        %2256 = vmatprep.subr.mxu0 0.0
        %2257 = vmatpush1.msra.mxu0 0.0
        %2258 = vmatprep.subr.mxu0 0.0
        %2259 = vmatpush1.msra.mxu0 0.0
        %2260 = vmatprep.subr.mxu0 0.0
        %2261 = vmatpush1.msra.mxu0 0.0
        %2262 = vmatprep.subr.mxu0 0.0
        %2263 = vmatpush1.msra.mxu0 0.0
        %2264 = vmatprep.subr.mxu0 0.0
        %2265 = vmatpush1.msra.mxu0 0.0
        %2266 = vmatprep.subr.mxu0 0.0
        %2267 = vmatpush1.msra.mxu0 0.0
        %2268 = vmatprep.subr.mxu0 0.0
        %2269 = vmatpush1.msra.mxu0 0.0
        %2270 = vmatprep.subr.mxu0 0.0
        %2271 = vmatpush1.msra.mxu0 0.0
        %2272 = vmatprep.subr.mxu0 0.0
        %2273 = vmatpush1.msra.mxu0 0.0
        %2274 = vmatprep.subr.mxu0 0.0
        %2275 = vmatpush1.msra.mxu0 0.0
        %2276 = vmatprep.subr.mxu0 0.0
        %2277 = vmatpush1.msra.mxu0 0.0
        %2278 = vmatprep.subr.mxu0 0.0
        %2279 = vmatpush1.msra.mxu0 0.0
        %2280 = vmatprep.subr.mxu0 0.0
        %2281 = vmatpush1.msra.mxu0 0.0
        %2282 = vmatprep.subr.mxu0 0.0
        %2283 = vmatpush1.msra.mxu0 0.0
        %2284 = vmatprep.subr.mxu0 0.0
        %2285 = vmatpush1.msra.mxu0 0.0
        %2286 = vmatprep.subr.mxu0 0.0
        %2287 = vmatpush1.msra.mxu0 0.0
        %2288 = vmatprep.subr.mxu0 0.0
        %2289 = vmatpush1.msra.mxu0 0.0
        %2290 = vmatprep.subr.mxu0 0.0
        %2291 = vmatpush1.msra.mxu0 0.0
        %2292 = vmatprep.mubr.f32.mxu0 0.0
        %2293 = vmatmul.mubr.f32.gmra.mrb[0].mxu0 %v982
        %v2294 = vpop.f32.mrb[0].mxu0
        %v2295 = vadd.f32 0.0, %v2294
        %v2296 = vpop.f32.mrb[0].mxu0
        %2297 = vdwg.mxu0
        %v2298 = vmul.f32 %v2295, 0.001953125
        %2299 = vmatprep.subr.mxu0 0.0
        %2300 = vmatpush1.msra.mxu0 %v2210
        %2301 = vmatprep.subr.mxu0 0.0
        %2302 = vmatpush1.msra.mxu0 %v2215
        %2303 = vmatprep.subr.mxu0 0.0
        %2304 = vmatpush1.msra.mxu0 %v2220
        %2305 = vmatprep.subr.mxu0 0.0
        %2306 = vmatpush1.msra.mxu0 %v2225
        %2307 = vmatprep.subr.mxu0 0.0
        %2308 = vmatpush1.msra.mxu0 0.0
        %2309 = vmatprep.subr.mxu0 0.0
        %2310 = vmatpush1.msra.mxu0 0.0
        %2311 = vmatprep.subr.mxu0 0.0
        %2312 = vmatpush1.msra.mxu0 0.0
        %2313 = vmatprep.subr.mxu0 0.0
        %2314 = vmatpush1.msra.mxu0 0.0
        %2315 = vmatprep.subr.mxu0 0.0
        %2316 = vmatpush1.msra.mxu0 0.0
        %2317 = vmatprep.subr.mxu0 0.0
        %2318 = vmatpush1.msra.mxu0 0.0
        %2319 = vmatprep.subr.mxu0 0.0
        %2320 = vmatpush1.msra.mxu0 0.0
        %2321 = vmatprep.subr.mxu0 0.0
        %2322 = vmatpush1.msra.mxu0 0.0
        %2323 = vmatprep.subr.mxu0 0.0
        %2324 = vmatpush1.msra.mxu0 0.0
        %2325 = vmatprep.subr.mxu0 0.0
        %2326 = vmatpush1.msra.mxu0 0.0
        %2327 = vmatprep.subr.mxu0 0.0
        %2328 = vmatpush1.msra.mxu0 0.0
        %2329 = vmatprep.subr.mxu0 0.0
        %2330 = vmatpush1.msra.mxu0 0.0
        %2331 = vmatprep.subr.mxu0 0.0
        %2332 = vmatpush1.msra.mxu0 0.0
        %2333 = vmatprep.subr.mxu0 0.0
        %2334 = vmatpush1.msra.mxu0 0.0
        %2335 = vmatprep.subr.mxu0 0.0
        %2336 = vmatpush1.msra.mxu0 0.0
        %2337 = vmatprep.subr.mxu0 0.0
        %2338 = vmatpush1.msra.mxu0 0.0
        %2339 = vmatprep.subr.mxu0 0.0
        %2340 = vmatpush1.msra.mxu0 0.0
        %2341 = vmatprep.subr.mxu0 0.0
        %2342 = vmatpush1.msra.mxu0 0.0
        %2343 = vmatprep.subr.mxu0 0.0
        %2344 = vmatpush1.msra.mxu0 0.0
        %2345 = vmatprep.subr.mxu0 0.0
        %2346 = vmatpush1.msra.mxu0 0.0
        %2347 = vmatprep.subr.mxu0 0.0
        %2348 = vmatpush1.msra.mxu0 0.0
        %2349 = vmatprep.subr.mxu0 0.0
        %2350 = vmatpush1.msra.mxu0 0.0
        %2351 = vmatprep.subr.mxu0 0.0
        %2352 = vmatpush1.msra.mxu0 0.0
        %2353 = vmatprep.subr.mxu0 0.0
        %2354 = vmatpush1.msra.mxu0 0.0
        %2355 = vmatprep.subr.mxu0 0.0
        %2356 = vmatpush1.msra.mxu0 0.0
        %2357 = vmatprep.subr.mxu0 0.0
        %2358 = vmatpush1.msra.mxu0 0.0
        %2359 = vmatprep.subr.mxu0 0.0
        %2360 = vmatpush1.msra.mxu0 0.0
        %2361 = vmatprep.subr.mxu0 0.0
        %2362 = vmatpush1.msra.mxu0 0.0
        %2363 = vmatprep.mubr.f32.mxu0 0.0
        %2364 = vmatmul.mubr.f32.gmra.mrb[0].mxu0 %v982
        %v2365 = vpop.f32.mrb[0].mxu0
        %v2366 = vadd.f32 0.0, %v2365
        %v2367 = vpop.f32.mrb[0].mxu0
        %2368 = vdwg.mxu0
        %v2369 = vmul.f32 %v2366, 0.001953125
        %v2370 = vmul.f32 %v2298, %v2298
        %v2371 = vsub.f32 %v2369, %v2370
        %v2372 = vadd.f32 %v2371, 1e-05
        %v2373 = vrsqrt.pop %v2372
        %2374 = vmatprep.subr.mxu0 0.0
        %2375 = vmatpush1.msra.mxu0 %v2373
        %2376 = vmatprep.subr.mxu0 0.0
        %2377 = vmatpush1.msra.mxu0 0.0
        %2378 = vmatprep.subr.mxu0 0.0
        %2379 = vmatpush1.msra.mxu0 0.0
        %2380 = vmatprep.subr.mxu0 0.0
        %2381 = vmatpush1.msra.mxu0 0.0
        %2382 = vmatprep.subr.mxu0 0.0
        %2383 = vmatpush1.msra.mxu0 0.0
        %2384 = vmatprep.subr.mxu0 0.0
        %2385 = vmatpush1.msra.mxu0 0.0
        %2386 = vmatprep.subr.mxu0 0.0
        %2387 = vmatpush1.msra.mxu0 0.0
        %2388 = vmatprep.subr.mxu0 0.0
        %2389 = vmatpush1.msra.mxu0 0.0
        %2390 = vmatprep.subr.mxu0 0.0
        %2391 = vmatpush1.msra.mxu0 0.0
        %2392 = vmatprep.subr.mxu0 0.0
        %2393 = vmatpush1.msra.mxu0 0.0
        %2394 = vmatprep.subr.mxu0 0.0
        %2395 = vmatpush1.msra.mxu0 0.0
        %2396 = vmatprep.subr.mxu0 0.0
        %2397 = vmatpush1.msra.mxu0 0.0
        %2398 = vmatprep.subr.mxu0 0.0
        %2399 = vmatpush1.msra.mxu0 0.0
        %2400 = vmatprep.subr.mxu0 0.0
        %2401 = vmatpush1.msra.mxu0 0.0
        %2402 = vmatprep.subr.mxu0 0.0
        %2403 = vmatpush1.msra.mxu0 0.0
        %2404 = vmatprep.subr.mxu0 0.0
        %2405 = vmatpush1.msra.mxu0 0.0
        %2406 = vmatprep.subr.mxu0 0.0
        %2407 = vmatpush1.msra.mxu0 0.0
        %2408 = vmatprep.subr.mxu0 0.0
        %2409 = vmatpush1.msra.mxu0 0.0
        %2410 = vmatprep.subr.mxu0 0.0
        %2411 = vmatpush1.msra.mxu0 0.0
        %2412 = vmatprep.subr.mxu0 0.0
        %2413 = vmatpush1.msra.mxu0 0.0
        %2414 = vmatprep.subr.mxu0 0.0
        %2415 = vmatpush1.msra.mxu0 0.0
        %2416 = vmatprep.subr.mxu0 0.0
        %2417 = vmatpush1.msra.mxu0 0.0
        %2418 = vmatprep.subr.mxu0 0.0
        %2419 = vmatpush1.msra.mxu0 0.0
        %2420 = vmatprep.subr.mxu0 0.0
        %2421 = vmatpush1.msra.mxu0 0.0
        %2422 = vmatprep.subr.mxu0 0.0
        %2423 = vmatpush1.msra.mxu0 0.0
        %2424 = vmatprep.subr.mxu0 0.0
        %2425 = vmatpush1.msra.mxu0 0.0
        %2426 = vmatprep.subr.mxu0 0.0
        %2427 = vmatpush1.msra.mxu0 0.0
        %2428 = vmatprep.subr.mxu0 0.0
        %2429 = vmatpush1.msra.mxu0 0.0
        %2430 = vmatprep.subr.mxu0 0.0
        %2431 = vmatpush1.msra.mxu0 0.0
        %2432 = vmatprep.subr.mxu0 0.0
        %2433 = vmatpush1.msra.mxu0 0.0
        %2434 = vmatprep.subr.mxu0 0.0
        %2435 = vmatpush1.msra.mxu0 0.0
        %2436 = vmatprep.subr.mxu0 0.0
        %2437 = vmatpush1.msra.mxu0 0.0
        %2438 = vmatprep.mubr.f32.mxu0 0.0
        %2439 = vmatmul.mubr.f32.gmra.mrb[0].mxu0 %v1132
        %v2440 = vpop.f32.mrb[0].mxu0
        %v2441 = vadd.f32 0.0, %v2440
        %v2442 = vpop.f32.mrb[0].mxu0
        %2443 = vmatprep.mubr.f32.mxu0 0.0
        %2444 = vmatmul.mubr.f32.gmra.mrb[0].mxu0 %v1135
        %v2445 = vpop.f32.mrb[0].mxu0
        %v2446 = vadd.f32 0.0, %v2445
        %v2447 = vpop.f32.mrb[0].mxu0
        %2448 = vmatprep.mubr.f32.mxu0 0.0
        %2449 = vmatmul.mubr.f32.gmra.mrb[0].mxu0 %v1138
        %v2450 = vpop.f32.mrb[0].mxu0
        %v2451 = vadd.f32 0.0, %v2450
        %v2452 = vpop.f32.mrb[0].mxu0
        %2453 = vmatprep.mubr.f32.mxu0 0.0
        %2454 = vmatmul.mubr.f32.gmra.mrb[0].mxu0 %v1141
        %v2455 = vpop.f32.mrb[0].mxu0
        %v2456 = vadd.f32 0.0, %v2455
        %v2457 = vpop.f32.mrb[0].mxu0
        %2458 = vdwg.mxu0
        %2459 = vset.pattern.permute.xlu0 4
        %2460 = vperm.xlu0 %2459, %v534
        %v2461 = vpop.permute.xlu0 %2460
        %2463 = vset.pattern.permute.xlu0 4
        %2464 = vperm.xlu0 %2463, %v535
        %v2465 = vpop.permute.xlu0 %2464
        %2467 = vset.pattern.permute.xlu0 4
        %2468 = vperm.xlu0 %2467, %v536
        %v2469 = vpop.permute.xlu0 %2468
        %2471 = vset.pattern.permute.xlu0 4
        %2472 = vperm.xlu0 %2471, %v537
        %v2473 = vpop.permute.xlu0 %2472
        %v2475 = vmul.f32 %v2441, %v2461
        %v2476 = vmul.f32 %v2446, %v2465
        %v2477 = vmul.f32 %v2451, %v2469
        %v2478 = vmul.f32 %v2456, %v2473
        %v2479 = vmul.f32 %v2298, %v2373
        %2480 = vmatprep.subr.mxu0 0.0
        %2481 = vmatpush1.msra.mxu0 %v2479
        %2482 = vmatprep.subr.mxu0 0.0
        %2483 = vmatpush1.msra.mxu0 0.0
        %2484 = vmatprep.subr.mxu0 0.0
        %2485 = vmatpush1.msra.mxu0 0.0
        %2486 = vmatprep.subr.mxu0 0.0
        %2487 = vmatpush1.msra.mxu0 0.0
        %2488 = vmatprep.subr.mxu0 0.0
        %2489 = vmatpush1.msra.mxu0 0.0
        %2490 = vmatprep.subr.mxu0 0.0
        %2491 = vmatpush1.msra.mxu0 0.0
        %2492 = vmatprep.subr.mxu0 0.0
        %2493 = vmatpush1.msra.mxu0 0.0
        %2494 = vmatprep.subr.mxu0 0.0
        %2495 = vmatpush1.msra.mxu0 0.0
        %2496 = vmatprep.subr.mxu0 0.0
        %2497 = vmatpush1.msra.mxu0 0.0
        %2498 = vmatprep.subr.mxu0 0.0
        %2499 = vmatpush1.msra.mxu0 0.0
        %2500 = vmatprep.subr.mxu0 0.0
        %2501 = vmatpush1.msra.mxu0 0.0
        %2502 = vmatprep.subr.mxu0 0.0
        %2503 = vmatpush1.msra.mxu0 0.0
        %2504 = vmatprep.subr.mxu0 0.0
        %2505 = vmatpush1.msra.mxu0 0.0
        %2506 = vmatprep.subr.mxu0 0.0
        %2507 = vmatpush1.msra.mxu0 0.0
        %2508 = vmatprep.subr.mxu0 0.0
        %2509 = vmatpush1.msra.mxu0 0.0
        %2510 = vmatprep.subr.mxu0 0.0
        %2511 = vmatpush1.msra.mxu0 0.0
        %2512 = vmatprep.subr.mxu0 0.0
        %2513 = vmatpush1.msra.mxu0 0.0
        %2514 = vmatprep.subr.mxu0 0.0
        %2515 = vmatpush1.msra.mxu0 0.0
        %2516 = vmatprep.subr.mxu0 0.0
        %2517 = vmatpush1.msra.mxu0 0.0
        %2518 = vmatprep.subr.mxu0 0.0
        %2519 = vmatpush1.msra.mxu0 0.0
        %2520 = vmatprep.subr.mxu0 0.0
        %2521 = vmatpush1.msra.mxu0 0.0
        %2522 = vmatprep.subr.mxu0 0.0
        %2523 = vmatpush1.msra.mxu0 0.0
        %2524 = vmatprep.subr.mxu0 0.0
        %2525 = vmatpush1.msra.mxu0 0.0
        %2526 = vmatprep.subr.mxu0 0.0
        %2527 = vmatpush1.msra.mxu0 0.0
        %2528 = vmatprep.subr.mxu0 0.0
        %2529 = vmatpush1.msra.mxu0 0.0
        %2530 = vmatprep.subr.mxu0 0.0
        %2531 = vmatpush1.msra.mxu0 0.0
        %2532 = vmatprep.subr.mxu0 0.0
        %2533 = vmatpush1.msra.mxu0 0.0
        %2534 = vmatprep.subr.mxu0 0.0
        %2535 = vmatpush1.msra.mxu0 0.0
        %2536 = vmatprep.subr.mxu0 0.0
        %2537 = vmatpush1.msra.mxu0 0.0
        %2538 = vmatprep.subr.mxu0 0.0
        %2539 = vmatpush1.msra.mxu0 0.0
        %2540 = vmatprep.subr.mxu0 0.0
        %2541 = vmatpush1.msra.mxu0 0.0
        %2542 = vmatprep.subr.mxu0 0.0
        %2543 = vmatpush1.msra.mxu0 0.0
        %2544 = vmatprep.mubr.f32.mxu0 0.0
        %2545 = vmatmul.mubr.f32.gmra.mrb[0].mxu0 %v1132
        %v2546 = vpop.f32.mrb[0].mxu0
        %v2547 = vadd.f32 0.0, %v2546
        %v2548 = vpop.f32.mrb[0].mxu0
        %2549 = vmatprep.mubr.f32.mxu0 0.0
        %2550 = vmatmul.mubr.f32.gmra.mrb[0].mxu0 %v1135
        %v2551 = vpop.f32.mrb[0].mxu0
        %v2552 = vadd.f32 0.0, %v2551
        %v2553 = vpop.f32.mrb[0].mxu0
        %2554 = vmatprep.mubr.f32.mxu0 0.0
        %2555 = vmatmul.mubr.f32.gmra.mrb[0].mxu0 %v1138
        %v2556 = vpop.f32.mrb[0].mxu0
        %v2557 = vadd.f32 0.0, %v2556
        %v2558 = vpop.f32.mrb[0].mxu0
        %2559 = vmatprep.mubr.f32.mxu0 0.0
        %2560 = vmatmul.mubr.f32.gmra.mrb[0].mxu0 %v1141
        %v2561 = vpop.f32.mrb[0].mxu0
        %v2562 = vadd.f32 0.0, %v2561
        %v2563 = vpop.f32.mrb[0].mxu0
        %2564 = vdwg.mxu0
        %v2565 = vmul.f32 %v2547, %v2461
        %v2566 = vmul.f32 %v2552, %v2465
        %v2567 = vmul.f32 %v2557, %v2469
        %v2568 = vmul.f32 %v2562, %v2473
        %2569 = vset.pattern.permute.xlu0 5
        %2570 = vperm.xlu0 %2569, %v534
        %v2571 = vpop.permute.xlu0 %2570
        %2573 = vset.pattern.permute.xlu0 5
        %2574 = vperm.xlu0 %2573, %v535
        %v2575 = vpop.permute.xlu0 %2574
        %2577 = vset.pattern.permute.xlu0 5
        %2578 = vperm.xlu0 %2577, %v536
        %v2579 = vpop.permute.xlu0 %2578
        %2581 = vset.pattern.permute.xlu0 5
        %2582 = vperm.xlu0 %2581, %v537
        %v2583 = vpop.permute.xlu0 %2582
        %v2585 = vsub.f32 %v2571, %v2565
        %v2586 = vsub.f32 %v2575, %v2566
        %v2587 = vsub.f32 %v2579, %v2567
        %v2588 = vsub.f32 %v2583, %v2568
        %v2590 = vsel %vm1360, %v2475, 0
        %v2593 = vsel %vm1360, %v2476, 0
        %v2596 = vsel %vm1360, %v2477, 0
        %v2599 = vsel %vm1360, %v2478, 0
        %v2602 = vsel %vm1360, %v2585, 0
        %v2605 = vsel %vm1360, %v2586, 0
        %v2608 = vsel %vm1360, %v2587, 0
        %v2611 = vsel %vm1360, %v2588, 0
        %2613 = vmatprep.subr.mxu0 %v1388
        %2614 = vmatpush1.msra.mxu0 %v1386
        %2615 = vmatprep.subr.mxu0 0.0
        %2616 = vmatpush1.msra.mxu0 0.0
        %2617 = vmatprep.subr.mxu0 0.0
        %2618 = vmatpush1.msra.mxu0 0.0
        %2619 = vmatprep.subr.mxu0 0.0
        %2620 = vmatpush1.msra.mxu0 0.0
        %2621 = vmatprep.subr.mxu0 0.0
        %2622 = vmatpush1.msra.mxu0 0.0
        %2623 = vmatprep.subr.mxu0 0.0
        %2624 = vmatpush1.msra.mxu0 0.0
        %2625 = vmatprep.subr.mxu0 0.0
        %2626 = vmatpush1.msra.mxu0 0.0
        %2627 = vmatprep.subr.mxu0 0.0
        %2628 = vmatpush1.msra.mxu0 0.0
        %2629 = vmatprep.subr.mxu0 0.0
        %2630 = vmatpush1.msra.mxu0 0.0
        %2631 = vmatprep.subr.mxu0 0.0
        %2632 = vmatpush1.msra.mxu0 0.0
        %2633 = vmatprep.subr.mxu0 0.0
        %2634 = vmatpush1.msra.mxu0 0.0
        %2635 = vmatprep.subr.mxu0 0.0
        %2636 = vmatpush1.msra.mxu0 0.0
        %2637 = vmatprep.subr.mxu0 0.0
        %2638 = vmatpush1.msra.mxu0 0.0
        %2639 = vmatprep.subr.mxu0 0.0
        %2640 = vmatpush1.msra.mxu0 0.0
        %2641 = vmatprep.subr.mxu0 0.0
        %2642 = vmatpush1.msra.mxu0 0.0
        %2643 = vmatprep.subr.mxu0 0.0
        %2644 = vmatpush1.msra.mxu0 0.0
        %2645 = vmatprep.subr.mxu0 0.0
        %2646 = vmatpush1.msra.mxu0 0.0
        %2647 = vmatprep.subr.mxu0 0.0
        %2648 = vmatpush1.msra.mxu0 0.0
        %2649 = vmatprep.subr.mxu0 0.0
        %2650 = vmatpush1.msra.mxu0 0.0
        %2651 = vmatprep.subr.mxu0 0.0
        %2652 = vmatpush1.msra.mxu0 0.0
        %2653 = vmatprep.subr.mxu0 0.0
        %2654 = vmatpush1.msra.mxu0 0.0
        %2655 = vmatprep.subr.mxu0 0.0
        %2656 = vmatpush1.msra.mxu0 0.0
        %2657 = vmatprep.subr.mxu0 0.0
        %2658 = vmatpush1.msra.mxu0 0.0
        %2659 = vmatprep.subr.mxu0 0.0
        %2660 = vmatpush1.msra.mxu0 0.0
        %2661 = vmatprep.subr.mxu0 0.0
        %2662 = vmatpush1.msra.mxu0 0.0
        %2663 = vmatprep.subr.mxu0 0.0
        %2664 = vmatpush1.msra.mxu0 0.0
        %2665 = vmatprep.subr.mxu0 0.0
        %2666 = vmatpush1.msra.mxu0 0.0
        %2667 = vmatprep.subr.mxu0 0.0
        %2668 = vmatpush1.msra.mxu0 0.0
        %2669 = vmatprep.subr.mxu0 0.0
        %2670 = vmatpush1.msra.mxu0 0.0
        %2671 = vmatprep.subr.mxu0 0.0
        %2672 = vmatpush1.msra.mxu0 0.0
        %2673 = vmatprep.subr.mxu0 0.0
        %2674 = vmatpush1.msra.mxu0 0.0
        %2675 = vmatprep.subr.mxu0 0.0
        %2676 = vmatpush1.msra.mxu0 0.0
        %2677 = vmatprep.mubr.f32.mxu0 0.0
        %2678 = vmatmul.mubr.f32.gmra.mrb[0].mxu0 %v2590
        %v2679 = vpop.f32.mrb[0].mxu0
        %v2680 = vadd.f32 0.0, %v2679
        %v2681 = vpop.f32.mrb[0].mxu0
        %v2682 = vadd.f32 0.0, %v2681
        %2683 = vmatprep.mubr.f32.mxu0 0.0
        %2684 = vmatmul.mubr.f32.gmra.mrb[0].mxu0 %v2593
        %v2685 = vpop.f32.mrb[0].mxu0
        %v2686 = vadd.f32 0.0, %v2685
        %v2687 = vpop.f32.mrb[0].mxu0
        %v2688 = vadd.f32 0.0, %v2687
        %2689 = vmatprep.mubr.f32.mxu0 0.0
        %2690 = vmatmul.mubr.f32.gmra.mrb[0].mxu0 %v2596
        %v2691 = vpop.f32.mrb[0].mxu0
        %v2692 = vadd.f32 0.0, %v2691
        %v2693 = vpop.f32.mrb[0].mxu0
        %v2694 = vadd.f32 0.0, %v2693
        %2695 = vmatprep.mubr.f32.mxu0 0.0
        %2696 = vmatmul.mubr.f32.gmra.mrb[0].mxu0 %v2599
        %v2697 = vpop.f32.mrb[0].mxu0
        %v2698 = vadd.f32 0.0, %v2697
        %v2699 = vpop.f32.mrb[0].mxu0
        %v2700 = vadd.f32 0.0, %v2699
        %2701 = vmatprep.mubr.f32.mxu0 0.0
        %2702 = vmatmul.mubr.f32.gmra.mrb[0].mxu0 %v2602
        %v2703 = vpop.f32.mrb[0].mxu0
        %v2704 = vadd.f32 0.0, %v2703
        %v2705 = vpop.f32.mrb[0].mxu0
        %v2706 = vadd.f32 0.0, %v2705
        %2707 = vmatprep.mubr.f32.mxu0 0.0
        %2708 = vmatmul.mubr.f32.gmra.mrb[0].mxu0 %v2605
        %v2709 = vpop.f32.mrb[0].mxu0
        %v2710 = vadd.f32 0.0, %v2709
        %v2711 = vpop.f32.mrb[0].mxu0
        %v2712 = vadd.f32 0.0, %v2711
        %2713 = vmatprep.mubr.f32.mxu0 0.0
        %2714 = vmatmul.mubr.f32.gmra.mrb[0].mxu0 %v2608
        %v2715 = vpop.f32.mrb[0].mxu0
        %v2716 = vadd.f32 0.0, %v2715
        %v2717 = vpop.f32.mrb[0].mxu0
        %v2718 = vadd.f32 0.0, %v2717
        %2719 = vmatprep.mubr.f32.mxu0 0.0
        %2720 = vmatmul.mubr.f32.gmra.mrb[0].mxu0 %v2611
        %v2721 = vpop.f32.mrb[0].mxu0
        %v2722 = vadd.f32 0.0, %v2721
        %v2723 = vpop.f32.mrb[0].mxu0
        %v2724 = vadd.f32 0.0, %v2723
        %2725 = vdwg.mxu0
        %v2726 = vmul.f32 %v2093, %v2680
        %v2727 = vmul.f32 %v2095, %v2682
        %v2728 = vmul.f32 %v2099, %v2686
        %v2729 = vmul.f32 %v2101, %v2688
        %v2730 = vmul.f32 %v2105, %v2692
        %v2731 = vmul.f32 %v2107, %v2694
        %v2732 = vmul.f32 %v2111, %v2698
        %v2733 = vmul.f32 %v2113, %v2700
        %v2734 = vadd.f32 %v2726, %v2704
        %v2735 = vadd.f32 %v2727, %v2706
        %v2736 = vadd.f32 %v2728, %v2710
        %v2737 = vadd.f32 %v2729, %v2712
        %v2738 = vadd.f32 %v2730, %v2716
        %v2739 = vadd.f32 %v2731, %v2718
        %v2740 = vadd.f32 %v2732, %v2722
        %v2741 = vadd.f32 %v2733, %v2724
        %v2742 = vmin.f32 %v2734, 30.0
        %v2743 = vmin.f32 %v2735, 30.0
        %v2744 = vmin.f32 %v2736, 30.0
        %v2745 = vmin.f32 %v2737, 30.0
        %v2746 = vmin.f32 %v2738, 30.0
        %v2747 = vmin.f32 %v2739, 30.0
        %v2748 = vmin.f32 %v2740, 30.0
        %v2749 = vmin.f32 %v2741, 30.0
        %v2750 = vmul.f32 %v2742, 1.442695
        %v2751 = vpow.pop %v2750
        %v2752 = vmul.f32 %v2743, 1.442695
        %v2753 = vpow.pop %v2752
        %v2754 = vmul.f32 %v2744, 1.442695
        %v2755 = vpow.pop %v2754
        %v2756 = vmul.f32 %v2745, 1.442695
        %v2757 = vpow.pop %v2756
        %v2758 = vmul.f32 %v2746, 1.442695
        %v2759 = vpow.pop %v2758
        %v2760 = vmul.f32 %v2747, 1.442695
        %v2761 = vpow.pop %v2760
        %v2762 = vmul.f32 %v2748, 1.442695
        %v2763 = vpow.pop %v2762
        %v2764 = vmul.f32 %v2749, 1.442695
        %v2765 = vpow.pop %v2764
        %v2766 = vadd.f32 %v2751, 1.0
        %v2767 = vadd.f32 %v2753, 1.0
        %v2768 = vadd.f32 %v2755, 1.0
        %v2769 = vadd.f32 %v2757, 1.0
        %v2770 = vadd.f32 %v2759, 1.0
        %v2771 = vadd.f32 %v2761, 1.0
        %v2772 = vadd.f32 %v2763, 1.0
        %v2773 = vadd.f32 %v2765, 1.0
        %v2774 = vadd.f32 %v2734, %v2734
        %v2775 = vadd.f32 %v2735, %v2735
        %v2776 = vadd.f32 %v2736, %v2736
        %v2777 = vadd.f32 %v2737, %v2737
        %v2778 = vadd.f32 %v2738, %v2738
        %v2779 = vadd.f32 %v2739, %v2739
        %v2780 = vadd.f32 %v2740, %v2740
        %v2781 = vadd.f32 %v2741, %v2741
        %v2782 = vmul.f32 %v2766, %v2766
        %v2783 = vmul.f32 %v2767, %v2767
        %v2784 = vmul.f32 %v2768, %v2768
        %v2785 = vmul.f32 %v2769, %v2769
        %v2786 = vmul.f32 %v2770, %v2770
        %v2787 = vmul.f32 %v2771, %v2771
        %v2788 = vmul.f32 %v2772, %v2772
        %v2789 = vmul.f32 %v2773, %v2773
        %v2790 = vadd.f32 %v2782, 1.0
        %v2791 = vadd.f32 %v2783, 1.0
        %v2792 = vadd.f32 %v2784, 1.0
        %v2793 = vadd.f32 %v2785, 1.0
        %v2794 = vadd.f32 %v2786, 1.0
        %v2795 = vadd.f32 %v2787, 1.0
        %v2796 = vadd.f32 %v2788, 1.0
        %v2797 = vadd.f32 %v2789, 1.0
        %v2798 = vrcp.pop %v2790
        %v2799 = vrcp.pop %v2791
        %v2800 = vrcp.pop %v2792
        %v2801 = vrcp.pop %v2793
        %v2802 = vrcp.pop %v2794
        %v2803 = vrcp.pop %v2795
        %v2804 = vrcp.pop %v2796
        %v2805 = vrcp.pop %v2797
        %v2806 = vmul.f32 %v2774, %v2798
        %v2807 = vmul.f32 %v2775, %v2799
        %v2808 = vmul.f32 %v2776, %v2800
        %v2809 = vmul.f32 %v2777, %v2801
        %v2810 = vmul.f32 %v2778, %v2802
        %v2811 = vmul.f32 %v2779, %v2803
        %v2812 = vmul.f32 %v2780, %v2804
        %v2813 = vmul.f32 %v2781, %v2805
        %v2814 = vsub.f32 %v2734, %v2806
        %v2815 = vsub.f32 %v2735, %v2807
        %v2816 = vsub.f32 %v2736, %v2808
        %v2817 = vsub.f32 %v2737, %v2809
        %v2818 = vsub.f32 %v2738, %v2810
        %v2819 = vsub.f32 %v2739, %v2811
        %v2820 = vsub.f32 %v2740, %v2812
        %v2821 = vsub.f32 %v2741, %v2813
        %v2822 = vmul.f32 %v2814, %v552
        %v2823 = vmul.f32 %v2815, %v556
        %v2824 = vmul.f32 %v2816, %v552
        %v2825 = vmul.f32 %v2817, %v556
        %v2826 = vmul.f32 %v2818, %v552
        %v2827 = vmul.f32 %v2819, %v556
        %v2828 = vmul.f32 %v2820, %v552
        %v2829 = vmul.f32 %v2821, %v556
        %v2830 = vadd.f32 %v2822, %v835
        %v2831 = vadd.f32 %v2823, %v836
        %v2832 = vadd.f32 %v2824, %v837
        %v2833 = vadd.f32 %v2825, %v838
        %v2834 = vadd.f32 %v2826, %v839
        %v2835 = vadd.f32 %v2827, %v840
        %v2836 = vadd.f32 %v2828, %v841
        %v2837 = vadd.f32 %v2829, %v842
        %2838 = vst [vmem:[%s466] sm:$0xff] %v2830
        %2839 = vst [vmem:[%s466 + $0x8] sm:$0xff] %v2831
        %2840 = vst [vmem:[%s466 + $0x10] sm:$0xff] %v2832
        %2841 = vst [vmem:[%s466 + $0x18] sm:$0xff] %v2833
        %2842 = vst [vmem:[%s466 + $0x20] sm:$0xff] %v2834
        %2843 = vst [vmem:[%s466 + $0x28] sm:$0xff] %v2835
        %2844 = vst [vmem:[%s466 + $0x30] sm:$0xff] %v2836
        %2845 = vst [vmem:[%s466 + $0x38] sm:$0xff] %v2837
        %s2846 = sand.u32 %s284, 1
        %s2847 = scalar_lea.sflag [#allocation4], %s2846
        %s2848 = sand.u32 %s284, 1
        %s2849 = smul.addr %s2848, 64
        %s2850 = scalar_lea.vmem [#allocation3], %s2849
        // Predicated region
        $region88: #{tpu_custom_call.1} parent=82 // pred_check
          %p2851 = pneg %p294
        $region89: #{tpu_custom_call.1} parent=82 // pred_check_branch
          %2853 = sbr.rel (%p2851) target = $region91
        $region90: #{tpu_custom_call.1} parent=82 // pred_region
          %s2854 = smul.u32 2, %s25
          %s2856 = ssub.s32 1024, 1024
          %2857 = vsyncadd %s2847, %s2856
          %s2858 = smul.addr %s2854, 128
          %s2859 = scalar_lea.hbm %s11, %s2858
          %s2860 = sshll.u32 %s2850, 4
          %s2861 = int_to_ptr.vmem [resolvable:$true] %s2860
          %2866 = dma.vmem_to_hbm [thread:$0]  %s2861, 1024, %s2859, %s2847, 256, 512, 16
        $region91: #{tpu_custom_call.1} parent=82 // pred_fallthru
          _
      $region83: #{tpu_custom_call.1} parent=5 // pred_fallthru
        _
      %p2867 = scmp.le.s32.totalorder 2, %s20
      // Predicated region
      $region92: #{tpu_custom_call.1} parent=5 // pred_check
        %p2868 = pneg %p2867
      $region93: #{tpu_custom_call.1} parent=5 // pred_check_branch
        %2870 = sbr.rel (%p2868) target = $region95
      $region94: #{tpu_custom_call.1} parent=5 // pred_region
        %s2871 = ssub.s32 %s20, 2
        // Predicated region
        $region96: #{tpu_custom_call.1} parent=94 // pred_check
          %p2872 = pneg %p300
        $region97: #{tpu_custom_call.1} parent=94 // pred_check_branch
          %2874 = sbr.rel (%p2872) target = $region99
        $region98: #{tpu_custom_call.1} parent=94 // pred_region
          %s2875 = sand.u32 %s285, 1
          %s2876 = scalar_lea.sflag [#allocation4], %s2875
          %s2877 = sand.u32 %s285, 1
          %s2878 = smul.addr %s2877, 64
          %s2879 = scalar_lea.vmem [#allocation3], %s2878
          %2880 = dma.done %s2876, 1024
        $region99: #{tpu_custom_call.1} parent=94 // pred_fallthru
          _
      $region95: #{tpu_custom_call.1} parent=5 // pred_fallthru
        _
    $region6: #{tpu_custom_call.1} parent=1 // loop_footer
      %s24 = sadd.s32 1, %s20
    $region7: #{tpu_custom_call.1} parent=1 // loop_footer_branch
      %19 = sbr.rel target = $region3
    $region8: #{tpu_custom_call.1} parent=1 // loop_exit
      _
    %2881 = vsyncpa [#allocation4], 1
    %s2882 = scalar_lea.sflag [#allocation4], 1
    %2883 = vsyncpa %s2882, 1

</llo_original>
